<compile_context>
chip_gen: v5e
topology: v5e:2x2
jax: 0.10.0
libtpu: 0.0.40
codegen_flags: <defaults>
</compile_context>

<pallas_src>
import numpy as np
import jax
import jax.numpy as jnp
from jax.experimental import pallas as pl
from jax.experimental.pallas import tpu as pltpu

H_IN, W_IN = 13, 237
C1, C2 = 16, 32                       # conv channel counts
P1H, P1W = H_IN // 2, W_IN // 2       # 6, 118  (after pool1)
P2H, P2W = P1H // 2, P1W // 2         # 3, 59   (after pool2)
NUM_CLASSES = 5
FC1_IN = C2 * P2H * P2W               # 5664
HIDDEN = 128

# lane layout of the conv matmul outputs: even-h block at lanes [0,96),
# odd-h block at lanes [128,224)  (128-aligned so the pool max is two clean slices)
NCOL = 224


# ---------------------------------------------------------------------------
# Fused conv1 + ReLU + pool1 + conv2 + ReLU + pool2  (one sample per grid step)
# ---------------------------------------------------------------------------
def conv_pool_kernel(xpt_ref, m1_ref, b1_ref, m2_ref, b2_ref,
                     se1_ref, so1_ref, se2_ref, so2_ref, out_ref, x2_scr):
    f32 = jnp.float32

    # ---- conv1 (1->16, 3x3, pad 1): 3 MXU matmuls over (kw, padded-h) ----
    # xpt_ref[0]: (239, 16) padded input, W on sublanes, padded-H (15 used) on lanes.
    # v1[w, col(h, c)] = conv1 pre-activation at (h, w, c); even/odd h live in lane
    # blocks [0:96) / [128:224) so the pool's H-max is a plain lane-slice max.
    v1 = b1_ref[...]                                                   # (1, 224)
    for kw in range(3):
        v1 = v1 + jnp.dot(xpt_ref[0, kw:kw + 2 * P1W, :],              # (236, 16)
                          m1_ref[kw * 16:(kw + 1) * 16, :],            # (16, 224)
                          preferred_element_type=f32)                  # (236, 224)
    h1 = jnp.maximum(v1[:, 0:96], v1[:, 128:224])                      # max over h pairs
    # W-max + stride-2 subsample via 0/1 selection matmuls (no strided loads needed)
    p1 = jnp.maximum(jnp.dot(se1_ref[...], h1, preferred_element_type=f32),
                     jnp.dot(so1_ref[...], h1, preferred_element_type=f32))
    p1 = jnp.maximum(p1, 0.0)                                          # ReLU (commutes w/ max)
    # p1: (118, 96), lane = pooled_h*16 + channel

    # ---- conv2 (16->32, 3x3, pad 1) on the pooled map, same trick ----
    # x2_scr rows = zero-padded pooled-W (rows 0 and 119 stay zero);
    # the H zero-padding is folded into the band matrix m2 instead.
    x2_scr[...] = jnp.zeros(x2_scr.shape, x2_scr.dtype)
    x2_scr[1:1 + P1W, :] = p1
    v2 = b2_ref[...]
    for kw in range(3):
        v2 = v2 + jnp.dot(x2_scr[kw:kw + P1W, :],                      # (118, 96)
                          m2_ref[kw * 96:(kw + 1) * 96, :],            # (96, 224)
                          preferred_element_type=f32)                  # (118, 224)
    h2 = jnp.maximum(v2[:, 0:96], v2[:, 128:224])
    p2 = jnp.maximum(jnp.dot(se2_ref[...], h2, preferred_element_type=f32),
                     jnp.dot(so2_ref[...], h2, preferred_element_type=f32))
    out_ref[0] = jnp.maximum(p2, 0.0)                                  # (59, 96)


def conv_pool_stack(xpt, kp):
    B = xpt.shape[0]
    const2 = lambda b: (0, 0)
    return pl.pallas_call(
        conv_pool_kernel,
        out_shape=jax.ShapeDtypeStruct((B, P2W, P2H * C2), jnp.float32),   # (B, 59, 96)
        grid_spec=pltpu.PrefetchScalarGridSpec(
            num_scalar_prefetch=0,
            grid=(B,),
            in_specs=[
                pl.BlockSpec((1, W_IN + 2, 16), lambda b: (b, 0, 0)),      # padded input
                pl.BlockSpec((3 * 16, NCOL), const2),                      # m1 (48, 224)
                pl.BlockSpec((1, NCOL), const2),                           # b1 tiled
                pl.BlockSpec((3 * 96, NCOL), const2),                      # m2 (288, 224)
                pl.BlockSpec((1, NCOL), const2),                           # b2 tiled
                pl.BlockSpec((P1W, 2 * P1W), const2),                      # pool1 even sel
                pl.BlockSpec((P1W, 2 * P1W), const2),                      # pool1 odd sel
                pl.BlockSpec((P2W, P1W), const2),                          # pool2 even sel
                pl.BlockSpec((P2W, P1W), const2),                          # pool2 odd sel
            ],
            out_specs=pl.BlockSpec((1, P2W, P2H * C2), lambda b: (b, 0, 0)),
            scratch_shapes=[pltpu.VMEM((P1W + 2, P1H * C1), jnp.float32)],  # (120, 96)
        ),
        compiler_params=pltpu.CompilerParams(dimension_semantics=("parallel",)),
    )(xpt, kp["m1"], kp["b1t"], kp["m2"], kp["b2t"],
      kp["se1"], kp["so1"], kp["se2"], kp["so2"])


# ---------------------------------------------------------------------------
# fc1 + ReLU + (dropout) + fc2  (fc2 padded to 128 lanes; bf16 MXU inputs)
# ---------------------------------------------------------------------------
def mlp_kernel(x_ref, w1_ref, b1_ref, w2_ref, b2_ref, o_ref):
    h = jnp.dot(x_ref[...], w1_ref[...],
                preferred_element_type=jnp.float32) + b1_ref[...]
    h = jnp.maximum(h, 0.0)
    # TODO(synk): Dropout(0.5) is identity at inference (eval mode); training-time
    # stochastic masking is not implemented here.
    o_ref[...] = jnp.dot(h, w2_ref[...],
                         preferred_element_type=jnp.float32) + b2_ref[...]


def mlp(x, w1, b1, w2, b2):
    B = x.shape[0]
    vmem = pl.BlockSpec(memory_space=pltpu.MemorySpace.VMEM)
    return pl.pallas_call(
        mlp_kernel,
        out_shape=jax.ShapeDtypeStruct((B, 128), jnp.float32),
        in_specs=[vmem] * 5,
        out_specs=vmem,
    )(x, w1, b1, w2, b2)


# ---------------------------------------------------------------------------
# Parameter preparation: PyTorch layouts -> kernel layouts (done once).
# ---------------------------------------------------------------------------
def prepare_params(p):
    w1 = np.asarray(p["conv1_w"], np.float32)   # (16, 1, 3, 3)  (Cout, Cin, kh, kw)
    b1 = np.asarray(p["conv1_b"], np.float32)   # (16,)
    w2 = np.asarray(p["conv2_w"], np.float32)   # (32, 16, 3, 3)
    b2 = np.asarray(p["conv2_b"], np.float32)   # (32,)
    fw1 = np.asarray(p["fc1_w"], np.float32)    # (128, 5664)    (out, in)
    fb1 = np.asarray(p["fc1_b"], np.float32)    # (128,)
    fw2 = np.asarray(p["fc2_w"], np.float32)    # (5, 128)
    fb2 = np.asarray(p["fc2_b"], np.float32)    # (5,)

    # conv1 band matrix: rows = kw*16 + padded_h, cols = (h//2)*16 + c  (+128 if h odd)
    m1 = np.zeros((3 * 16, NCOL), np.float32)
    b1t = np.zeros((1, NCOL), np.float32)
    for h in range(2 * P1H):                      # conv1 output rows used by pool1
        col = (h // 2) * C1 + 128 * (h % 2)
        b1t[0, col:col + C1] = b1
        for kh in range(3):
            hp = h + kh                           # padded-h index (0..14)
            for kw in range(3):
                m1[kw * 16 + hp, col:col + C1] = w1[:, 0, kh, kw]

    # conv2 band matrix: rows = kw*96 + pool1_h*16 + ci, cols = (h//2)*32 + c (+128 if h odd)
    m2 = np.zeros((3 * 96, NCOL), np.float32)
    b2t = np.zeros((1, NCOL), np.float32)
    for h in range(P1H):
        col = (h // 2) * C2 + 128 * (h % 2)
        b2t[0, col:col + C2] = b2
        for kh in range(3):
            i = h + kh - 1                        # pool1 row feeding (h, kh); out-of-range = zero pad
            if i < 0 or i >= P1H:
                continue
            for kw in range(3):
                m2[kw * 96 + i * C1: kw * 96 + (i + 1) * C1, col:col + C2] = w2[:, :, kh, kw].T

    # 0/1 selection matrices implementing the stride-2 W subsample of the pools
    def sel(n_out, n_in, parity):
        s = np.zeros((n_out, n_in), np.float32)
        s[np.arange(n_out), 2 * np.arange(n_out) + parity] = 1.0
        return s
    se1, so1 = sel(P1W, 2 * P1W, 0), sel(P1W, 2 * P1W, 1)
    se2, so2 = sel(P2W, P1W, 0), sel(P2W, P1W, 1)

    # fc1: transpose + permute rows from torch CHW flatten order to the kernel's
    # (pooled_w, pooled_h, channel) flatten order; bf16 for the MXU.
    wf1 = fw1.T.reshape(C2, P2H, P2W, HIDDEN).transpose(2, 1, 0, 3).reshape(FC1_IN, HIDDEN)
    # fc2: transpose and pad the output dim 5 -> 128 lanes (unmasked final store)
    wf2 = np.zeros((HIDDEN, 128), np.float32)
    wf2[:, :fw2.shape[0]] = fw2.T
    bf2 = np.zeros((1, 128), np.float32)
    bf2[0, :fb2.shape[0]] = fb2

    return dict(
        m1=jnp.asarray(m1), b1t=jnp.asarray(b1t),
        m2=jnp.asarray(m2), b2t=jnp.asarray(b2t),
        se1=jnp.asarray(se1), so1=jnp.asarray(so1),
        se2=jnp.asarray(se2), so2=jnp.asarray(so2),
        wf1=jnp.asarray(wf1, jnp.bfloat16),
        bf1=jnp.asarray(fb1.reshape(1, HIDDEN)),
        wf2=jnp.asarray(wf2), bf2=jnp.asarray(bf2),
    )


# ---------------------------------------------------------------------------
# Full forward pass (matches ChineseTonesCNN.forward, eval mode)
# ---------------------------------------------------------------------------
def chinese_tones_cnn_forward(x, kp):
    B = x.shape[0]
    # zero-pad H/W by 1 (conv padding), transpose so W is on sublanes and the
    # padded H (15 -> lane-pad to 16) is on lanes.
    xp = jnp.pad(x, ((0, 0), (1, 1), (1, 1)))                  # (B, 15, 239)
    xpt = jnp.transpose(xp, (0, 2, 1))                          # (B, 239, 15)
    xpt = jnp.pad(xpt, ((0, 0), (0, 0), (0, 1)))                # (B, 239, 16)
    feats = conv_pool_stack(xpt, kp)                            # (B, 59, 96)
    xf = feats.reshape(B, FC1_IN).astype(jnp.bfloat16)          # flatten order matches wf1
    logits = mlp(xf, kp["wf1"], kp["bf1"], kp["wf2"], kp["bf2"])  # (B, 128)
    return logits[:, :NUM_CLASSES]


# ---------------------------------------------------------------------------
# Torch-layout random params + pure-JAX reference (for validation only)
# ---------------------------------------------------------------------------
def init_params(key, num_classes=NUM_CLASSES):
    ks = jax.random.split(key, 8)

    def nrm(k, shape, scale):
        return (scale * jax.random.normal(k, shape)).astype(jnp.float32)

    return dict(
        conv1_w=nrm(ks[0], (C1, 1, 3, 3), 0.20),
        conv1_b=nrm(ks[1], (C1,), 0.10),
        conv2_w=nrm(ks[2], (C2, C1, 3, 3), 0.05),
        conv2_b=nrm(ks[3], (C2,), 0.05),
        fc1_w=nrm(ks[4], (HIDDEN, FC1_IN), 0.01),
        fc1_b=nrm(ks[5], (HIDDEN,), 0.01),
        fc2_w=nrm(ks[6], (num_classes, HIDDEN), 0.05),
        fc2_b=nrm(ks[7], (num_classes,), 0.05),
    )


def reference_forward(x, p):
    """Plain-XLA replica of the PyTorch module (f32), used only to validate."""
    hi = jax.lax.Precision.HIGHEST
    y = x[:, None]                                              # (B, 1, 13, 237)
    y = jax.lax.conv_general_dilated(
        y, p["conv1_w"], (1, 1), ((1, 1), (1, 1)),
        dimension_numbers=("NCHW", "OIHW", "NCHW"), precision=hi)
    y = jax.nn.relu(y + p["conv1_b"][None, :, None, None])
    y = jax.lax.reduce_window(y, -jnp.inf, jax.lax.max, (1, 1, 2, 2), (1, 1, 2, 2), "VALID")
    y = jax.lax.conv_general_dilated(
        y, p["conv2_w"], (1, 1), ((1, 1), (1, 1)),
        dimension_numbers=("NCHW", "OIHW", "NCHW"), precision=hi)
    y = jax.nn.relu(y + p["conv2_b"][None, :, None, None])
    y = jax.lax.reduce_window(y, -jnp.inf, jax.lax.max, (1, 1, 2, 2), (1, 1, 2, 2), "VALID")
    y = y.reshape(y.shape[0], -1)
    y = jax.nn.relu(jnp.dot(y, p["fc1_w"].T, precision=hi) + p["fc1_b"])
    return jnp.dot(y, p["fc2_w"].T, precision=hi) + p["fc2_b"]


if __name__ == "__main__":
    key = jax.random.PRNGKey(0)
    kx, kp = jax.random.split(key)
    x = jax.random.normal(kx, (2, H_IN, W_IN), dtype=jnp.float32)
    torch_params = init_params(kp)
    kernel_params = prepare_params(torch_params)

    out = jax.jit(chinese_tones_cnn_forward)(x, kernel_params)
    out = jax.block_until_ready(out)
    assert out.shape == (2, NUM_CLASSES), out.shape
    assert out.dtype == jnp.float32

    ref = jax.block_until_ready(jax.jit(reference_forward)(x, torch_params))
    # tolerance covers the intentional bf16 cast of the fc1 matmul inputs
    assert jnp.allclose(out, ref, atol=1e-2, rtol=2e-2), (
        f"mismatch vs reference: max abs err = {float(jnp.max(jnp.abs(out - ref)))}")
    print("KERNEL_OK")
</pallas_src>

<mosaic_0001>
module attributes {stable_mosaic.version = 11 : i64} {
  func.func @conv_pool_kernel(%arg0: i32, %arg1: memref<1x239x16xf32, #tpu.memory_space<vmem>>, %arg2: memref<48x224xf32, #tpu.memory_space<vmem>>, %arg3: memref<1x224xf32, #tpu.memory_space<vmem>>, %arg4: memref<288x224xf32, #tpu.memory_space<vmem>>, %arg5: memref<1x224xf32, #tpu.memory_space<vmem>>, %arg6: memref<118x236xf32, #tpu.memory_space<vmem>>, %arg7: memref<118x236xf32, #tpu.memory_space<vmem>>, %arg8: memref<59x118xf32, #tpu.memory_space<vmem>>, %arg9: memref<59x118xf32, #tpu.memory_space<vmem>>, %arg10: memref<1x59x96xf32, #tpu.memory_space<vmem>>, %arg11: memref<120x96xf32, #tpu.memory_space<vmem>>) attributes {dimension_semantics = [#tpu.dimension_semantics<parallel>], iteration_bounds = array<i64: 2>, scalar_prefetch = 0 : i64, scratch_operands = 1 : i64, tpu.core_type = #tpu.core_type<tc>, window_params = [{transform_indices = @transform_0, window_bounds = array<i64: 1, 239, 16>}, {pipeline_mode = #tpu.pipeline_mode<synchronous>, transform_indices = @transform_1, window_bounds = array<i64: 48, 224>}, {pipeline_mode = #tpu.pipeline_mode<synchronous>, transform_indices = @transform_2, window_bounds = array<i64: 1, 224>}, {pipeline_mode = #tpu.pipeline_mode<synchronous>, transform_indices = @transform_3, window_bounds = array<i64: 288, 224>}, {pipeline_mode = #tpu.pipeline_mode<synchronous>, transform_indices = @transform_4, window_bounds = array<i64: 1, 224>}, {pipeline_mode = #tpu.pipeline_mode<synchronous>, transform_indices = @transform_5, window_bounds = array<i64: 118, 236>}, {pipeline_mode = #tpu.pipeline_mode<synchronous>, transform_indices = @transform_6, window_bounds = array<i64: 118, 236>}, {pipeline_mode = #tpu.pipeline_mode<synchronous>, transform_indices = @transform_7, window_bounds = array<i64: 59, 118>}, {pipeline_mode = #tpu.pipeline_mode<synchronous>, transform_indices = @transform_8, window_bounds = array<i64: 59, 118>}, {transform_indices = @transform_9, window_bounds = array<i64: 1, 59, 96>}]} {
    %c0 = arith.constant 0 : index
    %c0_0 = arith.constant 0 : index
    %0 = vector.load %arg3[%c0, %c0_0] : memref<1x224xf32, #tpu.memory_space<vmem>>, vector<1x224xf32>
    %c0_1 = arith.constant 0 : index
    %c0_2 = arith.constant 0 : index
    %c0_3 = arith.constant 0 : index
    %1 = vector.load %arg1[%c0_1, %c0_2, %c0_3] : memref<1x239x16xf32, #tpu.memory_space<vmem>>, vector<1x236x16xf32>
    %2 = vector.shape_cast %1 : vector<1x236x16xf32> to vector<236x16xf32>
    %c0_4 = arith.constant 0 : index
    %c0_5 = arith.constant 0 : index
    %3 = vector.load %arg2[%c0_4, %c0_5] : memref<48x224xf32, #tpu.memory_space<vmem>>, vector<16x224xf32>
    %cst = arith.constant dense<0.000000e+00> : vector<236x224xf32>
    %4 = tpu.matmul %2, %3, %cst {dimension_numbers = #tpu.dot_dimension_numbers<[1], [0], [0], [1], [0, 0, 1, 1], [], []>} : vector<236x16xf32>, vector<16x224xf32>, vector<236x224xf32> -> vector<236x224xf32>
    %5 = vector.broadcast %0 : vector<1x224xf32> to vector<236x224xf32>
    %6 = arith.addf %5, %4 : vector<236x224xf32>
    %c0_6 = arith.constant 0 : index
    %c1 = arith.constant 1 : index
    %c0_7 = arith.constant 0 : index
    %7 = vector.load %arg1[%c0_6, %c1, %c0_7] : memref<1x239x16xf32, #tpu.memory_space<vmem>>, vector<1x236x16xf32>
    %8 = vector.shape_cast %7 : vector<1x236x16xf32> to vector<236x16xf32>
    %c16 = arith.constant 16 : index
    %c0_8 = arith.constant 0 : index
    %9 = vector.load %arg2[%c16, %c0_8] : memref<48x224xf32, #tpu.memory_space<vmem>>, vector<16x224xf32>
    %cst_9 = arith.constant dense<0.000000e+00> : vector<236x224xf32>
    %10 = tpu.matmul %8, %9, %cst_9 {dimension_numbers = #tpu.dot_dimension_numbers<[1], [0], [0], [1], [0, 0, 1, 1], [], []>} : vector<236x16xf32>, vector<16x224xf32>, vector<236x224xf32> -> vector<236x224xf32>
    %11 = arith.addf %6, %10 : vector<236x224xf32>
    %c0_10 = arith.constant 0 : index
    %c2 = arith.constant 2 : index
    %c0_11 = arith.constant 0 : index
    %12 = vector.load %arg1[%c0_10, %c2, %c0_11] : memref<1x239x16xf32, #tpu.memory_space<vmem>>, vector<1x236x16xf32>
    %13 = vector.shape_cast %12 : vector<1x236x16xf32> to vector<236x16xf32>
    %c32 = arith.constant 32 : index
    %c0_12 = arith.constant 0 : index
    %14 = vector.load %arg2[%c32, %c0_12] : memref<48x224xf32, #tpu.memory_space<vmem>>, vector<16x224xf32>
    %cst_13 = arith.constant dense<0.000000e+00> : vector<236x224xf32>
    %15 = tpu.matmul %13, %14, %cst_13 {dimension_numbers = #tpu.dot_dimension_numbers<[1], [0], [0], [1], [0, 0, 1, 1], [], []>} : vector<236x16xf32>, vector<16x224xf32>, vector<236x224xf32> -> vector<236x224xf32>
    %16 = arith.addf %11, %15 : vector<236x224xf32>
    %17 = vector.extract_strided_slice %16 {offsets = [0, 0], sizes = [236, 96], strides = [1, 1]} : vector<236x224xf32> to vector<236x96xf32>
    %18 = vector.extract_strided_slice %16 {offsets = [0, 128], sizes = [236, 96], strides = [1, 1]} : vector<236x224xf32> to vector<236x96xf32>
    %19 = arith.maximumf %17, %18 : vector<236x96xf32>
    %c0_14 = arith.constant 0 : index
    %c0_15 = arith.constant 0 : index
    %20 = vector.load %arg6[%c0_14, %c0_15] : memref<118x236xf32, #tpu.memory_space<vmem>>, vector<118x236xf32>
    %cst_16 = arith.constant dense<0.000000e+00> : vector<118x96xf32>
    %21 = tpu.matmul %20, %19, %cst_16 {dimension_numbers = #tpu.dot_dimension_numbers<[1], [0], [0], [1], [0, 0, 1, 1], [], []>} : vector<118x236xf32>, vector<236x96xf32>, vector<118x96xf32> -> vector<118x96xf32>
    %c0_17 = arith.constant 0 : index
    %c0_18 = arith.constant 0 : index
    %22 = vector.load %arg7[%c0_17, %c0_18] : memref<118x236xf32, #tpu.memory_space<vmem>>, vector<118x236xf32>
    %cst_19 = arith.constant dense<0.000000e+00> : vector<118x96xf32>
    %23 = tpu.matmul %22, %19, %cst_19 {dimension_numbers = #tpu.dot_dimension_numbers<[1], [0], [0], [1], [0, 0, 1, 1], [], []>} : vector<118x236xf32>, vector<236x96xf32>, vector<118x96xf32> -> vector<118x96xf32>
    %24 = arith.maximumf %21, %23 : vector<118x96xf32>
    %cst_20 = arith.constant 0.000000e+00 : f32
    %25 = vector.broadcast %cst_20 : f32 to vector<118x96xf32>
    %26 = arith.maximumf %24, %25 : vector<118x96xf32>
    %cst_21 = arith.constant 0.000000e+00 : f32
    %27 = vector.broadcast %cst_21 : f32 to vector<120x96xf32>
    %c0_22 = arith.constant 0 : index
    %c0_23 = arith.constant 0 : index
    %28 = vector.load %arg11[%c0_22, %c0_23] : memref<120x96xf32, #tpu.memory_space<vmem>>, vector<120x96xf32>
    tpu.vector_store %arg11[%c0_22, %c0_23], %27 {strides = array<i32>} : memref<120x96xf32, #tpu.memory_space<vmem>>, vector<120x96xf32>,
    %c1_24 = arith.constant 1 : index
    %c0_25 = arith.constant 0 : index
    %29 = vector.load %arg11[%c1_24, %c0_25] : memref<120x96xf32, #tpu.memory_space<vmem>>, vector<118x96xf32>
    tpu.vector_store %arg11[%c1_24, %c0_25], %26 {strides = array<i32>} : memref<120x96xf32, #tpu.memory_space<vmem>>, vector<118x96xf32>,
    %c0_26 = arith.constant 0 : index
    %c0_27 = arith.constant 0 : index
    %30 = vector.load %arg5[%c0_26, %c0_27] : memref<1x224xf32, #tpu.memory_space<vmem>>, vector<1x224xf32>
    %c0_28 = arith.constant 0 : index
    %c0_29 = arith.constant 0 : index
    %31 = vector.load %arg11[%c0_28, %c0_29] : memref<120x96xf32, #tpu.memory_space<vmem>>, vector<118x96xf32>
    %c0_30 = arith.constant 0 : index
    %c0_31 = arith.constant 0 : index
    %32 = vector.load %arg4[%c0_30, %c0_31] : memref<288x224xf32, #tpu.memory_space<vmem>>, vector<96x224xf32>
    %cst_32 = arith.constant dense<0.000000e+00> : vector<118x224xf32>
    %33 = tpu.matmul %31, %32, %cst_32 {dimension_numbers = #tpu.dot_dimension_numbers<[1], [0], [0], [1], [0, 0, 1, 1], [], []>} : vector<118x96xf32>, vector<96x224xf32>, vector<118x224xf32> -> vector<118x224xf32>
    %34 = vector.broadcast %30 : vector<1x224xf32> to vector<118x224xf32>
    %35 = arith.addf %34, %33 : vector<118x224xf32>
    %c1_33 = arith.constant 1 : index
    %c0_34 = arith.constant 0 : index
    %36 = vector.load %arg11[%c1_33, %c0_34] : memref<120x96xf32, #tpu.memory_space<vmem>>, vector<118x96xf32>
    %c96 = arith.constant 96 : index
    %c0_35 = arith.constant 0 : index
    %37 = vector.load %arg4[%c96, %c0_35] : memref<288x224xf32, #tpu.memory_space<vmem>>, vector<96x224xf32>
    %cst_36 = arith.constant dense<0.000000e+00> : vector<118x224xf32>
    %38 = tpu.matmul %36, %37, %cst_36 {dimension_numbers = #tpu.dot_dimension_numbers<[1], [0], [0], [1], [0, 0, 1, 1], [], []>} : vector<118x96xf32>, vector<96x224xf32>, vector<118x224xf32> -> vector<118x224xf32>
    %39 = arith.addf %35, %38 : vector<118x224xf32>
    %c2_37 = arith.constant 2 : index
    %c0_38 = arith.constant 0 : index
    %40 = vector.load %arg11[%c2_37, %c0_38] : memref<120x96xf32, #tpu.memory_space<vmem>>, vector<118x96xf32>
    %c192 = arith.constant 192 : index
    %c0_39 = arith.constant 0 : index
    %41 = vector.load %arg4[%c192, %c0_39] : memref<288x224xf32, #tpu.memory_space<vmem>>, vector<96x224xf32>
    %cst_40 = arith.constant dense<0.000000e+00> : vector<118x224xf32>
    %42 = tpu.matmul %40, %41, %cst_40 {dimension_numbers = #tpu.dot_dimension_numbers<[1], [0], [0], [1], [0, 0, 1, 1], [], []>} : vector<118x96xf32>, vector<96x224xf32>, vector<118x224xf32> -> vector<118x224xf32>
    %43 = arith.addf %39, %42 : vector<118x224xf32>
    %44 = vector.extract_strided_slice %43 {offsets = [0, 0], sizes = [118, 96], strides = [1, 1]} : vector<118x224xf32> to vector<118x96xf32>
    %45 = vector.extract_strided_slice %43 {offsets = [0, 128], sizes = [118, 96], strides = [1, 1]} : vector<118x224xf32> to vector<118x96xf32>
    %46 = arith.maximumf %44, %45 : vector<118x96xf32>
    %c0_41 = arith.constant 0 : index
    %c0_42 = arith.constant 0 : index
    %47 = vector.load %arg8[%c0_41, %c0_42] : memref<59x118xf32, #tpu.memory_space<vmem>>, vector<59x118xf32>
    %cst_43 = arith.constant dense<0.000000e+00> : vector<59x96xf32>
    %48 = tpu.matmul %47, %46, %cst_43 {dimension_numbers = #tpu.dot_dimension_numbers<[1], [0], [0], [1], [0, 0, 1, 1], [], []>} : vector<59x118xf32>, vector<118x96xf32>, vector<59x96xf32> -> vector<59x96xf32>
    %c0_44 = arith.constant 0 : index
    %c0_45 = arith.constant 0 : index
    %49 = vector.load %arg9[%c0_44, %c0_45] : memref<59x118xf32, #tpu.memory_space<vmem>>, vector<59x118xf32>
    %cst_46 = arith.constant dense<0.000000e+00> : vector<59x96xf32>
    %50 = tpu.matmul %49, %46, %cst_46 {dimension_numbers = #tpu.dot_dimension_numbers<[1], [0], [0], [1], [0, 0, 1, 1], [], []>} : vector<59x118xf32>, vector<118x96xf32>, vector<59x96xf32> -> vector<59x96xf32>
    %51 = arith.maximumf %48, %50 : vector<59x96xf32>
    %cst_47 = arith.constant 0.000000e+00 : f32
    %52 = vector.broadcast %cst_47 : f32 to vector<59x96xf32>
    %53 = arith.maximumf %51, %52 : vector<59x96xf32>
    %c0_48 = arith.constant 0 : index
    %c0_49 = arith.constant 0 : index
    %c0_50 = arith.constant 0 : index
    %54 = vector.load %arg10[%c0_48, %c0_49, %c0_50] : memref<1x59x96xf32, #tpu.memory_space<vmem>>, vector<1x59x96xf32>
    %55 = vector.shape_cast %54 : vector<1x59x96xf32> to vector<59x96xf32>
    %56 = vector.shape_cast %53 : vector<59x96xf32> to vector<1x59x96xf32>
    tpu.vector_store %arg10[%c0_48, %c0_49, %c0_50], %56 {strides = array<i32>} : memref<1x59x96xf32, #tpu.memory_space<vmem>>, vector<1x59x96xf32>,
    return
  }
  func.func @transform_0(%arg0: i32) -> (i32, i32, i32) {
    %c0_i32 = arith.constant 0 : i32
    %c0_i32_0 = arith.constant 0 : i32
    %c0_i32_1 = arith.constant 0 : i32
    return %arg0, %c0_i32, %c0_i32_0 : i32, i32, i32
  }
  func.func @transform_1(%arg0: i32) -> (i32, i32) {
    %c0_i32 = arith.constant 0 : i32
    %c0_i32_0 = arith.constant 0 : i32
    %c0_i32_1 = arith.constant 0 : i32
    return %c0_i32, %c0_i32_0 : i32, i32
  }
  func.func @transform_2(%arg0: i32) -> (i32, i32) {
    %c0_i32 = arith.constant 0 : i32
    %c0_i32_0 = arith.constant 0 : i32
    %c0_i32_1 = arith.constant 0 : i32
    return %c0_i32, %c0_i32_0 : i32, i32
  }
  func.func @transform_3(%arg0: i32) -> (i32, i32) {
    %c0_i32 = arith.constant 0 : i32
    %c0_i32_0 = arith.constant 0 : i32
    %c0_i32_1 = arith.constant 0 : i32
    return %c0_i32, %c0_i32_0 : i32, i32
  }
  func.func @transform_4(%arg0: i32) -> (i32, i32) {
    %c0_i32 = arith.constant 0 : i32
    %c0_i32_0 = arith.constant 0 : i32
    %c0_i32_1 = arith.constant 0 : i32
    return %c0_i32, %c0_i32_0 : i32, i32
  }
  func.func @transform_5(%arg0: i32) -> (i32, i32) {
    %c0_i32 = arith.constant 0 : i32
    %c0_i32_0 = arith.constant 0 : i32
    %c0_i32_1 = arith.constant 0 : i32
    return %c0_i32, %c0_i32_0 : i32, i32
  }
  func.func @transform_6(%arg0: i32) -> (i32, i32) {
    %c0_i32 = arith.constant 0 : i32
    %c0_i32_0 = arith.constant 0 : i32
    %c0_i32_1 = arith.constant 0 : i32
    return %c0_i32, %c0_i32_0 : i32, i32
  }
  func.func @transform_7(%arg0: i32) -> (i32, i32) {
    %c0_i32 = arith.constant 0 : i32
    %c0_i32_0 = arith.constant 0 : i32
    %c0_i32_1 = arith.constant 0 : i32
    return %c0_i32, %c0_i32_0 : i32, i32
  }
  func.func @transform_8(%arg0: i32) -> (i32, i32) {
    %c0_i32 = arith.constant 0 : i32
    %c0_i32_0 = arith.constant 0 : i32
    %c0_i32_1 = arith.constant 0 : i32
    return %c0_i32, %c0_i32_0 : i32, i32
  }
  func.func @transform_9(%arg0: i32) -> (i32, i32, i32) {
    %c0_i32 = arith.constant 0 : i32
    %c0_i32_0 = arith.constant 0 : i32
    %c0_i32_1 = arith.constant 0 : i32
    return %arg0, %c0_i32, %c0_i32_0 : i32, i32, i32
  }
}

module attributes {stable_mosaic.version = 11 : i64} {
  func.func @mlp_kernel(%arg0: memref<2x5664xbf16, #tpu.memory_space<vmem>>, %arg1: memref<5664x128xbf16, #tpu.memory_space<vmem>>, %arg2: memref<1x128xf32, #tpu.memory_space<vmem>>, %arg3: memref<128x128xf32, #tpu.memory_space<vmem>>, %arg4: memref<1x128xf32, #tpu.memory_space<vmem>>, %arg5: memref<2x128xf32, #tpu.memory_space<vmem>>) attributes {dimension_semantics = [], scalar_prefetch = 0 : i64, scratch_operands = 0 : i64, tpu.core_type = #tpu.core_type<tc>} {
    %c0 = arith.constant 0 : index
    %c0_0 = arith.constant 0 : index
    %0 = vector.load %arg0[%c0, %c0_0] : memref<2x5664xbf16, #tpu.memory_space<vmem>>, vector<2x5664xbf16>
    %c0_1 = arith.constant 0 : index
    %c0_2 = arith.constant 0 : index
    %1 = vector.load %arg1[%c0_1, %c0_2] : memref<5664x128xbf16, #tpu.memory_space<vmem>>, vector<5664x128xbf16>
    %cst = arith.constant dense<0.000000e+00> : vector<2x128xf32>
    %2 = tpu.matmul %0, %1, %cst {dimension_numbers = #tpu.dot_dimension_numbers<[1], [0], [0], [1], [0, 0, 1, 1], [], []>} : vector<2x5664xbf16>, vector<5664x128xbf16>, vector<2x128xf32> -> vector<2x128xf32>
    %c0_3 = arith.constant 0 : index
    %c0_4 = arith.constant 0 : index
    %3 = vector.load %arg2[%c0_3, %c0_4] : memref<1x128xf32, #tpu.memory_space<vmem>>, vector<1x128xf32>
    %4 = vector.broadcast %3 : vector<1x128xf32> to vector<2x128xf32>
    %5 = arith.addf %2, %4 : vector<2x128xf32>
    %cst_5 = arith.constant 0.000000e+00 : f32
    %6 = vector.broadcast %cst_5 : f32 to vector<2x128xf32>
    %7 = arith.maximumf %5, %6 : vector<2x128xf32>
    %c0_6 = arith.constant 0 : index
    %c0_7 = arith.constant 0 : index
    %8 = vector.load %arg3[%c0_6, %c0_7] : memref<128x128xf32, #tpu.memory_space<vmem>>, vector<128x128xf32>
    %cst_8 = arith.constant dense<0.000000e+00> : vector<2x128xf32>
    %9 = tpu.matmul %7, %8, %cst_8 {dimension_numbers = #tpu.dot_dimension_numbers<[1], [0], [0], [1], [0, 0, 1, 1], [], []>} : vector<2x128xf32>, vector<128x128xf32>, vector<2x128xf32> -> vector<2x128xf32>
    %c0_9 = arith.constant 0 : index
    %c0_10 = arith.constant 0 : index
    %10 = vector.load %arg4[%c0_9, %c0_10] : memref<1x128xf32, #tpu.memory_space<vmem>>, vector<1x128xf32>
    %11 = vector.broadcast %10 : vector<1x128xf32> to vector<2x128xf32>
    %12 = arith.addf %9, %11 : vector<2x128xf32>
    %c0_11 = arith.constant 0 : index
    %c0_12 = arith.constant 0 : index
    %13 = vector.load %arg5[%c0_11, %c0_12] : memref<2x128xf32, #tpu.memory_space<vmem>>, vector<2x128xf32>
    tpu.vector_store %arg5[%c0_11, %c0_12], %12 {strides = array<i32>} : memref<2x128xf32, #tpu.memory_space<vmem>>, vector<2x128xf32>,
    return
  }
}

</mosaic_0001>

<llo_original>
// kernel: chinese_tones_cnn_forward.2
$region0: #{chinese_tones_cnn_forward.2}
  #allocation0 [shape = 'u32[]', space=smem, size = 0x4, offset = 0x4, fixed_abs, tag = 'smem constant byte address 0x4 - core index']
  #allocation1 [shape = 'u32[72,128]{1,0:T(1,128)}', space=vmem, size = 0x9000, scoped, tag = 'internal scratch']
  #allocation2 [shape = 'f32[120,96]{1,0:T(8,128)}', space=vmem, size = 0xf000, scoped, tag = 'scratch operand']
  %s0 = inlined_call_operand.vmem [shape: f32[2,239,16], index: 0, kind: input, shape index: {}]
  %s1 = inlined_call_operand.hbm [shape: f32[48,224], index: 1, kind: input, shape index: {}]
  %s2 = inlined_call_operand.hbm [shape: f32[1,224], index: 2, kind: input, shape index: {}]
  %s3 = inlined_call_operand.hbm [shape: f32[288,224], index: 3, kind: input, shape index: {}]
  %s4 = inlined_call_operand.hbm [shape: f32[1,224], index: 4, kind: input, shape index: {}]
  %s5 = inlined_call_operand.hbm [shape: f32[118,236], index: 5, kind: input, shape index: {}]
  %s6 = inlined_call_operand.hbm [shape: f32[118,236], index: 6, kind: input, shape index: {}]
  %s7 = inlined_call_operand.hbm [shape: f32[59,118], index: 7, kind: input, shape index: {}]
  %s8 = inlined_call_operand.hbm [shape: f32[59,118], index: 8, kind: input, shape index: {}]
  %s9 = inlined_call_operand.vmem [shape: f32[2,59,96], index: 9, kind: output, shape index: {}]
  %s10 = sld [smem:[#allocation0]]
  $region101: #{chinese_tones_cnn_forward.2} parent=0
    _
  %s12 = ssub.s32 1, %s10
  %s13 = scalar_select 0, %s12, %s10
  $region1: #{chinese_tones_cnn_forward.2} parent=0
    #allocation3 [shape = 'u8[49152]{0}', space=vmem, size = 0xc000, scoped, tag = 'input window, operand 1, single buffered']
    #allocation4 [shape = 's32[2]{0}', space=sflag, size = 0x8, scoped, tag = 'scoped memory for chinese_tones_cnn_forward.2']
    #allocation5 [shape = 'u8[1024]{0}', space=vmem, size = 0x400, scoped, tag = 'input window, operand 2, single buffered']
    #allocation6 [shape = 's32[1]{0}', space=sflag, size = 0x4, scoped, tag = 'scoped memory for chinese_tones_cnn_forward.2']
    #allocation7 [shape = 'u8[294912]{0}', space=vmem, size = 0x48000, scoped, tag = 'input window, operand 3, single buffered']
    #allocation8 [shape = 'u8[1024]{0}', space=vmem, size = 0x400, scoped, tag = 'input window, operand 4, single buffered']
    #allocation9 [shape = 's32[1]{0}', space=sflag, size = 0x4, scoped, tag = 'scoped memory for chinese_tones_cnn_forward.2']
    #allocation10 [shape = 'u8[122880]{0}', space=vmem, size = 0x1e000, scoped, tag = 'input window, operand 5, single buffered']
    #allocation11 [shape = 'u8[122880]{0}', space=vmem, size = 0x1e000, scoped, tag = 'input window, operand 6, single buffered']
    #allocation12 [shape = 's32[1]{0}', space=sflag, size = 0x4, scoped, tag = 'scoped memory for chinese_tones_cnn_forward.2']
    #allocation13 [shape = 'u8[32768]{0}', space=vmem, size = 0x8000, scoped, tag = 'input window, operand 7, single buffered']
    #allocation14 [shape = 'u8[32768]{0}', space=vmem, size = 0x8000, scoped, tag = 'input window, operand 8, single buffered']
    #allocation15 [shape = 's32[1]{0}', space=sflag, size = 0x4, scoped, tag = 'scoped memory for chinese_tones_cnn_forward.2']
    %14 = vsyncpa [#allocation4], 0
    %15 = vsyncpa [#allocation6], 0
    %16 = vsyncpa [#allocation9], 0
    %17 = vsyncpa [#allocation12], 0
    %18 = vsyncpa [#allocation15], 0
    loop: start=0, step=1, limit=4
    $region2: #{chinese_tones_cnn_forward.2} parent=1 // loop_pre_header
      _
    $region3: #{chinese_tones_cnn_forward.2} parent=1 // loop_header
      %s20 = sphi 0, %s24
      %p21 = scmp.ge.s32.totalorder %s20, 4
      %s30 = sphi 0, %s32
      %s33 = sphi 0, %s30
      %s34 = sphi 0, %s33
      %s50 = sphi 0, %s34
      %s54 = sphi 0, %s54
      %s56 = sphi 0, %s54
      %s57 = sphi 0, %s56
      %s71 = sphi 0, %s57
      %s75 = sphi 0, %s75
      %s77 = sphi 0, %s75
      %s78 = sphi 0, %s77
      %s92 = sphi 0, %s78
      %s96 = sphi 0, %s96
      %s98 = sphi 0, %s96
      %s99 = sphi 0, %s98
      %s113 = sphi 0, %s99
      %s117 = sphi 0, %s117
      %s119 = sphi 0, %s117
      %s120 = sphi 0, %s119
      %s134 = sphi 0, %s120
      %s138 = sphi 0, %s138
      %s140 = sphi 0, %s138
      %s141 = sphi 0, %s140
      %s155 = sphi 0, %s141
      %s159 = sphi 0, %s159
      %s161 = sphi 0, %s159
      %s162 = sphi 0, %s161
      %s176 = sphi 0, %s162
      %s180 = sphi 0, %s180
      %s182 = sphi 0, %s180
      %s183 = sphi 0, %s182
      %s197 = sphi 0, %s183
      %s201 = sphi 0, %s201
      %s203 = sphi 0, %s201
      %s204 = sphi 0, %s203
      %s218 = sphi 0, %s204
      %s224 = sphi 0, %s226
      %s227 = sphi 0, %s224
      %s228 = sphi 0, %s227
      %s244 = sphi 0, %s228
    $region4: #{chinese_tones_cnn_forward.2} parent=1 // loop_header_branch
      %23 = sbr.rel (%p21) target = $region8
    $region5: #{chinese_tones_cnn_forward.2} parent=1 // loop_body
      %s25 = ssub.s32 %s20, 1
      %s26 = ssub.s32 %s20, 2
      %s27 = sadd.s32 %s20, 1
      %s28 = ssub.s32 %s20, %s27
      %p29 = scmp.eq.s32.totalorder %s28, 0
      %s31 = sadd.s32 %s30, 1
      %s32 = scalar_select %p29, %s30, %s31
      %p35 = pneg %p29
      %p36 = scmp.eq.s32.totalorder %s20, 1
      %p37 = por %p35, %p36
      %p38 = scmp.ne.s32.totalorder %s30, %s33
      %p39 = scmp.eq.s32.totalorder %s20, 0
      %p40 = por %p38, %p39
      %p41 = scmp.ne.s32.totalorder %s30, %s33
      %p42 = scmp.eq.s32.totalorder %s25, 1
      %p43 = por %p41, %p42
      %p44 = scmp.ne.s32.totalorder %s33, %s34
      %p45 = scmp.eq.s32.totalorder %s25, 0
      %p46 = por %p44, %p45
      %p47 = scmp.ne.s32.totalorder %s33, %s34
      %p48 = scmp.eq.s32.totalorder %s26, 1
      %p49 = por %p47, %p48
      %p51 = scmp.ne.s32.totalorder %s34, %s50
      %p52 = scmp.eq.s32.totalorder %s26, 0
      %p53 = por %p51, %p52
      %s55 = sadd.s32 %s54, 1
      %p58 = scmp.eq.s32.totalorder %s20, 1
      %p59 = scmp.ne.s32.totalorder %s54, %s56
      %p60 = scmp.eq.s32.totalorder %s20, 0
      %p61 = por %p59, %p60
      %p62 = scmp.ne.s32.totalorder %s54, %s56
      %p63 = scmp.eq.s32.totalorder %s25, 1
      %p64 = por %p62, %p63
      %p65 = scmp.ne.s32.totalorder %s56, %s57
      %p66 = scmp.eq.s32.totalorder %s25, 0
      %p67 = por %p65, %p66
      %p68 = scmp.ne.s32.totalorder %s56, %s57
      %p69 = scmp.eq.s32.totalorder %s26, 1
      %p70 = por %p68, %p69
      %p72 = scmp.ne.s32.totalorder %s57, %s71
      %p73 = scmp.eq.s32.totalorder %s26, 0
      %p74 = por %p72, %p73
      %s76 = sadd.s32 %s75, 1
      %p79 = scmp.eq.s32.totalorder %s20, 1
      %p80 = scmp.ne.s32.totalorder %s75, %s77
      %p81 = scmp.eq.s32.totalorder %s20, 0
      %p82 = por %p80, %p81
      %p83 = scmp.ne.s32.totalorder %s75, %s77
      %p84 = scmp.eq.s32.totalorder %s25, 1
      %p85 = por %p83, %p84
      %p86 = scmp.ne.s32.totalorder %s77, %s78
      %p87 = scmp.eq.s32.totalorder %s25, 0
      %p88 = por %p86, %p87
      %p89 = scmp.ne.s32.totalorder %s77, %s78
      %p90 = scmp.eq.s32.totalorder %s26, 1
      %p91 = por %p89, %p90
      %p93 = scmp.ne.s32.totalorder %s78, %s92
      %p94 = scmp.eq.s32.totalorder %s26, 0
      %p95 = por %p93, %p94
      %s97 = sadd.s32 %s96, 1
      %p100 = scmp.eq.s32.totalorder %s20, 1
      %p101 = scmp.ne.s32.totalorder %s96, %s98
      %p102 = scmp.eq.s32.totalorder %s20, 0
      %p103 = por %p101, %p102
      %p104 = scmp.ne.s32.totalorder %s96, %s98
      %p105 = scmp.eq.s32.totalorder %s25, 1
      %p106 = por %p104, %p105
      %p107 = scmp.ne.s32.totalorder %s98, %s99
      %p108 = scmp.eq.s32.totalorder %s25, 0
      %p109 = por %p107, %p108
      %p110 = scmp.ne.s32.totalorder %s98, %s99
      %p111 = scmp.eq.s32.totalorder %s26, 1
      %p112 = por %p110, %p111
      %p114 = scmp.ne.s32.totalorder %s99, %s113
      %p115 = scmp.eq.s32.totalorder %s26, 0
      %p116 = por %p114, %p115
      %s118 = sadd.s32 %s117, 1
      %p121 = scmp.eq.s32.totalorder %s20, 1
      %p122 = scmp.ne.s32.totalorder %s117, %s119
      %p123 = scmp.eq.s32.totalorder %s20, 0
      %p124 = por %p122, %p123
      %p125 = scmp.ne.s32.totalorder %s117, %s119
      %p126 = scmp.eq.s32.totalorder %s25, 1
      %p127 = por %p125, %p126
      %p128 = scmp.ne.s32.totalorder %s119, %s120
      %p129 = scmp.eq.s32.totalorder %s25, 0
      %p130 = por %p128, %p129
      %p131 = scmp.ne.s32.totalorder %s119, %s120
      %p132 = scmp.eq.s32.totalorder %s26, 1
      %p133 = por %p131, %p132
      %p135 = scmp.ne.s32.totalorder %s120, %s134
      %p136 = scmp.eq.s32.totalorder %s26, 0
      %p137 = por %p135, %p136
      %s139 = sadd.s32 %s138, 1
      %p142 = scmp.eq.s32.totalorder %s20, 1
      %p143 = scmp.ne.s32.totalorder %s138, %s140
      %p144 = scmp.eq.s32.totalorder %s20, 0
      %p145 = por %p143, %p144
      %p146 = scmp.ne.s32.totalorder %s138, %s140
      %p147 = scmp.eq.s32.totalorder %s25, 1
      %p148 = por %p146, %p147
      %p149 = scmp.ne.s32.totalorder %s140, %s141
      %p150 = scmp.eq.s32.totalorder %s25, 0
      %p151 = por %p149, %p150
      %p152 = scmp.ne.s32.totalorder %s140, %s141
      %p153 = scmp.eq.s32.totalorder %s26, 1
      %p154 = por %p152, %p153
      %p156 = scmp.ne.s32.totalorder %s141, %s155
      %p157 = scmp.eq.s32.totalorder %s26, 0
      %p158 = por %p156, %p157
      %s160 = sadd.s32 %s159, 1
      %p163 = scmp.eq.s32.totalorder %s20, 1
      %p164 = scmp.ne.s32.totalorder %s159, %s161
      %p165 = scmp.eq.s32.totalorder %s20, 0
      %p166 = por %p164, %p165
      %p167 = scmp.ne.s32.totalorder %s159, %s161
      %p168 = scmp.eq.s32.totalorder %s25, 1
      %p169 = por %p167, %p168
      %p170 = scmp.ne.s32.totalorder %s161, %s162
      %p171 = scmp.eq.s32.totalorder %s25, 0
      %p172 = por %p170, %p171
      %p173 = scmp.ne.s32.totalorder %s161, %s162
      %p174 = scmp.eq.s32.totalorder %s26, 1
      %p175 = por %p173, %p174
      %p177 = scmp.ne.s32.totalorder %s162, %s176
      %p178 = scmp.eq.s32.totalorder %s26, 0
      %p179 = por %p177, %p178
      %s181 = sadd.s32 %s180, 1
      %p184 = scmp.eq.s32.totalorder %s20, 1
      %p185 = scmp.ne.s32.totalorder %s180, %s182
      %p186 = scmp.eq.s32.totalorder %s20, 0
      %p187 = por %p185, %p186
      %p188 = scmp.ne.s32.totalorder %s180, %s182
      %p189 = scmp.eq.s32.totalorder %s25, 1
      %p190 = por %p188, %p189
      %p191 = scmp.ne.s32.totalorder %s182, %s183
      %p192 = scmp.eq.s32.totalorder %s25, 0
      %p193 = por %p191, %p192
      %p194 = scmp.ne.s32.totalorder %s182, %s183
      %p195 = scmp.eq.s32.totalorder %s26, 1
      %p196 = por %p194, %p195
      %p198 = scmp.ne.s32.totalorder %s183, %s197
      %p199 = scmp.eq.s32.totalorder %s26, 0
      %p200 = por %p198, %p199
      %s202 = sadd.s32 %s201, 1
      %p205 = scmp.eq.s32.totalorder %s20, 1
      %p206 = scmp.ne.s32.totalorder %s201, %s203
      %p207 = scmp.eq.s32.totalorder %s20, 0
      %p208 = por %p206, %p207
      %p209 = scmp.ne.s32.totalorder %s201, %s203
      %p210 = scmp.eq.s32.totalorder %s25, 1
      %p211 = por %p209, %p210
      %p212 = scmp.ne.s32.totalorder %s203, %s204
      %p213 = scmp.eq.s32.totalorder %s25, 0
      %p214 = por %p212, %p213
      %p215 = scmp.ne.s32.totalorder %s203, %s204
      %p216 = scmp.eq.s32.totalorder %s26, 1
      %p217 = por %p215, %p216
      %p219 = scmp.ne.s32.totalorder %s204, %s218
      %p220 = scmp.eq.s32.totalorder %s26, 0
      %p221 = por %p219, %p220
      %s222 = ssub.s32 %s20, %s27
      %p223 = scmp.eq.s32.totalorder %s222, 0
      %s225 = sadd.s32 %s224, 1
      %s226 = scalar_select %p223, %s224, %s225
      %p229 = pneg %p223
      %p230 = scmp.eq.s32.totalorder %s20, 1
      %p231 = por %p229, %p230
      %p232 = scmp.ne.s32.totalorder %s224, %s227
      %p233 = scmp.eq.s32.totalorder %s20, 0
      %p234 = por %p232, %p233
      %p235 = scmp.ne.s32.totalorder %s224, %s227
      %p236 = scmp.eq.s32.totalorder %s25, 1
      %p237 = por %p235, %p236
      %p238 = scmp.ne.s32.totalorder %s227, %s228
      %p239 = scmp.eq.s32.totalorder %s25, 0
      %p240 = por %p238, %p239
      %p241 = scmp.ne.s32.totalorder %s227, %s228
      %p242 = scmp.eq.s32.totalorder %s26, 1
      %p243 = por %p241, %p242
      %p245 = scmp.ne.s32.totalorder %s228, %s244
      %p246 = scmp.eq.s32.totalorder %s26, 0
      %p247 = por %p245, %p246
      %p248 = scmp.le.s32.totalorder 1, %s20
      %p249 = scmp.lt.s32.totalorder %s20, 3
      %p250 = pnand %p248, %p249
      %p251 = pneg %p250
      // Predicated region
      $region9: #{chinese_tones_cnn_forward.2} parent=5 // pred_check
        _
      $region10: #{chinese_tones_cnn_forward.2} parent=5 // pred_check_branch
        %253 = sbr.rel (%p250) target = $region12
      $region11: #{chinese_tones_cnn_forward.2} parent=5 // pred_region
        %s254 = ssub.s32 %s20, 1
        // Predicated region
        $region13: #{chinese_tones_cnn_forward.2} parent=11 // pred_check
          %p255 = pneg %p67
        $region14: #{chinese_tones_cnn_forward.2} parent=11 // pred_check_branch
          %257 = sbr.rel (%p255) target = $region16
        $region15: #{chinese_tones_cnn_forward.2} parent=11 // pred_region
          %259 = vsyncadd [#allocation4], 0
          %s260 = sshll.u32 %s1, 4
          %s261 = int_to_ptr.hbm [resolvable:$true] %s260
          %s262 = sshll.u32 [#allocation3], 4
          %s263 = int_to_ptr.vmem [resolvable:$true] %s262
          %268 = dma.hbm_to_vmem [thread:$0]  %s261, 1536, %s263, [#allocation4], 256, 256, 16
        $region16: #{chinese_tones_cnn_forward.2} parent=11 // pred_fallthru
          _
        // Predicated region
        $region17: #{chinese_tones_cnn_forward.2} parent=11 // pred_check
          %p269 = pneg %p88
        $region18: #{chinese_tones_cnn_forward.2} parent=11 // pred_check_branch
          %271 = sbr.rel (%p269) target = $region20
        $region19: #{chinese_tones_cnn_forward.2} parent=11 // pred_region
          %273 = vsyncadd [#allocation6], 0
          %s275 = sshll.u32 %s2, 4
          %s276 = int_to_ptr.hbm [resolvable:$true] %s275
          %s277 = sshll.u32 [#allocation5], 4
          %s278 = int_to_ptr.vmem [resolvable:$true] %s277
          %280 = dma.hbm_to_vmem [thread:$0]  %s276, 32, %s278, [#allocation6]
        $region20: #{chinese_tones_cnn_forward.2} parent=11 // pred_fallthru
          _
        // Predicated region
        $region21: #{chinese_tones_cnn_forward.2} parent=11 // pred_check
          %p281 = pneg %p109
        $region22: #{chinese_tones_cnn_forward.2} parent=11 // pred_check_branch
          %283 = sbr.rel (%p281) target = $region24
        $region23: #{chinese_tones_cnn_forward.2} parent=11 // pred_region
          %285 = vsyncadd [#allocation6], 0
          %s286 = sshll.u32 %s3, 4
          %s287 = int_to_ptr.hbm [resolvable:$true] %s286
          %s288 = sshll.u32 [#allocation7], 4
          %s289 = int_to_ptr.vmem [resolvable:$true] %s288
          %294 = dma.hbm_to_vmem [thread:$0]  %s287, 9216, %s289, [#allocation6], 256, 256, 16
        $region24: #{chinese_tones_cnn_forward.2} parent=11 // pred_fallthru
          _
        // Predicated region
        $region25: #{chinese_tones_cnn_forward.2} parent=11 // pred_check
          %p295 = pneg %p130
        $region26: #{chinese_tones_cnn_forward.2} parent=11 // pred_check_branch
          %297 = sbr.rel (%p295) target = $region28
        $region27: #{chinese_tones_cnn_forward.2} parent=11 // pred_region
          %299 = vsyncadd [#allocation9], 0
          %s301 = sshll.u32 %s4, 4
          %s302 = int_to_ptr.hbm [resolvable:$true] %s301
          %s303 = sshll.u32 [#allocation8], 4
          %s304 = int_to_ptr.vmem [resolvable:$true] %s303
          %306 = dma.hbm_to_vmem [thread:$0]  %s302, 32, %s304, [#allocation9]
        $region28: #{chinese_tones_cnn_forward.2} parent=11 // pred_fallthru
          _
        // Predicated region
        $region29: #{chinese_tones_cnn_forward.2} parent=11 // pred_check
          %p307 = pneg %p151
        $region30: #{chinese_tones_cnn_forward.2} parent=11 // pred_check_branch
          %309 = sbr.rel (%p307) target = $region32
        $region31: #{chinese_tones_cnn_forward.2} parent=11 // pred_region
          %311 = vsyncadd [#allocation9], 0
          %s312 = sshll.u32 %s5, 4
          %s313 = int_to_ptr.hbm [resolvable:$true] %s312
          %s314 = sshll.u32 [#allocation10], 4
          %s315 = int_to_ptr.vmem [resolvable:$true] %s314
          %320 = dma.hbm_to_vmem [thread:$0]  %s313, 3840, %s315, [#allocation9], 256, 256, 16
        $region32: #{chinese_tones_cnn_forward.2} parent=11 // pred_fallthru
          _
        // Predicated region
        $region33: #{chinese_tones_cnn_forward.2} parent=11 // pred_check
          %p321 = pneg %p172
        $region34: #{chinese_tones_cnn_forward.2} parent=11 // pred_check_branch
          %323 = sbr.rel (%p321) target = $region36
        $region35: #{chinese_tones_cnn_forward.2} parent=11 // pred_region
          %325 = vsyncadd [#allocation12], 0
          %s326 = sshll.u32 %s6, 4
          %s327 = int_to_ptr.hbm [resolvable:$true] %s326
          %s328 = sshll.u32 [#allocation11], 4
          %s329 = int_to_ptr.vmem [resolvable:$true] %s328
          %334 = dma.hbm_to_vmem [thread:$0]  %s327, 3840, %s329, [#allocation12], 256, 256, 16
        $region36: #{chinese_tones_cnn_forward.2} parent=11 // pred_fallthru
          _
        // Predicated region
        $region37: #{chinese_tones_cnn_forward.2} parent=11 // pred_check
          %p335 = pneg %p193
        $region38: #{chinese_tones_cnn_forward.2} parent=11 // pred_check_branch
          %337 = sbr.rel (%p335) target = $region40
        $region39: #{chinese_tones_cnn_forward.2} parent=11 // pred_region
          %339 = vsyncadd [#allocation12], 0
          %s340 = sshll.u32 %s7, 4
          %s341 = int_to_ptr.hbm [resolvable:$true] %s340
          %s342 = sshll.u32 [#allocation13], 4
          %s343 = int_to_ptr.vmem [resolvable:$true] %s342
          %348 = dma.hbm_to_vmem [thread:$0]  %s341, 1024, %s343, [#allocation12], 128, 128, 8
        $region40: #{chinese_tones_cnn_forward.2} parent=11 // pred_fallthru
          _
        // Predicated region
        $region41: #{chinese_tones_cnn_forward.2} parent=11 // pred_check
          %p349 = pneg %p214
        $region42: #{chinese_tones_cnn_forward.2} parent=11 // pred_check_branch
          %351 = sbr.rel (%p349) target = $region44
        $region43: #{chinese_tones_cnn_forward.2} parent=11 // pred_region
          %353 = vsyncadd [#allocation15], 0
          %s354 = sshll.u32 %s8, 4
          %s355 = int_to_ptr.hbm [resolvable:$true] %s354
          %s356 = sshll.u32 [#allocation14], 4
          %s357 = int_to_ptr.vmem [resolvable:$true] %s356
          %362 = dma.hbm_to_vmem [thread:$0]  %s355, 1024, %s357, [#allocation15], 128, 128, 8
        $region44: #{chinese_tones_cnn_forward.2} parent=11 // pred_fallthru
          _
      $region12: #{chinese_tones_cnn_forward.2} parent=5 // pred_fallthru
        _
      %p363 = scmp.lt.s32.totalorder %s20, 2
      // Predicated region
      $region45: #{chinese_tones_cnn_forward.2} parent=5 // pred_check
        %p364 = pneg %p363
      $region46: #{chinese_tones_cnn_forward.2} parent=5 // pred_check_branch
        %366 = sbr.rel (%p364) target = $region48
      $region47: #{chinese_tones_cnn_forward.2} parent=5 // pred_region
        // Predicated region
        $region49: #{chinese_tones_cnn_forward.2} parent=47 // pred_check
          %p367 = pneg %p40
        $region50: #{chinese_tones_cnn_forward.2} parent=47 // pred_check_branch
          %369 = sbr.rel (%p367) target = $region52
        $region51: #{chinese_tones_cnn_forward.2} parent=47 // pred_region
          %p370 = scmp.lt.s32.totalorder %s20, 1
          %s371 = scalar_select %p370, %s20, 1
          %s372 = smul.addr %s371, 30
          %s373 = smul.addr %s372, 8
          %s374 = scalar_lea.vmem %s0, %s373
        $region52: #{chinese_tones_cnn_forward.2} parent=47 // pred_fallthru
          _
      $region48: #{chinese_tones_cnn_forward.2} parent=5 // pred_fallthru
        _
      %p375 = scmp.le.s32.totalorder 1, %s20
      %p376 = scmp.lt.s32.totalorder %s20, 3
      %p377 = pnand %p375, %p376
      %p378 = pneg %p377
      // Predicated region
      $region53: #{chinese_tones_cnn_forward.2} parent=5 // pred_check
        _
      $region54: #{chinese_tones_cnn_forward.2} parent=5 // pred_check_branch
        %380 = sbr.rel (%p377) target = $region56
      $region55: #{chinese_tones_cnn_forward.2} parent=5 // pred_region
        %s381 = ssub.s32 %s20, 1
        // Predicated region
        $region57: #{chinese_tones_cnn_forward.2} parent=55 // pred_check
          %p382 = pneg %p67
        $region58: #{chinese_tones_cnn_forward.2} parent=55 // pred_check_branch
          %384 = sbr.rel (%p382) target = $region60
        $region59: #{chinese_tones_cnn_forward.2} parent=55 // pred_region
          %386 = dma.done [#allocation4], 1536
        $region60: #{chinese_tones_cnn_forward.2} parent=55 // pred_fallthru
          _
        // Predicated region
        $region61: #{chinese_tones_cnn_forward.2} parent=55 // pred_check
          %p387 = pneg %p88
        $region62: #{chinese_tones_cnn_forward.2} parent=55 // pred_check_branch
          %389 = sbr.rel (%p387) target = $region64
        $region63: #{chinese_tones_cnn_forward.2} parent=55 // pred_region
          %391 = dma.done [#allocation6], 32
        $region64: #{chinese_tones_cnn_forward.2} parent=55 // pred_fallthru
          _
        // Predicated region
        $region65: #{chinese_tones_cnn_forward.2} parent=55 // pred_check
          %p392 = pneg %p109
        $region66: #{chinese_tones_cnn_forward.2} parent=55 // pred_check_branch
          %394 = sbr.rel (%p392) target = $region68
        $region67: #{chinese_tones_cnn_forward.2} parent=55 // pred_region
          %396 = dma.done [#allocation6], 9216
        $region68: #{chinese_tones_cnn_forward.2} parent=55 // pred_fallthru
          _
        // Predicated region
        $region69: #{chinese_tones_cnn_forward.2} parent=55 // pred_check
          %p397 = pneg %p130
        $region70: #{chinese_tones_cnn_forward.2} parent=55 // pred_check_branch
          %399 = sbr.rel (%p397) target = $region72
        $region71: #{chinese_tones_cnn_forward.2} parent=55 // pred_region
          %401 = dma.done [#allocation9], 32
        $region72: #{chinese_tones_cnn_forward.2} parent=55 // pred_fallthru
          _
        // Predicated region
        $region73: #{chinese_tones_cnn_forward.2} parent=55 // pred_check
          %p402 = pneg %p151
        $region74: #{chinese_tones_cnn_forward.2} parent=55 // pred_check_branch
          %404 = sbr.rel (%p402) target = $region76
        $region75: #{chinese_tones_cnn_forward.2} parent=55 // pred_region
          %406 = dma.done [#allocation9], 3840
        $region76: #{chinese_tones_cnn_forward.2} parent=55 // pred_fallthru
          _
        // Predicated region
        $region77: #{chinese_tones_cnn_forward.2} parent=55 // pred_check
          %p407 = pneg %p172
        $region78: #{chinese_tones_cnn_forward.2} parent=55 // pred_check_branch
          %409 = sbr.rel (%p407) target = $region80
        $region79: #{chinese_tones_cnn_forward.2} parent=55 // pred_region
          %411 = dma.done [#allocation12], 3840
        $region80: #{chinese_tones_cnn_forward.2} parent=55 // pred_fallthru
          _
        // Predicated region
        $region81: #{chinese_tones_cnn_forward.2} parent=55 // pred_check
          %p412 = pneg %p193
        $region82: #{chinese_tones_cnn_forward.2} parent=55 // pred_check_branch
          %414 = sbr.rel (%p412) target = $region84
        $region83: #{chinese_tones_cnn_forward.2} parent=55 // pred_region
          %416 = dma.done [#allocation12], 1024
        $region84: #{chinese_tones_cnn_forward.2} parent=55 // pred_fallthru
          _
        // Predicated region
        $region85: #{chinese_tones_cnn_forward.2} parent=55 // pred_check
          %p417 = pneg %p214
        $region86: #{chinese_tones_cnn_forward.2} parent=55 // pred_check_branch
          %419 = sbr.rel (%p417) target = $region88
        $region87: #{chinese_tones_cnn_forward.2} parent=55 // pred_region
          %421 = dma.done [#allocation15], 1024
        $region88: #{chinese_tones_cnn_forward.2} parent=55 // pred_fallthru
          _
        %p422 = scmp.lt.s32.totalorder %s25, 1
        %s423 = scalar_select %p422, %s25, 1
        %s424 = smul.addr %s423, 30
        %s425 = smul.addr %s424, 8
        %s426 = scalar_lea.vmem %s0, %s425
        %p427 = pneg %p46
        %p428 = pneg %p43
        %p429 = pneg %p67
        %p430 = pneg %p64
        %p431 = pneg %p88
        %p432 = pneg %p85
        %p433 = pneg %p109
        %p434 = pneg %p106
        %p435 = pneg %p130
        %p436 = pneg %p127
        %p437 = pneg %p151
        %p438 = pneg %p148
        %p439 = pneg %p172
        %p440 = pneg %p169
        %p441 = pneg %p193
        %p442 = pneg %p190
        %p443 = pneg %p214
        %p444 = pneg %p211
        %p445 = pneg %p240
        %p446 = pneg %p237
        %p447 = scmp.lt.s32.totalorder %s25, 1
        %s448 = scalar_select %p447, %s25, 1
        %s449 = smul.addr %s448, 8
        %s450 = smul.addr %s449, 8
        %s451 = scalar_lea.vmem %s9, %s450
        %p452 = scmp.lt.s32.totalorder %s25, 1
        %s453 = scalar_select %p452, %s25, 1
        %s454 = smul.addr %s453, 30
        %s455 = smul.addr %s454, 8
        %s456 = scalar_lea.vmem %s0, %s455
        %p457 = scmp.lt.s32.totalorder %s25, 1
        %s458 = scalar_select %p457, %s25, 1
        %s459 = smul.addr %s458, 8
        %s460 = smul.addr %s459, 8
        %s461 = scalar_lea.vmem %s9, %s460
        %v462 = vld [vmem:[#allocation5] sm:$0x3]
        %v463 = vld [vmem:[%s456] sm:$0xff]
        %v464 = vld [vmem:[%s456 + $0x8] sm:$0xff]
        %v465 = vld [vmem:[%s456 + $0x10] sm:$0xff]
        %v466 = vld [vmem:[%s456 + $0x18] sm:$0xff]
        %v467 = vld [vmem:[%s456 + $0x20] sm:$0xff]
        %v468 = vld [vmem:[%s456 + $0x28] sm:$0xff]
        %v469 = vld [vmem:[%s456 + $0x30] sm:$0xff]
        %v470 = vld [vmem:[%s456 + $0x38] sm:$0xff]
        %v471 = vld [vmem:[%s456 + $0x40] sm:$0xff]
        %v472 = vld [vmem:[%s456 + $0x48] sm:$0xff]
        %v473 = vld [vmem:[%s456 + $0x50] sm:$0xff]
        %v474 = vld [vmem:[%s456 + $0x58] sm:$0xff]
        %v475 = vld [vmem:[%s456 + $0x60] sm:$0xff]
        %v476 = vld [vmem:[%s456 + $0x68] sm:$0xff]
        %v477 = vld [vmem:[%s456 + $0x70] sm:$0xff]
        %v478 = vld [vmem:[%s456 + $0x78] sm:$0xff]
        %v479 = vld [vmem:[%s456 + $0x80] sm:$0xff]
        %v480 = vld [vmem:[%s456 + $0x88] sm:$0xff]
        %v481 = vld [vmem:[%s456 + $0x90] sm:$0xff]
        %v482 = vld [vmem:[%s456 + $0x98] sm:$0xff]
        %v483 = vld [vmem:[%s456 + $0xa0] sm:$0xff]
        %v484 = vld [vmem:[%s456 + $0xa8] sm:$0xff]
        %v485 = vld [vmem:[%s456 + $0xb0] sm:$0xff]
        %v486 = vld [vmem:[%s456 + $0xb8] sm:$0xff]
        %v487 = vld [vmem:[%s456 + $0xc0] sm:$0xff]
        %v488 = vld [vmem:[%s456 + $0xc8] sm:$0xff]
        %v489 = vld [vmem:[%s456 + $0xd0] sm:$0xff]
        %v490 = vld [vmem:[%s456 + $0xd8] sm:$0xff]
        %v491 = vld [vmem:[%s456 + $0xe0] sm:$0xff]
        %v492 = vld [vmem:[%s456 + $0xe8] sm:$0xf]
        %v493 = vld [vmem:[#allocation3] sm:$0xff]
        %v494 = vld [vmem:[#allocation3 + $0x8] sm:$0xff]
        %v495 = vld [vmem:[#allocation3 + $0x10] sm:$0xff]
        %v496 = vld [vmem:[#allocation3 + $0x18] sm:$0xff]
        %vm497 = vcmask 130048
        %v499 = vsel %vm497, %v463, 0
        %v502 = vsel %vm497, %v464, 0
        %v505 = vsel %vm497, %v465, 0
        %v508 = vsel %vm497, %v466, 0
        %v511 = vsel %vm497, %v467, 0
        %v514 = vsel %vm497, %v468, 0
        %v517 = vsel %vm497, %v469, 0
        %v520 = vsel %vm497, %v470, 0
        %v523 = vsel %vm497, %v471, 0
        %v526 = vsel %vm497, %v472, 0
        %v529 = vsel %vm497, %v473, 0
        %v532 = vsel %vm497, %v474, 0
        %v535 = vsel %vm497, %v475, 0
        %v538 = vsel %vm497, %v476, 0
        %v541 = vsel %vm497, %v477, 0
        %v544 = vsel %vm497, %v478, 0
        %v547 = vsel %vm497, %v479, 0
        %v550 = vsel %vm497, %v480, 0
        %v553 = vsel %vm497, %v481, 0
        %v556 = vsel %vm497, %v482, 0
        %v559 = vsel %vm497, %v483, 0
        %v562 = vsel %vm497, %v484, 0
        %v565 = vsel %vm497, %v485, 0
        %v568 = vsel %vm497, %v486, 0
        %v571 = vsel %vm497, %v487, 0
        %v574 = vsel %vm497, %v488, 0
        %v577 = vsel %vm497, %v489, 0
        %v580 = vsel %vm497, %v490, 0
        %v583 = vsel %vm497, %v491, 0
        %v586 = vsel %vm497, %v492, 0
        %588 = vmatpush.msra.mxu0 0.0
        %589 = vmatpush.msra.mxu0 0.0
        %590 = vmatpush.msra.mxu0 0.0
        %591 = vmatpush.msra.mxu0 0.0
        %592 = vmatpush.msra.mxu0 0.0
        %593 = vmatpush.msra.mxu0 0.0
        %594 = vmatpush.msra.mxu0 0.0
        %595 = vmatpush.msra.mxu0 0.0
        %596 = vmatpush.msra.mxu0 0.0
        %597 = vmatpush.msra.mxu0 0.0
        %598 = vmatpush.msra.mxu0 0.0
        %599 = vmatpush.msra.mxu0 0.0
        %600 = vmatpush.msra.mxu0 0.0
        %601 = vmatpush.msra.mxu0 0.0
        %602 = vmatpush.msra.mxu0 %v495
        %603 = vmatpush.msra.mxu0 %v493
        %604 = vmatmul.f32.gmra.mxu0 %v499
        %v605 = vpop.f32.mrf.mxu0
        %v606 = vadd.f32 0.0, %v605
        %607 = vmatmul.f32.gmra.mxu0 %v502
        %v608 = vpop.f32.mrf.mxu0
        %v609 = vadd.f32 0.0, %v608
        %610 = vmatmul.f32.gmra.mxu0 %v505
        %v611 = vpop.f32.mrf.mxu0
        %v612 = vadd.f32 0.0, %v611
        %613 = vmatmul.f32.gmra.mxu0 %v508
        %v614 = vpop.f32.mrf.mxu0
        %v615 = vadd.f32 0.0, %v614
        %616 = vmatmul.f32.gmra.mxu0 %v511
        %v617 = vpop.f32.mrf.mxu0
        %v618 = vadd.f32 0.0, %v617
        %619 = vmatmul.f32.gmra.mxu0 %v514
        %v620 = vpop.f32.mrf.mxu0
        %v621 = vadd.f32 0.0, %v620
        %622 = vmatmul.f32.gmra.mxu0 %v517
        %v623 = vpop.f32.mrf.mxu0
        %v624 = vadd.f32 0.0, %v623
        %625 = vmatmul.f32.gmra.mxu0 %v520
        %v626 = vpop.f32.mrf.mxu0
        %v627 = vadd.f32 0.0, %v626
        %628 = vmatmul.f32.gmra.mxu0 %v523
        %v629 = vpop.f32.mrf.mxu0
        %v630 = vadd.f32 0.0, %v629
        %631 = vmatmul.f32.gmra.mxu0 %v526
        %v632 = vpop.f32.mrf.mxu0
        %v633 = vadd.f32 0.0, %v632
        %634 = vmatmul.f32.gmra.mxu0 %v529
        %v635 = vpop.f32.mrf.mxu0
        %v636 = vadd.f32 0.0, %v635
        %637 = vmatmul.f32.gmra.mxu0 %v532
        %v638 = vpop.f32.mrf.mxu0
        %v639 = vadd.f32 0.0, %v638
        %640 = vmatmul.f32.gmra.mxu0 %v535
        %v641 = vpop.f32.mrf.mxu0
        %v642 = vadd.f32 0.0, %v641
        %643 = vmatmul.f32.gmra.mxu0 %v538
        %v644 = vpop.f32.mrf.mxu0
        %v645 = vadd.f32 0.0, %v644
        %646 = vmatmul.f32.gmra.mxu0 %v541
        %v647 = vpop.f32.mrf.mxu0
        %v648 = vadd.f32 0.0, %v647
        %649 = vmatmul.f32.gmra.mxu0 %v544
        %v650 = vpop.f32.mrf.mxu0
        %v651 = vadd.f32 0.0, %v650
        %652 = vmatmul.f32.gmra.mxu0 %v547
        %v653 = vpop.f32.mrf.mxu0
        %v654 = vadd.f32 0.0, %v653
        %655 = vmatmul.f32.gmra.mxu0 %v550
        %v656 = vpop.f32.mrf.mxu0
        %v657 = vadd.f32 0.0, %v656
        %658 = vmatmul.f32.gmra.mxu0 %v553
        %v659 = vpop.f32.mrf.mxu0
        %v660 = vadd.f32 0.0, %v659
        %661 = vmatmul.f32.gmra.mxu0 %v556
        %v662 = vpop.f32.mrf.mxu0
        %v663 = vadd.f32 0.0, %v662
        %664 = vmatmul.f32.gmra.mxu0 %v559
        %v665 = vpop.f32.mrf.mxu0
        %v666 = vadd.f32 0.0, %v665
        %667 = vmatmul.f32.gmra.mxu0 %v562
        %v668 = vpop.f32.mrf.mxu0
        %v669 = vadd.f32 0.0, %v668
        %670 = vmatmul.f32.gmra.mxu0 %v565
        %v671 = vpop.f32.mrf.mxu0
        %v672 = vadd.f32 0.0, %v671
        %673 = vmatmul.f32.gmra.mxu0 %v568
        %v674 = vpop.f32.mrf.mxu0
        %v675 = vadd.f32 0.0, %v674
        %676 = vmatmul.f32.gmra.mxu0 %v571
        %v677 = vpop.f32.mrf.mxu0
        %v678 = vadd.f32 0.0, %v677
        %679 = vmatmul.f32.gmra.mxu0 %v574
        %v680 = vpop.f32.mrf.mxu0
        %v681 = vadd.f32 0.0, %v680
        %682 = vmatmul.f32.gmra.mxu0 %v577
        %v683 = vpop.f32.mrf.mxu0
        %v684 = vadd.f32 0.0, %v683
        %685 = vmatmul.f32.gmra.mxu0 %v580
        %v686 = vpop.f32.mrf.mxu0
        %v687 = vadd.f32 0.0, %v686
        %688 = vmatmul.f32.gmra.mxu0 %v583
        %v689 = vpop.f32.mrf.mxu0
        %v690 = vadd.f32 0.0, %v689
        %691 = vmatmul.f32.gmra.mxu0 %v586
        %v692 = vpop.f32.mrf.mxu0
        %v693 = vadd.f32 0.0, %v692
        %694 = vdwg.mxu0
        %695 = vmatpush.msra.mxu0 0.0
        %696 = vmatpush.msra.mxu0 0.0
        %697 = vmatpush.msra.mxu0 0.0
        %698 = vmatpush.msra.mxu0 0.0
        %699 = vmatpush.msra.mxu0 0.0
        %700 = vmatpush.msra.mxu0 0.0
        %701 = vmatpush.msra.mxu0 0.0
        %702 = vmatpush.msra.mxu0 0.0
        %703 = vmatpush.msra.mxu0 0.0
        %704 = vmatpush.msra.mxu0 0.0
        %705 = vmatpush.msra.mxu0 0.0
        %706 = vmatpush.msra.mxu0 0.0
        %707 = vmatpush.msra.mxu0 0.0
        %708 = vmatpush.msra.mxu0 0.0
        %709 = vmatpush.msra.mxu0 %v496
        %710 = vmatpush.msra.mxu0 %v494
        %711 = vmatmul.f32.gmra.mxu0 %v499
        %v712 = vpop.f32.mrf.mxu0
        %v713 = vadd.f32 0.0, %v712
        %714 = vmatmul.f32.gmra.mxu0 %v502
        %v715 = vpop.f32.mrf.mxu0
        %v716 = vadd.f32 0.0, %v715
        %717 = vmatmul.f32.gmra.mxu0 %v505
        %v718 = vpop.f32.mrf.mxu0
        %v719 = vadd.f32 0.0, %v718
        %720 = vmatmul.f32.gmra.mxu0 %v508
        %v721 = vpop.f32.mrf.mxu0
        %v722 = vadd.f32 0.0, %v721
        %723 = vmatmul.f32.gmra.mxu0 %v511
        %v724 = vpop.f32.mrf.mxu0
        %v725 = vadd.f32 0.0, %v724
        %726 = vmatmul.f32.gmra.mxu0 %v514
        %v727 = vpop.f32.mrf.mxu0
        %v728 = vadd.f32 0.0, %v727
        %729 = vmatmul.f32.gmra.mxu0 %v517
        %v730 = vpop.f32.mrf.mxu0
        %v731 = vadd.f32 0.0, %v730
        %732 = vmatmul.f32.gmra.mxu0 %v520
        %v733 = vpop.f32.mrf.mxu0
        %v734 = vadd.f32 0.0, %v733
        %735 = vmatmul.f32.gmra.mxu0 %v523
        %v736 = vpop.f32.mrf.mxu0
        %v737 = vadd.f32 0.0, %v736
        %738 = vmatmul.f32.gmra.mxu0 %v526
        %v739 = vpop.f32.mrf.mxu0
        %v740 = vadd.f32 0.0, %v739
        %741 = vmatmul.f32.gmra.mxu0 %v529
        %v742 = vpop.f32.mrf.mxu0
        %v743 = vadd.f32 0.0, %v742
        %744 = vmatmul.f32.gmra.mxu0 %v532
        %v745 = vpop.f32.mrf.mxu0
        %v746 = vadd.f32 0.0, %v745
        %747 = vmatmul.f32.gmra.mxu0 %v535
        %v748 = vpop.f32.mrf.mxu0
        %v749 = vadd.f32 0.0, %v748
        %750 = vmatmul.f32.gmra.mxu0 %v538
        %v751 = vpop.f32.mrf.mxu0
        %v752 = vadd.f32 0.0, %v751
        %753 = vmatmul.f32.gmra.mxu0 %v541
        %v754 = vpop.f32.mrf.mxu0
        %v755 = vadd.f32 0.0, %v754
        %756 = vmatmul.f32.gmra.mxu0 %v544
        %v757 = vpop.f32.mrf.mxu0
        %v758 = vadd.f32 0.0, %v757
        %759 = vmatmul.f32.gmra.mxu0 %v547
        %v760 = vpop.f32.mrf.mxu0
        %v761 = vadd.f32 0.0, %v760
        %762 = vmatmul.f32.gmra.mxu0 %v550
        %v763 = vpop.f32.mrf.mxu0
        %v764 = vadd.f32 0.0, %v763
        %765 = vmatmul.f32.gmra.mxu0 %v553
        %v766 = vpop.f32.mrf.mxu0
        %v767 = vadd.f32 0.0, %v766
        %768 = vmatmul.f32.gmra.mxu0 %v556
        %v769 = vpop.f32.mrf.mxu0
        %v770 = vadd.f32 0.0, %v769
        %771 = vmatmul.f32.gmra.mxu0 %v559
        %v772 = vpop.f32.mrf.mxu0
        %v773 = vadd.f32 0.0, %v772
        %774 = vmatmul.f32.gmra.mxu0 %v562
        %v775 = vpop.f32.mrf.mxu0
        %v776 = vadd.f32 0.0, %v775
        %777 = vmatmul.f32.gmra.mxu0 %v565
        %v778 = vpop.f32.mrf.mxu0
        %v779 = vadd.f32 0.0, %v778
        %780 = vmatmul.f32.gmra.mxu0 %v568
        %v781 = vpop.f32.mrf.mxu0
        %v782 = vadd.f32 0.0, %v781
        %783 = vmatmul.f32.gmra.mxu0 %v571
        %v784 = vpop.f32.mrf.mxu0
        %v785 = vadd.f32 0.0, %v784
        %786 = vmatmul.f32.gmra.mxu0 %v574
        %v787 = vpop.f32.mrf.mxu0
        %v788 = vadd.f32 0.0, %v787
        %789 = vmatmul.f32.gmra.mxu0 %v577
        %v790 = vpop.f32.mrf.mxu0
        %v791 = vadd.f32 0.0, %v790
        %792 = vmatmul.f32.gmra.mxu0 %v580
        %v793 = vpop.f32.mrf.mxu0
        %v794 = vadd.f32 0.0, %v793
        %795 = vmatmul.f32.gmra.mxu0 %v583
        %v796 = vpop.f32.mrf.mxu0
        %v797 = vadd.f32 0.0, %v796
        %798 = vmatmul.f32.gmra.mxu0 %v586
        %v799 = vpop.f32.mrf.mxu0
        %v800 = vadd.f32 0.0, %v799
        %801 = vdwg.mxu0
        %v803 = vperm.slane %v462, 0
        %v804 = vperm.slane %v462, 1
        %v807 = vadd.f32 %v803, %v606
        %v808 = vadd.f32 %v804, %v713
        %v809 = vadd.f32 %v803, %v609
        %v810 = vadd.f32 %v804, %v716
        %v811 = vadd.f32 %v803, %v612
        %v812 = vadd.f32 %v804, %v719
        %v813 = vadd.f32 %v803, %v615
        %v814 = vadd.f32 %v804, %v722
        %v815 = vadd.f32 %v803, %v618
        %v816 = vadd.f32 %v804, %v725
        %v817 = vadd.f32 %v803, %v621
        %v818 = vadd.f32 %v804, %v728
        %v819 = vadd.f32 %v803, %v624
        %v820 = vadd.f32 %v804, %v731
        %v821 = vadd.f32 %v803, %v627
        %v822 = vadd.f32 %v804, %v734
        %v823 = vadd.f32 %v803, %v630
        %v824 = vadd.f32 %v804, %v737
        %v825 = vadd.f32 %v803, %v633
        %v826 = vadd.f32 %v804, %v740
        %v827 = vadd.f32 %v803, %v636
        %v828 = vadd.f32 %v804, %v743
        %v829 = vadd.f32 %v803, %v639
        %v830 = vadd.f32 %v804, %v746
        %v831 = vadd.f32 %v803, %v642
        %v832 = vadd.f32 %v804, %v749
        %v833 = vadd.f32 %v803, %v645
        %v834 = vadd.f32 %v804, %v752
        %v835 = vadd.f32 %v803, %v648
        %v836 = vadd.f32 %v804, %v755
        %v837 = vadd.f32 %v803, %v651
        %v838 = vadd.f32 %v804, %v758
        %v839 = vadd.f32 %v803, %v654
        %v840 = vadd.f32 %v804, %v761
        %v841 = vadd.f32 %v803, %v657
        %v842 = vadd.f32 %v804, %v764
        %v843 = vadd.f32 %v803, %v660
        %v844 = vadd.f32 %v804, %v767
        %v845 = vadd.f32 %v803, %v663
        %v846 = vadd.f32 %v804, %v770
        %v847 = vadd.f32 %v803, %v666
        %v848 = vadd.f32 %v804, %v773
        %v849 = vadd.f32 %v803, %v669
        %v850 = vadd.f32 %v804, %v776
        %v851 = vadd.f32 %v803, %v672
        %v852 = vadd.f32 %v804, %v779
        %v853 = vadd.f32 %v803, %v675
        %v854 = vadd.f32 %v804, %v782
        %v855 = vadd.f32 %v803, %v678
        %v856 = vadd.f32 %v804, %v785
        %v857 = vadd.f32 %v803, %v681
        %v858 = vadd.f32 %v804, %v788
        %v859 = vadd.f32 %v803, %v684
        %v860 = vadd.f32 %v804, %v791
        %v861 = vadd.f32 %v803, %v687
        %v862 = vadd.f32 %v804, %v794
        %v863 = vadd.f32 %v803, %v690
        %v864 = vadd.f32 %v804, %v797
        %v865 = vadd.f32 %v803, %v693
        %v866 = vadd.f32 %v804, %v800
        %v867 = vld [vmem:[%s456 + $0x1] sm:$0xff]
        %v868 = vld [vmem:[%s456 + $0x9] sm:$0xff]
        %v869 = vld [vmem:[%s456 + $0x11] sm:$0xff]
        %v870 = vld [vmem:[%s456 + $0x19] sm:$0xff]
        %v871 = vld [vmem:[%s456 + $0x21] sm:$0xff]
        %v872 = vld [vmem:[%s456 + $0x29] sm:$0xff]
        %v873 = vld [vmem:[%s456 + $0x31] sm:$0xff]
        %v874 = vld [vmem:[%s456 + $0x39] sm:$0xff]
        %v875 = vld [vmem:[%s456 + $0x41] sm:$0xff]
        %v876 = vld [vmem:[%s456 + $0x49] sm:$0xff]
        %v877 = vld [vmem:[%s456 + $0x51] sm:$0xff]
        %v878 = vld [vmem:[%s456 + $0x59] sm:$0xff]
        %v879 = vld [vmem:[%s456 + $0x61] sm:$0xff]
        %v880 = vld [vmem:[%s456 + $0x69] sm:$0xff]
        %v881 = vld [vmem:[%s456 + $0x71] sm:$0xff]
        %v882 = vld [vmem:[%s456 + $0x79] sm:$0xff]
        %v883 = vld [vmem:[%s456 + $0x81] sm:$0xff]
        %v884 = vld [vmem:[%s456 + $0x89] sm:$0xff]
        %v885 = vld [vmem:[%s456 + $0x91] sm:$0xff]
        %v886 = vld [vmem:[%s456 + $0x99] sm:$0xff]
        %v887 = vld [vmem:[%s456 + $0xa1] sm:$0xff]
        %v888 = vld [vmem:[%s456 + $0xa9] sm:$0xff]
        %v889 = vld [vmem:[%s456 + $0xb1] sm:$0xff]
        %v890 = vld [vmem:[%s456 + $0xb9] sm:$0xff]
        %v891 = vld [vmem:[%s456 + $0xc1] sm:$0xff]
        %v892 = vld [vmem:[%s456 + $0xc9] sm:$0xff]
        %v893 = vld [vmem:[%s456 + $0xd1] sm:$0xff]
        %v894 = vld [vmem:[%s456 + $0xd9] sm:$0xff]
        %v895 = vld [vmem:[%s456 + $0xe1] sm:$0xff]
        %v896 = vld [vmem:[%s456 + $0xe9] sm:$0xf]
        %v897 = vld [vmem:[#allocation3 + $0x20] sm:$0xff]
        %v898 = vld [vmem:[#allocation3 + $0x28] sm:$0xff]
        %v899 = vld [vmem:[#allocation3 + $0x30] sm:$0xff]
        %v900 = vld [vmem:[#allocation3 + $0x38] sm:$0xff]
        %v902 = vsel %vm497, %v867, 0
        %v905 = vsel %vm497, %v868, 0
        %v908 = vsel %vm497, %v869, 0
        %v911 = vsel %vm497, %v870, 0
        %v914 = vsel %vm497, %v871, 0
        %v917 = vsel %vm497, %v872, 0
        %v920 = vsel %vm497, %v873, 0
        %v923 = vsel %vm497, %v874, 0
        %v926 = vsel %vm497, %v875, 0
        %v929 = vsel %vm497, %v876, 0
        %v932 = vsel %vm497, %v877, 0
        %v935 = vsel %vm497, %v878, 0
        %v938 = vsel %vm497, %v879, 0
        %v941 = vsel %vm497, %v880, 0
        %v944 = vsel %vm497, %v881, 0
        %v947 = vsel %vm497, %v882, 0
        %v950 = vsel %vm497, %v883, 0
        %v953 = vsel %vm497, %v884, 0
        %v956 = vsel %vm497, %v885, 0
        %v959 = vsel %vm497, %v886, 0
        %v962 = vsel %vm497, %v887, 0
        %v965 = vsel %vm497, %v888, 0
        %v968 = vsel %vm497, %v889, 0
        %v971 = vsel %vm497, %v890, 0
        %v974 = vsel %vm497, %v891, 0
        %v977 = vsel %vm497, %v892, 0
        %v980 = vsel %vm497, %v893, 0
        %v983 = vsel %vm497, %v894, 0
        %v986 = vsel %vm497, %v895, 0
        %v989 = vsel %vm497, %v896, 0
        %991 = vmatpush.msra.mxu0 0.0
        %992 = vmatpush.msra.mxu0 0.0
        %993 = vmatpush.msra.mxu0 0.0
        %994 = vmatpush.msra.mxu0 0.0
        %995 = vmatpush.msra.mxu0 0.0
        %996 = vmatpush.msra.mxu0 0.0
        %997 = vmatpush.msra.mxu0 0.0
        %998 = vmatpush.msra.mxu0 0.0
        %999 = vmatpush.msra.mxu0 0.0
        %1000 = vmatpush.msra.mxu0 0.0
        %1001 = vmatpush.msra.mxu0 0.0
        %1002 = vmatpush.msra.mxu0 0.0
        %1003 = vmatpush.msra.mxu0 0.0
        %1004 = vmatpush.msra.mxu0 0.0
        %1005 = vmatpush.msra.mxu0 %v899
        %1006 = vmatpush.msra.mxu0 %v897
        %1007 = vmatmul.f32.gmra.mxu0 %v902
        %v1008 = vpop.f32.mrf.mxu0
        %v1009 = vadd.f32 0.0, %v1008
        %1010 = vmatmul.f32.gmra.mxu0 %v905
        %v1011 = vpop.f32.mrf.mxu0
        %v1012 = vadd.f32 0.0, %v1011
        %1013 = vmatmul.f32.gmra.mxu0 %v908
        %v1014 = vpop.f32.mrf.mxu0
        %v1015 = vadd.f32 0.0, %v1014
        %1016 = vmatmul.f32.gmra.mxu0 %v911
        %v1017 = vpop.f32.mrf.mxu0
        %v1018 = vadd.f32 0.0, %v1017
        %1019 = vmatmul.f32.gmra.mxu0 %v914
        %v1020 = vpop.f32.mrf.mxu0
        %v1021 = vadd.f32 0.0, %v1020
        %1022 = vmatmul.f32.gmra.mxu0 %v917
        %v1023 = vpop.f32.mrf.mxu0
        %v1024 = vadd.f32 0.0, %v1023
        %1025 = vmatmul.f32.gmra.mxu0 %v920
        %v1026 = vpop.f32.mrf.mxu0
        %v1027 = vadd.f32 0.0, %v1026
        %1028 = vmatmul.f32.gmra.mxu0 %v923
        %v1029 = vpop.f32.mrf.mxu0
        %v1030 = vadd.f32 0.0, %v1029
        %1031 = vmatmul.f32.gmra.mxu0 %v926
        %v1032 = vpop.f32.mrf.mxu0
        %v1033 = vadd.f32 0.0, %v1032
        %1034 = vmatmul.f32.gmra.mxu0 %v929
        %v1035 = vpop.f32.mrf.mxu0
        %v1036 = vadd.f32 0.0, %v1035
        %1037 = vmatmul.f32.gmra.mxu0 %v932
        %v1038 = vpop.f32.mrf.mxu0
        %v1039 = vadd.f32 0.0, %v1038
        %1040 = vmatmul.f32.gmra.mxu0 %v935
        %v1041 = vpop.f32.mrf.mxu0
        %v1042 = vadd.f32 0.0, %v1041
        %1043 = vmatmul.f32.gmra.mxu0 %v938
        %v1044 = vpop.f32.mrf.mxu0
        %v1045 = vadd.f32 0.0, %v1044
        %1046 = vmatmul.f32.gmra.mxu0 %v941
        %v1047 = vpop.f32.mrf.mxu0
        %v1048 = vadd.f32 0.0, %v1047
        %1049 = vmatmul.f32.gmra.mxu0 %v944
        %v1050 = vpop.f32.mrf.mxu0
        %v1051 = vadd.f32 0.0, %v1050
        %1052 = vmatmul.f32.gmra.mxu0 %v947
        %v1053 = vpop.f32.mrf.mxu0
        %v1054 = vadd.f32 0.0, %v1053
        %1055 = vmatmul.f32.gmra.mxu0 %v950
        %v1056 = vpop.f32.mrf.mxu0
        %v1057 = vadd.f32 0.0, %v1056
        %1058 = vmatmul.f32.gmra.mxu0 %v953
        %v1059 = vpop.f32.mrf.mxu0
        %v1060 = vadd.f32 0.0, %v1059
        %1061 = vmatmul.f32.gmra.mxu0 %v956
        %v1062 = vpop.f32.mrf.mxu0
        %v1063 = vadd.f32 0.0, %v1062
        %1064 = vmatmul.f32.gmra.mxu0 %v959
        %v1065 = vpop.f32.mrf.mxu0
        %v1066 = vadd.f32 0.0, %v1065
        %1067 = vmatmul.f32.gmra.mxu0 %v962
        %v1068 = vpop.f32.mrf.mxu0
        %v1069 = vadd.f32 0.0, %v1068
        %1070 = vmatmul.f32.gmra.mxu0 %v965
        %v1071 = vpop.f32.mrf.mxu0
        %v1072 = vadd.f32 0.0, %v1071
        %1073 = vmatmul.f32.gmra.mxu0 %v968
        %v1074 = vpop.f32.mrf.mxu0
        %v1075 = vadd.f32 0.0, %v1074
        %1076 = vmatmul.f32.gmra.mxu0 %v971
        %v1077 = vpop.f32.mrf.mxu0
        %v1078 = vadd.f32 0.0, %v1077
        %1079 = vmatmul.f32.gmra.mxu0 %v974
        %v1080 = vpop.f32.mrf.mxu0
        %v1081 = vadd.f32 0.0, %v1080
        %1082 = vmatmul.f32.gmra.mxu0 %v977
        %v1083 = vpop.f32.mrf.mxu0
        %v1084 = vadd.f32 0.0, %v1083
        %1085 = vmatmul.f32.gmra.mxu0 %v980
        %v1086 = vpop.f32.mrf.mxu0
        %v1087 = vadd.f32 0.0, %v1086
        %1088 = vmatmul.f32.gmra.mxu0 %v983
        %v1089 = vpop.f32.mrf.mxu0
        %v1090 = vadd.f32 0.0, %v1089
        %1091 = vmatmul.f32.gmra.mxu0 %v986
        %v1092 = vpop.f32.mrf.mxu0
        %v1093 = vadd.f32 0.0, %v1092
        %1094 = vmatmul.f32.gmra.mxu0 %v989
        %v1095 = vpop.f32.mrf.mxu0
        %v1096 = vadd.f32 0.0, %v1095
        %1097 = vdwg.mxu0
        %1098 = vmatpush.msra.mxu0 0.0
        %1099 = vmatpush.msra.mxu0 0.0
        %1100 = vmatpush.msra.mxu0 0.0
        %1101 = vmatpush.msra.mxu0 0.0
        %1102 = vmatpush.msra.mxu0 0.0
        %1103 = vmatpush.msra.mxu0 0.0
        %1104 = vmatpush.msra.mxu0 0.0
        %1105 = vmatpush.msra.mxu0 0.0
        %1106 = vmatpush.msra.mxu0 0.0
        %1107 = vmatpush.msra.mxu0 0.0
        %1108 = vmatpush.msra.mxu0 0.0
        %1109 = vmatpush.msra.mxu0 0.0
        %1110 = vmatpush.msra.mxu0 0.0
        %1111 = vmatpush.msra.mxu0 0.0
        %1112 = vmatpush.msra.mxu0 %v900
        %1113 = vmatpush.msra.mxu0 %v898
        %1114 = vmatmul.f32.gmra.mxu0 %v902
        %v1115 = vpop.f32.mrf.mxu0
        %v1116 = vadd.f32 0.0, %v1115
        %1117 = vmatmul.f32.gmra.mxu0 %v905
        %v1118 = vpop.f32.mrf.mxu0
        %v1119 = vadd.f32 0.0, %v1118
        %1120 = vmatmul.f32.gmra.mxu0 %v908
        %v1121 = vpop.f32.mrf.mxu0
        %v1122 = vadd.f32 0.0, %v1121
        %1123 = vmatmul.f32.gmra.mxu0 %v911
        %v1124 = vpop.f32.mrf.mxu0
        %v1125 = vadd.f32 0.0, %v1124
        %1126 = vmatmul.f32.gmra.mxu0 %v914
        %v1127 = vpop.f32.mrf.mxu0
        %v1128 = vadd.f32 0.0, %v1127
        %1129 = vmatmul.f32.gmra.mxu0 %v917
        %v1130 = vpop.f32.mrf.mxu0
        %v1131 = vadd.f32 0.0, %v1130
        %1132 = vmatmul.f32.gmra.mxu0 %v920
        %v1133 = vpop.f32.mrf.mxu0
        %v1134 = vadd.f32 0.0, %v1133
        %1135 = vmatmul.f32.gmra.mxu0 %v923
        %v1136 = vpop.f32.mrf.mxu0
        %v1137 = vadd.f32 0.0, %v1136
        %1138 = vmatmul.f32.gmra.mxu0 %v926
        %v1139 = vpop.f32.mrf.mxu0
        %v1140 = vadd.f32 0.0, %v1139
        %1141 = vmatmul.f32.gmra.mxu0 %v929
        %v1142 = vpop.f32.mrf.mxu0
        %v1143 = vadd.f32 0.0, %v1142
        %1144 = vmatmul.f32.gmra.mxu0 %v932
        %v1145 = vpop.f32.mrf.mxu0
        %v1146 = vadd.f32 0.0, %v1145
        %1147 = vmatmul.f32.gmra.mxu0 %v935
        %v1148 = vpop.f32.mrf.mxu0
        %v1149 = vadd.f32 0.0, %v1148
        %1150 = vmatmul.f32.gmra.mxu0 %v938
        %v1151 = vpop.f32.mrf.mxu0
        %v1152 = vadd.f32 0.0, %v1151
        %1153 = vmatmul.f32.gmra.mxu0 %v941
        %v1154 = vpop.f32.mrf.mxu0
        %v1155 = vadd.f32 0.0, %v1154
        %1156 = vmatmul.f32.gmra.mxu0 %v944
        %v1157 = vpop.f32.mrf.mxu0
        %v1158 = vadd.f32 0.0, %v1157
        %1159 = vmatmul.f32.gmra.mxu0 %v947
        %v1160 = vpop.f32.mrf.mxu0
        %v1161 = vadd.f32 0.0, %v1160
        %1162 = vmatmul.f32.gmra.mxu0 %v950
        %v1163 = vpop.f32.mrf.mxu0
        %v1164 = vadd.f32 0.0, %v1163
        %1165 = vmatmul.f32.gmra.mxu0 %v953
        %v1166 = vpop.f32.mrf.mxu0
        %v1167 = vadd.f32 0.0, %v1166
        %1168 = vmatmul.f32.gmra.mxu0 %v956
        %v1169 = vpop.f32.mrf.mxu0
        %v1170 = vadd.f32 0.0, %v1169
        %1171 = vmatmul.f32.gmra.mxu0 %v959
        %v1172 = vpop.f32.mrf.mxu0
        %v1173 = vadd.f32 0.0, %v1172
        %1174 = vmatmul.f32.gmra.mxu0 %v962
        %v1175 = vpop.f32.mrf.mxu0
        %v1176 = vadd.f32 0.0, %v1175
        %1177 = vmatmul.f32.gmra.mxu0 %v965
        %v1178 = vpop.f32.mrf.mxu0
        %v1179 = vadd.f32 0.0, %v1178
        %1180 = vmatmul.f32.gmra.mxu0 %v968
        %v1181 = vpop.f32.mrf.mxu0
        %v1182 = vadd.f32 0.0, %v1181
        %1183 = vmatmul.f32.gmra.mxu0 %v971
        %v1184 = vpop.f32.mrf.mxu0
        %v1185 = vadd.f32 0.0, %v1184
        %1186 = vmatmul.f32.gmra.mxu0 %v974
        %v1187 = vpop.f32.mrf.mxu0
        %v1188 = vadd.f32 0.0, %v1187
        %1189 = vmatmul.f32.gmra.mxu0 %v977
        %v1190 = vpop.f32.mrf.mxu0
        %v1191 = vadd.f32 0.0, %v1190
        %1192 = vmatmul.f32.gmra.mxu0 %v980
        %v1193 = vpop.f32.mrf.mxu0
        %v1194 = vadd.f32 0.0, %v1193
        %1195 = vmatmul.f32.gmra.mxu0 %v983
        %v1196 = vpop.f32.mrf.mxu0
        %v1197 = vadd.f32 0.0, %v1196
        %1198 = vmatmul.f32.gmra.mxu0 %v986
        %v1199 = vpop.f32.mrf.mxu0
        %v1200 = vadd.f32 0.0, %v1199
        %1201 = vmatmul.f32.gmra.mxu0 %v989
        %v1202 = vpop.f32.mrf.mxu0
        %v1203 = vadd.f32 0.0, %v1202
        %1204 = vdwg.mxu0
        %v1205 = vadd.f32 %v807, %v1009
        %v1206 = vadd.f32 %v808, %v1116
        %v1207 = vadd.f32 %v809, %v1012
        %v1208 = vadd.f32 %v810, %v1119
        %v1209 = vadd.f32 %v811, %v1015
        %v1210 = vadd.f32 %v812, %v1122
        %v1211 = vadd.f32 %v813, %v1018
        %v1212 = vadd.f32 %v814, %v1125
        %v1213 = vadd.f32 %v815, %v1021
        %v1214 = vadd.f32 %v816, %v1128
        %v1215 = vadd.f32 %v817, %v1024
        %v1216 = vadd.f32 %v818, %v1131
        %v1217 = vadd.f32 %v819, %v1027
        %v1218 = vadd.f32 %v820, %v1134
        %v1219 = vadd.f32 %v821, %v1030
        %v1220 = vadd.f32 %v822, %v1137
        %v1221 = vadd.f32 %v823, %v1033
        %v1222 = vadd.f32 %v824, %v1140
        %v1223 = vadd.f32 %v825, %v1036
        %v1224 = vadd.f32 %v826, %v1143
        %v1225 = vadd.f32 %v827, %v1039
        %v1226 = vadd.f32 %v828, %v1146
        %v1227 = vadd.f32 %v829, %v1042
        %v1228 = vadd.f32 %v830, %v1149
        %v1229 = vadd.f32 %v831, %v1045
        %v1230 = vadd.f32 %v832, %v1152
        %v1231 = vadd.f32 %v833, %v1048
        %v1232 = vadd.f32 %v834, %v1155
        %v1233 = vadd.f32 %v835, %v1051
        %v1234 = vadd.f32 %v836, %v1158
        %v1235 = vadd.f32 %v837, %v1054
        %v1236 = vadd.f32 %v838, %v1161
        %v1237 = vadd.f32 %v839, %v1057
        %v1238 = vadd.f32 %v840, %v1164
        %v1239 = vadd.f32 %v841, %v1060
        %v1240 = vadd.f32 %v842, %v1167
        %v1241 = vadd.f32 %v843, %v1063
        %v1242 = vadd.f32 %v844, %v1170
        %v1243 = vadd.f32 %v845, %v1066
        %v1244 = vadd.f32 %v846, %v1173
        %v1245 = vadd.f32 %v847, %v1069
        %v1246 = vadd.f32 %v848, %v1176
        %v1247 = vadd.f32 %v849, %v1072
        %v1248 = vadd.f32 %v850, %v1179
        %v1249 = vadd.f32 %v851, %v1075
        %v1250 = vadd.f32 %v852, %v1182
        %v1251 = vadd.f32 %v853, %v1078
        %v1252 = vadd.f32 %v854, %v1185
        %v1253 = vadd.f32 %v855, %v1081
        %v1254 = vadd.f32 %v856, %v1188
        %v1255 = vadd.f32 %v857, %v1084
        %v1256 = vadd.f32 %v858, %v1191
        %v1257 = vadd.f32 %v859, %v1087
        %v1258 = vadd.f32 %v860, %v1194
        %v1259 = vadd.f32 %v861, %v1090
        %v1260 = vadd.f32 %v862, %v1197
        %v1261 = vadd.f32 %v863, %v1093
        %v1262 = vadd.f32 %v864, %v1200
        %v1263 = vadd.f32 %v865, %v1096
        %v1264 = vadd.f32 %v866, %v1203
        %v1265 = vld [vmem:[%s456 + $0x2] sm:$0xff]
        %v1266 = vld [vmem:[%s456 + $0xa] sm:$0xff]
        %v1267 = vld [vmem:[%s456 + $0x12] sm:$0xff]
        %v1268 = vld [vmem:[%s456 + $0x1a] sm:$0xff]
        %v1269 = vld [vmem:[%s456 + $0x22] sm:$0xff]
        %v1270 = vld [vmem:[%s456 + $0x2a] sm:$0xff]
        %v1271 = vld [vmem:[%s456 + $0x32] sm:$0xff]
        %v1272 = vld [vmem:[%s456 + $0x3a] sm:$0xff]
        %v1273 = vld [vmem:[%s456 + $0x42] sm:$0xff]
        %v1274 = vld [vmem:[%s456 + $0x4a] sm:$0xff]
        %v1275 = vld [vmem:[%s456 + $0x52] sm:$0xff]
        %v1276 = vld [vmem:[%s456 + $0x5a] sm:$0xff]
        %v1277 = vld [vmem:[%s456 + $0x62] sm:$0xff]
        %v1278 = vld [vmem:[%s456 + $0x6a] sm:$0xff]
        %v1279 = vld [vmem:[%s456 + $0x72] sm:$0xff]
        %v1280 = vld [vmem:[%s456 + $0x7a] sm:$0xff]
        %v1281 = vld [vmem:[%s456 + $0x82] sm:$0xff]
        %v1282 = vld [vmem:[%s456 + $0x8a] sm:$0xff]
        %v1283 = vld [vmem:[%s456 + $0x92] sm:$0xff]
        %v1284 = vld [vmem:[%s456 + $0x9a] sm:$0xff]
        %v1285 = vld [vmem:[%s456 + $0xa2] sm:$0xff]
        %v1286 = vld [vmem:[%s456 + $0xaa] sm:$0xff]
        %v1287 = vld [vmem:[%s456 + $0xb2] sm:$0xff]
        %v1288 = vld [vmem:[%s456 + $0xba] sm:$0xff]
        %v1289 = vld [vmem:[%s456 + $0xc2] sm:$0xff]
        %v1290 = vld [vmem:[%s456 + $0xca] sm:$0xff]
        %v1291 = vld [vmem:[%s456 + $0xd2] sm:$0xff]
        %v1292 = vld [vmem:[%s456 + $0xda] sm:$0xff]
        %v1293 = vld [vmem:[%s456 + $0xe2] sm:$0xff]
        %v1294 = vld [vmem:[%s456 + $0xea] sm:$0xf]
        %v1295 = vld [vmem:[#allocation3 + $0x40] sm:$0xff]
        %v1296 = vld [vmem:[#allocation3 + $0x48] sm:$0xff]
        %v1297 = vld [vmem:[#allocation3 + $0x50] sm:$0xff]
        %v1298 = vld [vmem:[#allocation3 + $0x58] sm:$0xff]
        %v1300 = vsel %vm497, %v1265, 0
        %v1303 = vsel %vm497, %v1266, 0
        %v1306 = vsel %vm497, %v1267, 0
        %v1309 = vsel %vm497, %v1268, 0
        %v1312 = vsel %vm497, %v1269, 0
        %v1315 = vsel %vm497, %v1270, 0
        %v1318 = vsel %vm497, %v1271, 0
        %v1321 = vsel %vm497, %v1272, 0
        %v1324 = vsel %vm497, %v1273, 0
        %v1327 = vsel %vm497, %v1274, 0
        %v1330 = vsel %vm497, %v1275, 0
        %v1333 = vsel %vm497, %v1276, 0
        %v1336 = vsel %vm497, %v1277, 0
        %v1339 = vsel %vm497, %v1278, 0
        %v1342 = vsel %vm497, %v1279, 0
        %v1345 = vsel %vm497, %v1280, 0
        %v1348 = vsel %vm497, %v1281, 0
        %v1351 = vsel %vm497, %v1282, 0
        %v1354 = vsel %vm497, %v1283, 0
        %v1357 = vsel %vm497, %v1284, 0
        %v1360 = vsel %vm497, %v1285, 0
        %v1363 = vsel %vm497, %v1286, 0
        %v1366 = vsel %vm497, %v1287, 0
        %v1369 = vsel %vm497, %v1288, 0
        %v1372 = vsel %vm497, %v1289, 0
        %v1375 = vsel %vm497, %v1290, 0
        %v1378 = vsel %vm497, %v1291, 0
        %v1381 = vsel %vm497, %v1292, 0
        %v1384 = vsel %vm497, %v1293, 0
        %v1387 = vsel %vm497, %v1294, 0
        %1389 = vmatpush.msra.mxu0 0.0
        %1390 = vmatpush.msra.mxu0 0.0
        %1391 = vmatpush.msra.mxu0 0.0
        %1392 = vmatpush.msra.mxu0 0.0
        %1393 = vmatpush.msra.mxu0 0.0
        %1394 = vmatpush.msra.mxu0 0.0
        %1395 = vmatpush.msra.mxu0 0.0
        %1396 = vmatpush.msra.mxu0 0.0
        %1397 = vmatpush.msra.mxu0 0.0
        %1398 = vmatpush.msra.mxu0 0.0
        %1399 = vmatpush.msra.mxu0 0.0
        %1400 = vmatpush.msra.mxu0 0.0
        %1401 = vmatpush.msra.mxu0 0.0
        %1402 = vmatpush.msra.mxu0 0.0
        %1403 = vmatpush.msra.mxu0 %v1297
        %1404 = vmatpush.msra.mxu0 %v1295
        %1405 = vmatmul.f32.gmra.mxu0 %v1300
        %v1406 = vpop.f32.mrf.mxu0
        %v1407 = vadd.f32 0.0, %v1406
        %1408 = vmatmul.f32.gmra.mxu0 %v1303
        %v1409 = vpop.f32.mrf.mxu0
        %v1410 = vadd.f32 0.0, %v1409
        %1411 = vmatmul.f32.gmra.mxu0 %v1306
        %v1412 = vpop.f32.mrf.mxu0
        %v1413 = vadd.f32 0.0, %v1412
        %1414 = vmatmul.f32.gmra.mxu0 %v1309
        %v1415 = vpop.f32.mrf.mxu0
        %v1416 = vadd.f32 0.0, %v1415
        %1417 = vmatmul.f32.gmra.mxu0 %v1312
        %v1418 = vpop.f32.mrf.mxu0
        %v1419 = vadd.f32 0.0, %v1418
        %1420 = vmatmul.f32.gmra.mxu0 %v1315
        %v1421 = vpop.f32.mrf.mxu0
        %v1422 = vadd.f32 0.0, %v1421
        %1423 = vmatmul.f32.gmra.mxu0 %v1318
        %v1424 = vpop.f32.mrf.mxu0
        %v1425 = vadd.f32 0.0, %v1424
        %1426 = vmatmul.f32.gmra.mxu0 %v1321
        %v1427 = vpop.f32.mrf.mxu0
        %v1428 = vadd.f32 0.0, %v1427
        %1429 = vmatmul.f32.gmra.mxu0 %v1324
        %v1430 = vpop.f32.mrf.mxu0
        %v1431 = vadd.f32 0.0, %v1430
        %1432 = vmatmul.f32.gmra.mxu0 %v1327
        %v1433 = vpop.f32.mrf.mxu0
        %v1434 = vadd.f32 0.0, %v1433
        %1435 = vmatmul.f32.gmra.mxu0 %v1330
        %v1436 = vpop.f32.mrf.mxu0
        %v1437 = vadd.f32 0.0, %v1436
        %1438 = vmatmul.f32.gmra.mxu0 %v1333
        %v1439 = vpop.f32.mrf.mxu0
        %v1440 = vadd.f32 0.0, %v1439
        %1441 = vmatmul.f32.gmra.mxu0 %v1336
        %v1442 = vpop.f32.mrf.mxu0
        %v1443 = vadd.f32 0.0, %v1442
        %1444 = vmatmul.f32.gmra.mxu0 %v1339
        %v1445 = vpop.f32.mrf.mxu0
        %v1446 = vadd.f32 0.0, %v1445
        %1447 = vmatmul.f32.gmra.mxu0 %v1342
        %v1448 = vpop.f32.mrf.mxu0
        %v1449 = vadd.f32 0.0, %v1448
        %1450 = vmatmul.f32.gmra.mxu0 %v1345
        %v1451 = vpop.f32.mrf.mxu0
        %v1452 = vadd.f32 0.0, %v1451
        %1453 = vmatmul.f32.gmra.mxu0 %v1348
        %v1454 = vpop.f32.mrf.mxu0
        %v1455 = vadd.f32 0.0, %v1454
        %1456 = vmatmul.f32.gmra.mxu0 %v1351
        %v1457 = vpop.f32.mrf.mxu0
        %v1458 = vadd.f32 0.0, %v1457
        %1459 = vmatmul.f32.gmra.mxu0 %v1354
        %v1460 = vpop.f32.mrf.mxu0
        %v1461 = vadd.f32 0.0, %v1460
        %1462 = vmatmul.f32.gmra.mxu0 %v1357
        %v1463 = vpop.f32.mrf.mxu0
        %v1464 = vadd.f32 0.0, %v1463
        %1465 = vmatmul.f32.gmra.mxu0 %v1360
        %v1466 = vpop.f32.mrf.mxu0
        %v1467 = vadd.f32 0.0, %v1466
        %1468 = vmatmul.f32.gmra.mxu0 %v1363
        %v1469 = vpop.f32.mrf.mxu0
        %v1470 = vadd.f32 0.0, %v1469
        %1471 = vmatmul.f32.gmra.mxu0 %v1366
        %v1472 = vpop.f32.mrf.mxu0
        %v1473 = vadd.f32 0.0, %v1472
        %1474 = vmatmul.f32.gmra.mxu0 %v1369
        %v1475 = vpop.f32.mrf.mxu0
        %v1476 = vadd.f32 0.0, %v1475
        %1477 = vmatmul.f32.gmra.mxu0 %v1372
        %v1478 = vpop.f32.mrf.mxu0
        %v1479 = vadd.f32 0.0, %v1478
        %1480 = vmatmul.f32.gmra.mxu0 %v1375
        %v1481 = vpop.f32.mrf.mxu0
        %v1482 = vadd.f32 0.0, %v1481
        %1483 = vmatmul.f32.gmra.mxu0 %v1378
        %v1484 = vpop.f32.mrf.mxu0
        %v1485 = vadd.f32 0.0, %v1484
        %1486 = vmatmul.f32.gmra.mxu0 %v1381
        %v1487 = vpop.f32.mrf.mxu0
        %v1488 = vadd.f32 0.0, %v1487
        %1489 = vmatmul.f32.gmra.mxu0 %v1384
        %v1490 = vpop.f32.mrf.mxu0
        %v1491 = vadd.f32 0.0, %v1490
        %1492 = vmatmul.f32.gmra.mxu0 %v1387
        %v1493 = vpop.f32.mrf.mxu0
        %v1494 = vadd.f32 0.0, %v1493
        %1495 = vdwg.mxu0
        %1496 = vmatpush.msra.mxu0 0.0
        %1497 = vmatpush.msra.mxu0 0.0
        %1498 = vmatpush.msra.mxu0 0.0
        %1499 = vmatpush.msra.mxu0 0.0
        %1500 = vmatpush.msra.mxu0 0.0
        %1501 = vmatpush.msra.mxu0 0.0
        %1502 = vmatpush.msra.mxu0 0.0
        %1503 = vmatpush.msra.mxu0 0.0
        %1504 = vmatpush.msra.mxu0 0.0
        %1505 = vmatpush.msra.mxu0 0.0
        %1506 = vmatpush.msra.mxu0 0.0
        %1507 = vmatpush.msra.mxu0 0.0
        %1508 = vmatpush.msra.mxu0 0.0
        %1509 = vmatpush.msra.mxu0 0.0
        %1510 = vmatpush.msra.mxu0 %v1298
        %1511 = vmatpush.msra.mxu0 %v1296
        %1512 = vmatmul.f32.gmra.mxu0 %v1300
        %v1513 = vpop.f32.mrf.mxu0
        %v1514 = vadd.f32 0.0, %v1513
        %1515 = vmatmul.f32.gmra.mxu0 %v1303
        %v1516 = vpop.f32.mrf.mxu0
        %v1517 = vadd.f32 0.0, %v1516
        %1518 = vmatmul.f32.gmra.mxu0 %v1306
        %v1519 = vpop.f32.mrf.mxu0
        %v1520 = vadd.f32 0.0, %v1519
        %1521 = vmatmul.f32.gmra.mxu0 %v1309
        %v1522 = vpop.f32.mrf.mxu0
        %v1523 = vadd.f32 0.0, %v1522
        %1524 = vmatmul.f32.gmra.mxu0 %v1312
        %v1525 = vpop.f32.mrf.mxu0
        %v1526 = vadd.f32 0.0, %v1525
        %1527 = vmatmul.f32.gmra.mxu0 %v1315
        %v1528 = vpop.f32.mrf.mxu0
        %v1529 = vadd.f32 0.0, %v1528
        %1530 = vmatmul.f32.gmra.mxu0 %v1318
        %v1531 = vpop.f32.mrf.mxu0
        %v1532 = vadd.f32 0.0, %v1531
        %1533 = vmatmul.f32.gmra.mxu0 %v1321
        %v1534 = vpop.f32.mrf.mxu0
        %v1535 = vadd.f32 0.0, %v1534
        %1536 = vmatmul.f32.gmra.mxu0 %v1324
        %v1537 = vpop.f32.mrf.mxu0
        %v1538 = vadd.f32 0.0, %v1537
        %1539 = vmatmul.f32.gmra.mxu0 %v1327
        %v1540 = vpop.f32.mrf.mxu0
        %v1541 = vadd.f32 0.0, %v1540
        %1542 = vmatmul.f32.gmra.mxu0 %v1330
        %v1543 = vpop.f32.mrf.mxu0
        %v1544 = vadd.f32 0.0, %v1543
        %1545 = vmatmul.f32.gmra.mxu0 %v1333
        %v1546 = vpop.f32.mrf.mxu0
        %v1547 = vadd.f32 0.0, %v1546
        %1548 = vmatmul.f32.gmra.mxu0 %v1336
        %v1549 = vpop.f32.mrf.mxu0
        %v1550 = vadd.f32 0.0, %v1549
        %1551 = vmatmul.f32.gmra.mxu0 %v1339
        %v1552 = vpop.f32.mrf.mxu0
        %v1553 = vadd.f32 0.0, %v1552
        %1554 = vmatmul.f32.gmra.mxu0 %v1342
        %v1555 = vpop.f32.mrf.mxu0
        %v1556 = vadd.f32 0.0, %v1555
        %1557 = vmatmul.f32.gmra.mxu0 %v1345
        %v1558 = vpop.f32.mrf.mxu0
        %v1559 = vadd.f32 0.0, %v1558
        %1560 = vmatmul.f32.gmra.mxu0 %v1348
        %v1561 = vpop.f32.mrf.mxu0
        %v1562 = vadd.f32 0.0, %v1561
        %1563 = vmatmul.f32.gmra.mxu0 %v1351
        %v1564 = vpop.f32.mrf.mxu0
        %v1565 = vadd.f32 0.0, %v1564
        %1566 = vmatmul.f32.gmra.mxu0 %v1354
        %v1567 = vpop.f32.mrf.mxu0
        %v1568 = vadd.f32 0.0, %v1567
        %1569 = vmatmul.f32.gmra.mxu0 %v1357
        %v1570 = vpop.f32.mrf.mxu0
        %v1571 = vadd.f32 0.0, %v1570
        %1572 = vmatmul.f32.gmra.mxu0 %v1360
        %v1573 = vpop.f32.mrf.mxu0
        %v1574 = vadd.f32 0.0, %v1573
        %1575 = vmatmul.f32.gmra.mxu0 %v1363
        %v1576 = vpop.f32.mrf.mxu0
        %v1577 = vadd.f32 0.0, %v1576
        %1578 = vmatmul.f32.gmra.mxu0 %v1366
        %v1579 = vpop.f32.mrf.mxu0
        %v1580 = vadd.f32 0.0, %v1579
        %1581 = vmatmul.f32.gmra.mxu0 %v1369
        %v1582 = vpop.f32.mrf.mxu0
        %v1583 = vadd.f32 0.0, %v1582
        %1584 = vmatmul.f32.gmra.mxu0 %v1372
        %v1585 = vpop.f32.mrf.mxu0
        %v1586 = vadd.f32 0.0, %v1585
        %1587 = vmatmul.f32.gmra.mxu0 %v1375
        %v1588 = vpop.f32.mrf.mxu0
        %v1589 = vadd.f32 0.0, %v1588
        %1590 = vmatmul.f32.gmra.mxu0 %v1378
        %v1591 = vpop.f32.mrf.mxu0
        %v1592 = vadd.f32 0.0, %v1591
        %1593 = vmatmul.f32.gmra.mxu0 %v1381
        %v1594 = vpop.f32.mrf.mxu0
        %v1595 = vadd.f32 0.0, %v1594
        %1596 = vmatmul.f32.gmra.mxu0 %v1384
        %v1597 = vpop.f32.mrf.mxu0
        %v1598 = vadd.f32 0.0, %v1597
        %1599 = vmatmul.f32.gmra.mxu0 %v1387
        %v1600 = vpop.f32.mrf.mxu0
        %v1601 = vadd.f32 0.0, %v1600
        %1602 = vdwg.mxu0
        %v1603 = vadd.f32 %v1205, %v1407
        %v1604 = vadd.f32 %v1206, %v1514
        %v1605 = vadd.f32 %v1207, %v1410
        %v1606 = vadd.f32 %v1208, %v1517
        %v1607 = vadd.f32 %v1209, %v1413
        %v1608 = vadd.f32 %v1210, %v1520
        %v1609 = vadd.f32 %v1211, %v1416
        %v1610 = vadd.f32 %v1212, %v1523
        %v1611 = vadd.f32 %v1213, %v1419
        %v1612 = vadd.f32 %v1214, %v1526
        %v1613 = vadd.f32 %v1215, %v1422
        %v1614 = vadd.f32 %v1216, %v1529
        %v1615 = vadd.f32 %v1217, %v1425
        %v1616 = vadd.f32 %v1218, %v1532
        %v1617 = vadd.f32 %v1219, %v1428
        %v1618 = vadd.f32 %v1220, %v1535
        %v1619 = vadd.f32 %v1221, %v1431
        %v1620 = vadd.f32 %v1222, %v1538
        %v1621 = vadd.f32 %v1223, %v1434
        %v1622 = vadd.f32 %v1224, %v1541
        %v1623 = vadd.f32 %v1225, %v1437
        %v1624 = vadd.f32 %v1226, %v1544
        %v1625 = vadd.f32 %v1227, %v1440
        %v1626 = vadd.f32 %v1228, %v1547
        %v1627 = vadd.f32 %v1229, %v1443
        %v1628 = vadd.f32 %v1230, %v1550
        %v1629 = vadd.f32 %v1231, %v1446
        %v1630 = vadd.f32 %v1232, %v1553
        %v1631 = vadd.f32 %v1233, %v1449
        %v1632 = vadd.f32 %v1234, %v1556
        %v1633 = vadd.f32 %v1235, %v1452
        %v1634 = vadd.f32 %v1236, %v1559
        %v1635 = vadd.f32 %v1237, %v1455
        %v1636 = vadd.f32 %v1238, %v1562
        %v1637 = vadd.f32 %v1239, %v1458
        %v1638 = vadd.f32 %v1240, %v1565
        %v1639 = vadd.f32 %v1241, %v1461
        %v1640 = vadd.f32 %v1242, %v1568
        %v1641 = vadd.f32 %v1243, %v1464
        %v1642 = vadd.f32 %v1244, %v1571
        %v1643 = vadd.f32 %v1245, %v1467
        %v1644 = vadd.f32 %v1246, %v1574
        %v1645 = vadd.f32 %v1247, %v1470
        %v1646 = vadd.f32 %v1248, %v1577
        %v1647 = vadd.f32 %v1249, %v1473
        %v1648 = vadd.f32 %v1250, %v1580
        %v1649 = vadd.f32 %v1251, %v1476
        %v1650 = vadd.f32 %v1252, %v1583
        %v1651 = vadd.f32 %v1253, %v1479
        %v1652 = vadd.f32 %v1254, %v1586
        %v1653 = vadd.f32 %v1255, %v1482
        %v1654 = vadd.f32 %v1256, %v1589
        %v1655 = vadd.f32 %v1257, %v1485
        %v1656 = vadd.f32 %v1258, %v1592
        %v1657 = vadd.f32 %v1259, %v1488
        %v1658 = vadd.f32 %v1260, %v1595
        %v1659 = vadd.f32 %v1261, %v1491
        %v1660 = vadd.f32 %v1262, %v1598
        %v1661 = vadd.f32 %v1263, %v1494
        %v1662 = vadd.f32 %v1264, %v1601
        %v1663 = vmax.f32 %v1603, %v1604
        %v1664 = vmax.f32 %v1605, %v1606
        %v1665 = vmax.f32 %v1607, %v1608
        %v1666 = vmax.f32 %v1609, %v1610
        %v1667 = vmax.f32 %v1611, %v1612
        %v1668 = vmax.f32 %v1613, %v1614
        %v1669 = vmax.f32 %v1615, %v1616
        %v1670 = vmax.f32 %v1617, %v1618
        %v1671 = vmax.f32 %v1619, %v1620
        %v1672 = vmax.f32 %v1621, %v1622
        %v1673 = vmax.f32 %v1623, %v1624
        %v1674 = vmax.f32 %v1625, %v1626
        %v1675 = vmax.f32 %v1627, %v1628
        %v1676 = vmax.f32 %v1629, %v1630
        %v1677 = vmax.f32 %v1631, %v1632
        %v1678 = vmax.f32 %v1633, %v1634
        %v1679 = vmax.f32 %v1635, %v1636
        %v1680 = vmax.f32 %v1637, %v1638
        %v1681 = vmax.f32 %v1639, %v1640
        %v1682 = vmax.f32 %v1641, %v1642
        %v1683 = vmax.f32 %v1643, %v1644
        %v1684 = vmax.f32 %v1645, %v1646
        %v1685 = vmax.f32 %v1647, %v1648
        %v1686 = vmax.f32 %v1649, %v1650
        %v1687 = vmax.f32 %v1651, %v1652
        %v1688 = vmax.f32 %v1653, %v1654
        %v1689 = vmax.f32 %v1655, %v1656
        %v1690 = vmax.f32 %v1657, %v1658
        %v1691 = vmax.f32 %v1659, %v1660
        %v1692 = vmax.f32 %v1661, %v1662
        %v1693 = vld [vmem:[#allocation10] sm:$0xff]
        %v1694 = vld [vmem:[#allocation10 + $0x8] sm:$0xff]
        %v1695 = vld [vmem:[#allocation10 + $0x10] sm:$0xff]
        %v1696 = vld [vmem:[#allocation10 + $0x18] sm:$0xff]
        %v1697 = vld [vmem:[#allocation10 + $0x20] sm:$0xff]
        %v1698 = vld [vmem:[#allocation10 + $0x28] sm:$0xff]
        %v1699 = vld [vmem:[#allocation10 + $0x30] sm:$0xff]
        %v1700 = vld [vmem:[#allocation10 + $0x38] sm:$0xff]
        %v1701 = vld [vmem:[#allocation10 + $0x40] sm:$0xff]
        %v1702 = vld [vmem:[#allocation10 + $0x48] sm:$0xff]
        %v1703 = vld [vmem:[#allocation10 + $0x50] sm:$0xff]
        %v1704 = vld [vmem:[#allocation10 + $0x58] sm:$0xff]
        %v1705 = vld [vmem:[#allocation10 + $0x60] sm:$0xff]
        %v1706 = vld [vmem:[#allocation10 + $0x68] sm:$0xff]
        %v1707 = vld [vmem:[#allocation10 + $0x70] sm:$0xff]
        %v1708 = vld [vmem:[#allocation10 + $0x78] sm:$0xff]
        %v1709 = vld [vmem:[#allocation10 + $0x80] sm:$0xff]
        %v1710 = vld [vmem:[#allocation10 + $0x88] sm:$0xff]
        %v1711 = vld [vmem:[#allocation10 + $0x90] sm:$0xff]
        %v1712 = vld [vmem:[#allocation10 + $0x98] sm:$0xff]
        %v1713 = vld [vmem:[#allocation10 + $0xa0] sm:$0xff]
        %v1714 = vld [vmem:[#allocation10 + $0xa8] sm:$0xff]
        %v1715 = vld [vmem:[#allocation10 + $0xb0] sm:$0xff]
        %v1716 = vld [vmem:[#allocation10 + $0xb8] sm:$0xff]
        %v1717 = vld [vmem:[#allocation10 + $0xc0] sm:$0xff]
        %v1718 = vld [vmem:[#allocation10 + $0xc8] sm:$0xff]
        %v1719 = vld [vmem:[#allocation10 + $0xd0] sm:$0xff]
        %v1720 = vld [vmem:[#allocation10 + $0xd8] sm:$0xff]
        %v1721 = vld [vmem:[#allocation10 + $0xe0] sm:$0x3f]
        %v1722 = vld [vmem:[#allocation10 + $0xe8] sm:$0x3f]
        %vm1723 = vcmask 883712
        %v1725 = vsel %vm1723, %v1694, 0
        %v1728 = vsel %vm1723, %v1696, 0
        %v1731 = vsel %vm1723, %v1698, 0
        %v1734 = vsel %vm1723, %v1700, 0
        %v1737 = vsel %vm1723, %v1702, 0
        %v1740 = vsel %vm1723, %v1704, 0
        %v1743 = vsel %vm1723, %v1706, 0
        %v1746 = vsel %vm1723, %v1708, 0
        %v1749 = vsel %vm1723, %v1710, 0
        %v1752 = vsel %vm1723, %v1712, 0
        %v1755 = vsel %vm1723, %v1714, 0
        %v1758 = vsel %vm1723, %v1716, 0
        %v1761 = vsel %vm1723, %v1718, 0
        %v1764 = vsel %vm1723, %v1720, 0
        %v1767 = vsel %vm1723, %v1722, 0
        %vm1769 = vcmask 1043456
        %v1771 = vsel %vm1769, %v1692, 0
        %1773 = vmatpush.msra.mxu0 %v1678
        %1774 = vmatpush.msra.mxu0 %v1677
        %1775 = vmatpush.msra.mxu0 %v1676
        %1776 = vmatpush.msra.mxu0 %v1675
        %1777 = vmatpush.msra.mxu0 %v1674
        %1778 = vmatpush.msra.mxu0 %v1673
        %1779 = vmatpush.msra.mxu0 %v1672
        %1780 = vmatpush.msra.mxu0 %v1671
        %1781 = vmatpush.msra.mxu0 %v1670
        %1782 = vmatpush.msra.mxu0 %v1669
        %1783 = vmatpush.msra.mxu0 %v1668
        %1784 = vmatpush.msra.mxu0 %v1667
        %1785 = vmatpush.msra.mxu0 %v1666
        %1786 = vmatpush.msra.mxu0 %v1665
        %1787 = vmatpush.msra.mxu0 %v1664
        %1788 = vmatpush.msra.mxu0 %v1663
        %1789 = vmatmul.f32.gmra.mxu0 %v1693
        %v1790 = vpop.f32.mrf.mxu0
        %v1791 = vadd.f32 0.0, %v1790
        %1792 = vmatmul.f32.gmra.mxu0 %v1695
        %v1793 = vpop.f32.mrf.mxu0
        %v1794 = vadd.f32 0.0, %v1793
        %1795 = vmatmul.f32.gmra.mxu0 %v1697
        %v1796 = vpop.f32.mrf.mxu0
        %v1797 = vadd.f32 0.0, %v1796
        %1798 = vmatmul.f32.gmra.mxu0 %v1699
        %v1799 = vpop.f32.mrf.mxu0
        %v1800 = vadd.f32 0.0, %v1799
        %1801 = vmatmul.f32.gmra.mxu0 %v1701
        %v1802 = vpop.f32.mrf.mxu0
        %v1803 = vadd.f32 0.0, %v1802
        %1804 = vmatmul.f32.gmra.mxu0 %v1703
        %v1805 = vpop.f32.mrf.mxu0
        %v1806 = vadd.f32 0.0, %v1805
        %1807 = vmatmul.f32.gmra.mxu0 %v1705
        %v1808 = vpop.f32.mrf.mxu0
        %v1809 = vadd.f32 0.0, %v1808
        %1810 = vmatmul.f32.gmra.mxu0 %v1707
        %v1811 = vpop.f32.mrf.mxu0
        %v1812 = vadd.f32 0.0, %v1811
        %1813 = vmatmul.f32.gmra.mxu0 %v1709
        %v1814 = vpop.f32.mrf.mxu0
        %v1815 = vadd.f32 0.0, %v1814
        %1816 = vmatmul.f32.gmra.mxu0 %v1711
        %v1817 = vpop.f32.mrf.mxu0
        %v1818 = vadd.f32 0.0, %v1817
        %1819 = vmatmul.f32.gmra.mxu0 %v1713
        %v1820 = vpop.f32.mrf.mxu0
        %v1821 = vadd.f32 0.0, %v1820
        %1822 = vmatmul.f32.gmra.mxu0 %v1715
        %v1823 = vpop.f32.mrf.mxu0
        %v1824 = vadd.f32 0.0, %v1823
        %1825 = vmatmul.f32.gmra.mxu0 %v1717
        %v1826 = vpop.f32.mrf.mxu0
        %v1827 = vadd.f32 0.0, %v1826
        %1828 = vmatmul.f32.gmra.mxu0 %v1719
        %v1829 = vpop.f32.mrf.mxu0
        %v1830 = vadd.f32 0.0, %v1829
        %1831 = vmatmul.f32.gmra.mxu0 %v1721
        %v1832 = vpop.f32.mrf.mxu0
        %v1833 = vadd.f32 0.0, %v1832
        %1834 = vdwg.mxu0
        %1835 = vmatpush.msra.mxu0 0.0
        %1836 = vmatpush.msra.mxu0 0.0
        %1837 = vmatpush.msra.mxu0 %v1771
        %1838 = vmatpush.msra.mxu0 %v1691
        %1839 = vmatpush.msra.mxu0 %v1690
        %1840 = vmatpush.msra.mxu0 %v1689
        %1841 = vmatpush.msra.mxu0 %v1688
        %1842 = vmatpush.msra.mxu0 %v1687
        %1843 = vmatpush.msra.mxu0 %v1686
        %1844 = vmatpush.msra.mxu0 %v1685
        %1845 = vmatpush.msra.mxu0 %v1684
        %1846 = vmatpush.msra.mxu0 %v1683
        %1847 = vmatpush.msra.mxu0 %v1682
        %1848 = vmatpush.msra.mxu0 %v1681
        %1849 = vmatpush.msra.mxu0 %v1680
        %1850 = vmatpush.msra.mxu0 %v1679
        %1851 = vmatmul.f32.gmra.mxu0 %v1725
        %v1852 = vpop.f32.mrf.mxu0
        %v1853 = vadd.f32 %v1791, %v1852
        %1854 = vmatmul.f32.gmra.mxu0 %v1728
        %v1855 = vpop.f32.mrf.mxu0
        %v1856 = vadd.f32 %v1794, %v1855
        %1857 = vmatmul.f32.gmra.mxu0 %v1731
        %v1858 = vpop.f32.mrf.mxu0
        %v1859 = vadd.f32 %v1797, %v1858
        %1860 = vmatmul.f32.gmra.mxu0 %v1734
        %v1861 = vpop.f32.mrf.mxu0
        %v1862 = vadd.f32 %v1800, %v1861
        %1863 = vmatmul.f32.gmra.mxu0 %v1737
        %v1864 = vpop.f32.mrf.mxu0
        %v1865 = vadd.f32 %v1803, %v1864
        %1866 = vmatmul.f32.gmra.mxu0 %v1740
        %v1867 = vpop.f32.mrf.mxu0
        %v1868 = vadd.f32 %v1806, %v1867
        %1869 = vmatmul.f32.gmra.mxu0 %v1743
        %v1870 = vpop.f32.mrf.mxu0
        %v1871 = vadd.f32 %v1809, %v1870
        %1872 = vmatmul.f32.gmra.mxu0 %v1746
        %v1873 = vpop.f32.mrf.mxu0
        %v1874 = vadd.f32 %v1812, %v1873
        %1875 = vmatmul.f32.gmra.mxu0 %v1749
        %v1876 = vpop.f32.mrf.mxu0
        %v1877 = vadd.f32 %v1815, %v1876
        %1878 = vmatmul.f32.gmra.mxu0 %v1752
        %v1879 = vpop.f32.mrf.mxu0
        %v1880 = vadd.f32 %v1818, %v1879
        %1881 = vmatmul.f32.gmra.mxu0 %v1755
        %v1882 = vpop.f32.mrf.mxu0
        %v1883 = vadd.f32 %v1821, %v1882
        %1884 = vmatmul.f32.gmra.mxu0 %v1758
        %v1885 = vpop.f32.mrf.mxu0
        %v1886 = vadd.f32 %v1824, %v1885
        %1887 = vmatmul.f32.gmra.mxu0 %v1761
        %v1888 = vpop.f32.mrf.mxu0
        %v1889 = vadd.f32 %v1827, %v1888
        %1890 = vmatmul.f32.gmra.mxu0 %v1764
        %v1891 = vpop.f32.mrf.mxu0
        %v1892 = vadd.f32 %v1830, %v1891
        %1893 = vmatmul.f32.gmra.mxu0 %v1767
        %v1894 = vpop.f32.mrf.mxu0
        %v1895 = vadd.f32 %v1833, %v1894
        %1896 = vdwg.mxu0
        %v1897 = vld [vmem:[#allocation11] sm:$0xff]
        %v1898 = vld [vmem:[#allocation11 + $0x8] sm:$0xff]
        %v1899 = vld [vmem:[#allocation11 + $0x10] sm:$0xff]
        %v1900 = vld [vmem:[#allocation11 + $0x18] sm:$0xff]
        %v1901 = vld [vmem:[#allocation11 + $0x20] sm:$0xff]
        %v1902 = vld [vmem:[#allocation11 + $0x28] sm:$0xff]
        %v1903 = vld [vmem:[#allocation11 + $0x30] sm:$0xff]
        %v1904 = vld [vmem:[#allocation11 + $0x38] sm:$0xff]
        %v1905 = vld [vmem:[#allocation11 + $0x40] sm:$0xff]
        %v1906 = vld [vmem:[#allocation11 + $0x48] sm:$0xff]
        %v1907 = vld [vmem:[#allocation11 + $0x50] sm:$0xff]
        %v1908 = vld [vmem:[#allocation11 + $0x58] sm:$0xff]
        %v1909 = vld [vmem:[#allocation11 + $0x60] sm:$0xff]
        %v1910 = vld [vmem:[#allocation11 + $0x68] sm:$0xff]
        %v1911 = vld [vmem:[#allocation11 + $0x70] sm:$0xff]
        %v1912 = vld [vmem:[#allocation11 + $0x78] sm:$0xff]
        %v1913 = vld [vmem:[#allocation11 + $0x80] sm:$0xff]
        %v1914 = vld [vmem:[#allocation11 + $0x88] sm:$0xff]
        %v1915 = vld [vmem:[#allocation11 + $0x90] sm:$0xff]
        %v1916 = vld [vmem:[#allocation11 + $0x98] sm:$0xff]
        %v1917 = vld [vmem:[#allocation11 + $0xa0] sm:$0xff]
        %v1918 = vld [vmem:[#allocation11 + $0xa8] sm:$0xff]
        %v1919 = vld [vmem:[#allocation11 + $0xb0] sm:$0xff]
        %v1920 = vld [vmem:[#allocation11 + $0xb8] sm:$0xff]
        %v1921 = vld [vmem:[#allocation11 + $0xc0] sm:$0xff]
        %v1922 = vld [vmem:[#allocation11 + $0xc8] sm:$0xff]
        %v1923 = vld [vmem:[#allocation11 + $0xd0] sm:$0xff]
        %v1924 = vld [vmem:[#allocation11 + $0xd8] sm:$0xff]
        %v1925 = vld [vmem:[#allocation11 + $0xe0] sm:$0x3f]
        %v1926 = vld [vmem:[#allocation11 + $0xe8] sm:$0x3f]
        %v1928 = vsel %vm1723, %v1898, 0
        %v1931 = vsel %vm1723, %v1900, 0
        %v1934 = vsel %vm1723, %v1902, 0
        %v1937 = vsel %vm1723, %v1904, 0
        %v1940 = vsel %vm1723, %v1906, 0
        %v1943 = vsel %vm1723, %v1908, 0
        %v1946 = vsel %vm1723, %v1910, 0
        %v1949 = vsel %vm1723, %v1912, 0
        %v1952 = vsel %vm1723, %v1914, 0
        %v1955 = vsel %vm1723, %v1916, 0
        %v1958 = vsel %vm1723, %v1918, 0
        %v1961 = vsel %vm1723, %v1920, 0
        %v1964 = vsel %vm1723, %v1922, 0
        %v1967 = vsel %vm1723, %v1924, 0
        %v1970 = vsel %vm1723, %v1926, 0
        %1972 = vmatpush.msra.mxu0 %v1678
        %1973 = vmatpush.msra.mxu0 %v1677
        %1974 = vmatpush.msra.mxu0 %v1676
        %1975 = vmatpush.msra.mxu0 %v1675
        %1976 = vmatpush.msra.mxu0 %v1674
        %1977 = vmatpush.msra.mxu0 %v1673
        %1978 = vmatpush.msra.mxu0 %v1672
        %1979 = vmatpush.msra.mxu0 %v1671
        %1980 = vmatpush.msra.mxu0 %v1670
        %1981 = vmatpush.msra.mxu0 %v1669
        %1982 = vmatpush.msra.mxu0 %v1668
        %1983 = vmatpush.msra.mxu0 %v1667
        %1984 = vmatpush.msra.mxu0 %v1666
        %1985 = vmatpush.msra.mxu0 %v1665
        %1986 = vmatpush.msra.mxu0 %v1664
        %1987 = vmatpush.msra.mxu0 %v1663
        %1988 = vmatmul.f32.gmra.mxu0 %v1897
        %v1989 = vpop.f32.mrf.mxu0
        %v1990 = vadd.f32 0.0, %v1989
        %1991 = vmatmul.f32.gmra.mxu0 %v1899
        %v1992 = vpop.f32.mrf.mxu0
        %v1993 = vadd.f32 0.0, %v1992
        %1994 = vmatmul.f32.gmra.mxu0 %v1901
        %v1995 = vpop.f32.mrf.mxu0
        %v1996 = vadd.f32 0.0, %v1995
        %1997 = vmatmul.f32.gmra.mxu0 %v1903
        %v1998 = vpop.f32.mrf.mxu0
        %v1999 = vadd.f32 0.0, %v1998
        %2000 = vmatmul.f32.gmra.mxu0 %v1905
        %v2001 = vpop.f32.mrf.mxu0
        %v2002 = vadd.f32 0.0, %v2001
        %2003 = vmatmul.f32.gmra.mxu0 %v1907
        %v2004 = vpop.f32.mrf.mxu0
        %v2005 = vadd.f32 0.0, %v2004
        %2006 = vmatmul.f32.gmra.mxu0 %v1909
        %v2007 = vpop.f32.mrf.mxu0
        %v2008 = vadd.f32 0.0, %v2007
        %2009 = vmatmul.f32.gmra.mxu0 %v1911
        %v2010 = vpop.f32.mrf.mxu0
        %v2011 = vadd.f32 0.0, %v2010
        %2012 = vmatmul.f32.gmra.mxu0 %v1913
        %v2013 = vpop.f32.mrf.mxu0
        %v2014 = vadd.f32 0.0, %v2013
        %2015 = vmatmul.f32.gmra.mxu0 %v1915
        %v2016 = vpop.f32.mrf.mxu0
        %v2017 = vadd.f32 0.0, %v2016
        %2018 = vmatmul.f32.gmra.mxu0 %v1917
        %v2019 = vpop.f32.mrf.mxu0
        %v2020 = vadd.f32 0.0, %v2019
        %2021 = vmatmul.f32.gmra.mxu0 %v1919
        %v2022 = vpop.f32.mrf.mxu0
        %v2023 = vadd.f32 0.0, %v2022
        %2024 = vmatmul.f32.gmra.mxu0 %v1921
        %v2025 = vpop.f32.mrf.mxu0
        %v2026 = vadd.f32 0.0, %v2025
        %2027 = vmatmul.f32.gmra.mxu0 %v1923
        %v2028 = vpop.f32.mrf.mxu0
        %v2029 = vadd.f32 0.0, %v2028
        %2030 = vmatmul.f32.gmra.mxu0 %v1925
        %v2031 = vpop.f32.mrf.mxu0
        %v2032 = vadd.f32 0.0, %v2031
        %2033 = vdwg.mxu0
        %2034 = vmatpush.msra.mxu0 0.0
        %2035 = vmatpush.msra.mxu0 0.0
        %2036 = vmatpush.msra.mxu0 %v1771
        %2037 = vmatpush.msra.mxu0 %v1691
        %2038 = vmatpush.msra.mxu0 %v1690
        %2039 = vmatpush.msra.mxu0 %v1689
        %2040 = vmatpush.msra.mxu0 %v1688
        %2041 = vmatpush.msra.mxu0 %v1687
        %2042 = vmatpush.msra.mxu0 %v1686
        %2043 = vmatpush.msra.mxu0 %v1685
        %2044 = vmatpush.msra.mxu0 %v1684
        %2045 = vmatpush.msra.mxu0 %v1683
        %2046 = vmatpush.msra.mxu0 %v1682
        %2047 = vmatpush.msra.mxu0 %v1681
        %2048 = vmatpush.msra.mxu0 %v1680
        %2049 = vmatpush.msra.mxu0 %v1679
        %2050 = vmatmul.f32.gmra.mxu0 %v1928
        %v2051 = vpop.f32.mrf.mxu0
        %v2052 = vadd.f32 %v1990, %v2051
        %2053 = vmatmul.f32.gmra.mxu0 %v1931
        %v2054 = vpop.f32.mrf.mxu0
        %v2055 = vadd.f32 %v1993, %v2054
        %2056 = vmatmul.f32.gmra.mxu0 %v1934
        %v2057 = vpop.f32.mrf.mxu0
        %v2058 = vadd.f32 %v1996, %v2057
        %2059 = vmatmul.f32.gmra.mxu0 %v1937
        %v2060 = vpop.f32.mrf.mxu0
        %v2061 = vadd.f32 %v1999, %v2060
        %2062 = vmatmul.f32.gmra.mxu0 %v1940
        %v2063 = vpop.f32.mrf.mxu0
        %v2064 = vadd.f32 %v2002, %v2063
        %2065 = vmatmul.f32.gmra.mxu0 %v1943
        %v2066 = vpop.f32.mrf.mxu0
        %v2067 = vadd.f32 %v2005, %v2066
        %2068 = vmatmul.f32.gmra.mxu0 %v1946
        %v2069 = vpop.f32.mrf.mxu0
        %v2070 = vadd.f32 %v2008, %v2069
        %2071 = vmatmul.f32.gmra.mxu0 %v1949
        %v2072 = vpop.f32.mrf.mxu0
        %v2073 = vadd.f32 %v2011, %v2072
        %2074 = vmatmul.f32.gmra.mxu0 %v1952
        %v2075 = vpop.f32.mrf.mxu0
        %v2076 = vadd.f32 %v2014, %v2075
        %2077 = vmatmul.f32.gmra.mxu0 %v1955
        %v2078 = vpop.f32.mrf.mxu0
        %v2079 = vadd.f32 %v2017, %v2078
        %2080 = vmatmul.f32.gmra.mxu0 %v1958
        %v2081 = vpop.f32.mrf.mxu0
        %v2082 = vadd.f32 %v2020, %v2081
        %2083 = vmatmul.f32.gmra.mxu0 %v1961
        %v2084 = vpop.f32.mrf.mxu0
        %v2085 = vadd.f32 %v2023, %v2084
        %2086 = vmatmul.f32.gmra.mxu0 %v1964
        %v2087 = vpop.f32.mrf.mxu0
        %v2088 = vadd.f32 %v2026, %v2087
        %2089 = vmatmul.f32.gmra.mxu0 %v1967
        %v2090 = vpop.f32.mrf.mxu0
        %v2091 = vadd.f32 %v2029, %v2090
        %2092 = vmatmul.f32.gmra.mxu0 %v1970
        %v2093 = vpop.f32.mrf.mxu0
        %v2094 = vadd.f32 %v2032, %v2093
        %2095 = vdwg.mxu0
        %v2096 = vmax.f32 %v1853, %v2052
        %v2097 = vmax.f32 %v1856, %v2055
        %v2098 = vmax.f32 %v1859, %v2058
        %v2099 = vmax.f32 %v1862, %v2061
        %v2100 = vmax.f32 %v1865, %v2064
        %v2101 = vmax.f32 %v1868, %v2067
        %v2102 = vmax.f32 %v1871, %v2070
        %v2103 = vmax.f32 %v1874, %v2073
        %v2104 = vmax.f32 %v1877, %v2076
        %v2105 = vmax.f32 %v1880, %v2079
        %v2106 = vmax.f32 %v1883, %v2082
        %v2107 = vmax.f32 %v1886, %v2085
        %v2108 = vmax.f32 %v1889, %v2088
        %v2109 = vmax.f32 %v1892, %v2091
        %v2110 = vmax.f32 %v1895, %v2094
        %v2111 = vmax.f32 %v2096, 0.0
        %v2112 = vmax.f32 %v2097, 0.0
        %v2113 = vmax.f32 %v2098, 0.0
        %v2114 = vmax.f32 %v2099, 0.0
        %v2115 = vmax.f32 %v2100, 0.0
        %v2116 = vmax.f32 %v2101, 0.0
        %v2117 = vmax.f32 %v2102, 0.0
        %v2118 = vmax.f32 %v2103, 0.0
        %v2119 = vmax.f32 %v2104, 0.0
        %v2120 = vmax.f32 %v2105, 0.0
        %v2121 = vmax.f32 %v2106, 0.0
        %v2122 = vmax.f32 %v2107, 0.0
        %v2123 = vmax.f32 %v2108, 0.0
        %v2124 = vmax.f32 %v2109, 0.0
        %v2125 = vmax.f32 %v2110, 0.0
        %vm2126 = vcmask 785408
        %2127 = vst.msk [vmem:[#allocation2] sm:$0xff] %vm2126, 0.0
        %2128 = vst.msk [vmem:[#allocation2 + $0x8] sm:$0xff] %vm2126, 0.0
        %2129 = vst.msk [vmem:[#allocation2 + $0x10] sm:$0xff] %vm2126, 0.0
        %2130 = vst.msk [vmem:[#allocation2 + $0x18] sm:$0xff] %vm2126, 0.0
        %2131 = vst.msk [vmem:[#allocation2 + $0x20] sm:$0xff] %vm2126, 0.0
        %2132 = vst.msk [vmem:[#allocation2 + $0x28] sm:$0xff] %vm2126, 0.0
        %2133 = vst.msk [vmem:[#allocation2 + $0x30] sm:$0xff] %vm2126, 0.0
        %2134 = vst.msk [vmem:[#allocation2 + $0x38] sm:$0xff] %vm2126, 0.0
        %2135 = vst.msk [vmem:[#allocation2 + $0x40] sm:$0xff] %vm2126, 0.0
        %2136 = vst.msk [vmem:[#allocation2 + $0x48] sm:$0xff] %vm2126, 0.0
        %2137 = vst.msk [vmem:[#allocation2 + $0x50] sm:$0xff] %vm2126, 0.0
        %2138 = vst.msk [vmem:[#allocation2 + $0x58] sm:$0xff] %vm2126, 0.0
        %2139 = vst.msk [vmem:[#allocation2 + $0x60] sm:$0xff] %vm2126, 0.0
        %2140 = vst.msk [vmem:[#allocation2 + $0x68] sm:$0xff] %vm2126, 0.0
        %2141 = vst.msk [vmem:[#allocation2 + $0x70] sm:$0xff] %vm2126, 0.0
        %2142 = vst.msk [vmem:[#allocation2 + $0x1] sm:$0xff] %vm2126, %v2111
        %2143 = vst.msk [vmem:[#allocation2 + $0x9] sm:$0xff] %vm2126, %v2112
        %2144 = vst.msk [vmem:[#allocation2 + $0x11] sm:$0xff] %vm2126, %v2113
        %2145 = vst.msk [vmem:[#allocation2 + $0x19] sm:$0xff] %vm2126, %v2114
        %2146 = vst.msk [vmem:[#allocation2 + $0x21] sm:$0xff] %vm2126, %v2115
        %2147 = vst.msk [vmem:[#allocation2 + $0x29] sm:$0xff] %vm2126, %v2116
        %2148 = vst.msk [vmem:[#allocation2 + $0x31] sm:$0xff] %vm2126, %v2117
        %2149 = vst.msk [vmem:[#allocation2 + $0x39] sm:$0xff] %vm2126, %v2118
        %2150 = vst.msk [vmem:[#allocation2 + $0x41] sm:$0xff] %vm2126, %v2119
        %2151 = vst.msk [vmem:[#allocation2 + $0x49] sm:$0xff] %vm2126, %v2120
        %2152 = vst.msk [vmem:[#allocation2 + $0x51] sm:$0xff] %vm2126, %v2121
        %2153 = vst.msk [vmem:[#allocation2 + $0x59] sm:$0xff] %vm2126, %v2122
        %2154 = vst.msk [vmem:[#allocation2 + $0x61] sm:$0xff] %vm2126, %v2123
        %2155 = vst.msk [vmem:[#allocation2 + $0x69] sm:$0xff] %vm2126, %v2124
        %vm2156 = vcmask 783360
        %2157 = vst.msk [vmem:[#allocation2 + $0x71] sm:$0x3f] %vm2156, %v2125
        %v2158 = vld [vmem:[#allocation8] sm:$0x3]
        %v2159 = vld [vmem:[#allocation2] sm:$0xff]
        %v2160 = vld [vmem:[#allocation2 + $0x8] sm:$0xff]
        %v2161 = vld [vmem:[#allocation2 + $0x10] sm:$0xff]
        %v2162 = vld [vmem:[#allocation2 + $0x18] sm:$0xff]
        %v2163 = vld [vmem:[#allocation2 + $0x20] sm:$0xff]
        %v2164 = vld [vmem:[#allocation2 + $0x28] sm:$0xff]
        %v2165 = vld [vmem:[#allocation2 + $0x30] sm:$0xff]
        %v2166 = vld [vmem:[#allocation2 + $0x38] sm:$0xff]
        %v2167 = vld [vmem:[#allocation2 + $0x40] sm:$0xff]
        %v2168 = vld [vmem:[#allocation2 + $0x48] sm:$0xff]
        %v2169 = vld [vmem:[#allocation2 + $0x50] sm:$0xff]
        %v2170 = vld [vmem:[#allocation2 + $0x58] sm:$0xff]
        %v2171 = vld [vmem:[#allocation2 + $0x60] sm:$0xff]
        %v2172 = vld [vmem:[#allocation2 + $0x68] sm:$0xff]
        %v2173 = vld [vmem:[#allocation2 + $0x70] sm:$0x3f]
        %v2174 = vld [vmem:[#allocation7] sm:$0xff]
        %v2175 = vld [vmem:[#allocation7 + $0x8] sm:$0xff]
        %v2176 = vld [vmem:[#allocation7 + $0x10] sm:$0xff]
        %v2177 = vld [vmem:[#allocation7 + $0x18] sm:$0xff]
        %v2178 = vld [vmem:[#allocation7 + $0x20] sm:$0xff]
        %v2179 = vld [vmem:[#allocation7 + $0x28] sm:$0xff]
        %v2180 = vld [vmem:[#allocation7 + $0x30] sm:$0xff]
        %v2181 = vld [vmem:[#allocation7 + $0x38] sm:$0xff]
        %v2182 = vld [vmem:[#allocation7 + $0x40] sm:$0xff]
        %v2183 = vld [vmem:[#allocation7 + $0x48] sm:$0xff]
        %v2184 = vld [vmem:[#allocation7 + $0x50] sm:$0xff]
        %v2185 = vld [vmem:[#allocation7 + $0x58] sm:$0xff]
        %v2186 = vld [vmem:[#allocation7 + $0x60] sm:$0xff]
        %v2187 = vld [vmem:[#allocation7 + $0x68] sm:$0xff]
        %v2188 = vld [vmem:[#allocation7 + $0x70] sm:$0xff]
        %v2189 = vld [vmem:[#allocation7 + $0x78] sm:$0xff]
        %v2190 = vld [vmem:[#allocation7 + $0x80] sm:$0xff]
        %v2191 = vld [vmem:[#allocation7 + $0x88] sm:$0xff]
        %v2192 = vld [vmem:[#allocation7 + $0x90] sm:$0xff]
        %v2193 = vld [vmem:[#allocation7 + $0x98] sm:$0xff]
        %v2194 = vld [vmem:[#allocation7 + $0xa0] sm:$0xff]
        %v2195 = vld [vmem:[#allocation7 + $0xa8] sm:$0xff]
        %v2196 = vld [vmem:[#allocation7 + $0xb0] sm:$0xff]
        %v2197 = vld [vmem:[#allocation7 + $0xb8] sm:$0xff]
        %v2199 = vsel %vm2126, %v2159, 0
        %v2202 = vsel %vm2126, %v2160, 0
        %v2205 = vsel %vm2126, %v2161, 0
        %v2208 = vsel %vm2126, %v2162, 0
        %v2211 = vsel %vm2126, %v2163, 0
        %v2214 = vsel %vm2126, %v2164, 0
        %v2217 = vsel %vm2126, %v2165, 0
        %v2220 = vsel %vm2126, %v2166, 0
        %v2223 = vsel %vm2126, %v2167, 0
        %v2226 = vsel %vm2126, %v2168, 0
        %v2229 = vsel %vm2126, %v2169, 0
        %v2232 = vsel %vm2126, %v2170, 0
        %v2235 = vsel %vm2126, %v2171, 0
        %v2238 = vsel %vm2126, %v2172, 0
        %v2241 = vsel %vm2126, %v2173, 0
        %2243 = vmatpush.msra.mxu0 0.0
        %2244 = vmatpush.msra.mxu0 0.0
        %2245 = vmatpush.msra.mxu0 0.0
        %2246 = vmatpush.msra.mxu0 0.0
        %2247 = vmatpush.msra.mxu0 %v2196
        %2248 = vmatpush.msra.mxu0 %v2194
        %2249 = vmatpush.msra.mxu0 %v2192
        %2250 = vmatpush.msra.mxu0 %v2190
        %2251 = vmatpush.msra.mxu0 %v2188
        %2252 = vmatpush.msra.mxu0 %v2186
        %2253 = vmatpush.msra.mxu0 %v2184
        %2254 = vmatpush.msra.mxu0 %v2182
        %2255 = vmatpush.msra.mxu0 %v2180
        %2256 = vmatpush.msra.mxu0 %v2178
        %2257 = vmatpush.msra.mxu0 %v2176
        %2258 = vmatpush.msra.mxu0 %v2174
        %2259 = vmatmul.f32.gmra.mxu0 %v2199
        %v2260 = vpop.f32.mrf.mxu0
        %v2261 = vadd.f32 0.0, %v2260
        %2262 = vmatmul.f32.gmra.mxu0 %v2202
        %v2263 = vpop.f32.mrf.mxu0
        %v2264 = vadd.f32 0.0, %v2263
        %2265 = vmatmul.f32.gmra.mxu0 %v2205
        %v2266 = vpop.f32.mrf.mxu0
        %v2267 = vadd.f32 0.0, %v2266
        %2268 = vmatmul.f32.gmra.mxu0 %v2208
        %v2269 = vpop.f32.mrf.mxu0
        %v2270 = vadd.f32 0.0, %v2269
        %2271 = vmatmul.f32.gmra.mxu0 %v2211
        %v2272 = vpop.f32.mrf.mxu0
        %v2273 = vadd.f32 0.0, %v2272
        %2274 = vmatmul.f32.gmra.mxu0 %v2214
        %v2275 = vpop.f32.mrf.mxu0
        %v2276 = vadd.f32 0.0, %v2275
        %2277 = vmatmul.f32.gmra.mxu0 %v2217
        %v2278 = vpop.f32.mrf.mxu0
        %v2279 = vadd.f32 0.0, %v2278
        %2280 = vmatmul.f32.gmra.mxu0 %v2220
        %v2281 = vpop.f32.mrf.mxu0
        %v2282 = vadd.f32 0.0, %v2281
        %2283 = vmatmul.f32.gmra.mxu0 %v2223
        %v2284 = vpop.f32.mrf.mxu0
        %v2285 = vadd.f32 0.0, %v2284
        %2286 = vmatmul.f32.gmra.mxu0 %v2226
        %v2287 = vpop.f32.mrf.mxu0
        %v2288 = vadd.f32 0.0, %v2287
        %2289 = vmatmul.f32.gmra.mxu0 %v2229
        %v2290 = vpop.f32.mrf.mxu0
        %v2291 = vadd.f32 0.0, %v2290
        %2292 = vmatmul.f32.gmra.mxu0 %v2232
        %v2293 = vpop.f32.mrf.mxu0
        %v2294 = vadd.f32 0.0, %v2293
        %2295 = vmatmul.f32.gmra.mxu0 %v2235
        %v2296 = vpop.f32.mrf.mxu0
        %v2297 = vadd.f32 0.0, %v2296
        %2298 = vmatmul.f32.gmra.mxu0 %v2238
        %v2299 = vpop.f32.mrf.mxu0
        %v2300 = vadd.f32 0.0, %v2299
        %2301 = vmatmul.f32.gmra.mxu0 %v2241
        %v2302 = vpop.f32.mrf.mxu0
        %v2303 = vadd.f32 0.0, %v2302
        %2304 = vdwg.mxu0
        %2305 = vmatpush.msra.mxu0 0.0
        %2306 = vmatpush.msra.mxu0 0.0
        %2307 = vmatpush.msra.mxu0 0.0
        %2308 = vmatpush.msra.mxu0 0.0
        %2309 = vmatpush.msra.mxu0 %v2197
        %2310 = vmatpush.msra.mxu0 %v2195
        %2311 = vmatpush.msra.mxu0 %v2193
        %2312 = vmatpush.msra.mxu0 %v2191
        %2313 = vmatpush.msra.mxu0 %v2189
        %2314 = vmatpush.msra.mxu0 %v2187
        %2315 = vmatpush.msra.mxu0 %v2185
        %2316 = vmatpush.msra.mxu0 %v2183
        %2317 = vmatpush.msra.mxu0 %v2181
        %2318 = vmatpush.msra.mxu0 %v2179
        %2319 = vmatpush.msra.mxu0 %v2177
        %2320 = vmatpush.msra.mxu0 %v2175
        %2321 = vmatmul.f32.gmra.mxu0 %v2199
        %v2322 = vpop.f32.mrf.mxu0
        %v2323 = vadd.f32 0.0, %v2322
        %2324 = vmatmul.f32.gmra.mxu0 %v2202
        %v2325 = vpop.f32.mrf.mxu0
        %v2326 = vadd.f32 0.0, %v2325
        %2327 = vmatmul.f32.gmra.mxu0 %v2205
        %v2328 = vpop.f32.mrf.mxu0
        %v2329 = vadd.f32 0.0, %v2328
        %2330 = vmatmul.f32.gmra.mxu0 %v2208
        %v2331 = vpop.f32.mrf.mxu0
        %v2332 = vadd.f32 0.0, %v2331
        %2333 = vmatmul.f32.gmra.mxu0 %v2211
        %v2334 = vpop.f32.mrf.mxu0
        %v2335 = vadd.f32 0.0, %v2334
        %2336 = vmatmul.f32.gmra.mxu0 %v2214
        %v2337 = vpop.f32.mrf.mxu0
        %v2338 = vadd.f32 0.0, %v2337
        %2339 = vmatmul.f32.gmra.mxu0 %v2217
        %v2340 = vpop.f32.mrf.mxu0
        %v2341 = vadd.f32 0.0, %v2340
        %2342 = vmatmul.f32.gmra.mxu0 %v2220
        %v2343 = vpop.f32.mrf.mxu0
        %v2344 = vadd.f32 0.0, %v2343
        %2345 = vmatmul.f32.gmra.mxu0 %v2223
        %v2346 = vpop.f32.mrf.mxu0
        %v2347 = vadd.f32 0.0, %v2346
        %2348 = vmatmul.f32.gmra.mxu0 %v2226
        %v2349 = vpop.f32.mrf.mxu0
        %v2350 = vadd.f32 0.0, %v2349
        %2351 = vmatmul.f32.gmra.mxu0 %v2229
        %v2352 = vpop.f32.mrf.mxu0
        %v2353 = vadd.f32 0.0, %v2352
        %2354 = vmatmul.f32.gmra.mxu0 %v2232
        %v2355 = vpop.f32.mrf.mxu0
        %v2356 = vadd.f32 0.0, %v2355
        %2357 = vmatmul.f32.gmra.mxu0 %v2235
        %v2358 = vpop.f32.mrf.mxu0
        %v2359 = vadd.f32 0.0, %v2358
        %2360 = vmatmul.f32.gmra.mxu0 %v2238
        %v2361 = vpop.f32.mrf.mxu0
        %v2362 = vadd.f32 0.0, %v2361
        %2363 = vmatmul.f32.gmra.mxu0 %v2241
        %v2364 = vpop.f32.mrf.mxu0
        %v2365 = vadd.f32 0.0, %v2364
        %2366 = vdwg.mxu0
        %v2368 = vperm.slane %v2158, 0
        %v2369 = vperm.slane %v2158, 1
        %v2372 = vadd.f32 %v2368, %v2261
        %v2373 = vadd.f32 %v2369, %v2323
        %v2374 = vadd.f32 %v2368, %v2264
        %v2375 = vadd.f32 %v2369, %v2326
        %v2376 = vadd.f32 %v2368, %v2267
        %v2377 = vadd.f32 %v2369, %v2329
        %v2378 = vadd.f32 %v2368, %v2270
        %v2379 = vadd.f32 %v2369, %v2332
        %v2380 = vadd.f32 %v2368, %v2273
        %v2381 = vadd.f32 %v2369, %v2335
        %v2382 = vadd.f32 %v2368, %v2276
        %v2383 = vadd.f32 %v2369, %v2338
        %v2384 = vadd.f32 %v2368, %v2279
        %v2385 = vadd.f32 %v2369, %v2341
        %v2386 = vadd.f32 %v2368, %v2282
        %v2387 = vadd.f32 %v2369, %v2344
        %v2388 = vadd.f32 %v2368, %v2285
        %v2389 = vadd.f32 %v2369, %v2347
        %v2390 = vadd.f32 %v2368, %v2288
        %v2391 = vadd.f32 %v2369, %v2350
        %v2392 = vadd.f32 %v2368, %v2291
        %v2393 = vadd.f32 %v2369, %v2353
        %v2394 = vadd.f32 %v2368, %v2294
        %v2395 = vadd.f32 %v2369, %v2356
        %v2396 = vadd.f32 %v2368, %v2297
        %v2397 = vadd.f32 %v2369, %v2359
        %v2398 = vadd.f32 %v2368, %v2300
        %v2399 = vadd.f32 %v2369, %v2362
        %v2400 = vadd.f32 %v2368, %v2303
        %v2401 = vadd.f32 %v2369, %v2365
        %v2402 = vld [vmem:[#allocation2 + $0x1] sm:$0xff]
        %v2403 = vld [vmem:[#allocation2 + $0x9] sm:$0xff]
        %v2404 = vld [vmem:[#allocation2 + $0x11] sm:$0xff]
        %v2405 = vld [vmem:[#allocation2 + $0x19] sm:$0xff]
        %v2406 = vld [vmem:[#allocation2 + $0x21] sm:$0xff]
        %v2407 = vld [vmem:[#allocation2 + $0x29] sm:$0xff]
        %v2408 = vld [vmem:[#allocation2 + $0x31] sm:$0xff]
        %v2409 = vld [vmem:[#allocation2 + $0x39] sm:$0xff]
        %v2410 = vld [vmem:[#allocation2 + $0x41] sm:$0xff]
        %v2411 = vld [vmem:[#allocation2 + $0x49] sm:$0xff]
        %v2412 = vld [vmem:[#allocation2 + $0x51] sm:$0xff]
        %v2413 = vld [vmem:[#allocation2 + $0x59] sm:$0xff]
        %v2414 = vld [vmem:[#allocation2 + $0x61] sm:$0xff]
        %v2415 = vld [vmem:[#allocation2 + $0x69] sm:$0xff]
        %v2416 = vld [vmem:[#allocation2 + $0x71] sm:$0x3f]
        %v2417 = vld [vmem:[#allocation7 + $0xc0] sm:$0xff]
        %v2418 = vld [vmem:[#allocation7 + $0xc8] sm:$0xff]
        %v2419 = vld [vmem:[#allocation7 + $0xd0] sm:$0xff]
        %v2420 = vld [vmem:[#allocation7 + $0xd8] sm:$0xff]
        %v2421 = vld [vmem:[#allocation7 + $0xe0] sm:$0xff]
        %v2422 = vld [vmem:[#allocation7 + $0xe8] sm:$0xff]
        %v2423 = vld [vmem:[#allocation7 + $0xf0] sm:$0xff]
        %v2424 = vld [vmem:[#allocation7 + $0xf8] sm:$0xff]
        %v2425 = vld [vmem:[#allocation7 + $0x100] sm:$0xff]
        %v2426 = vld [vmem:[#allocation7 + $0x108] sm:$0xff]
        %v2427 = vld [vmem:[#allocation7 + $0x110] sm:$0xff]
        %v2428 = vld [vmem:[#allocation7 + $0x118] sm:$0xff]
        %v2429 = vld [vmem:[#allocation7 + $0x120] sm:$0xff]
        %v2430 = vld [vmem:[#allocation7 + $0x128] sm:$0xff]
        %v2431 = vld [vmem:[#allocation7 + $0x130] sm:$0xff]
        %v2432 = vld [vmem:[#allocation7 + $0x138] sm:$0xff]
        %v2433 = vld [vmem:[#allocation7 + $0x140] sm:$0xff]
        %v2434 = vld [vmem:[#allocation7 + $0x148] sm:$0xff]
        %v2435 = vld [vmem:[#allocation7 + $0x150] sm:$0xff]
        %v2436 = vld [vmem:[#allocation7 + $0x158] sm:$0xff]
        %v2437 = vld [vmem:[#allocation7 + $0x160] sm:$0xff]
        %v2438 = vld [vmem:[#allocation7 + $0x168] sm:$0xff]
        %v2439 = vld [vmem:[#allocation7 + $0x170] sm:$0xff]
        %v2440 = vld [vmem:[#allocation7 + $0x178] sm:$0xff]
        %v2442 = vsel %vm2126, %v2402, 0
        %v2445 = vsel %vm2126, %v2403, 0
        %v2448 = vsel %vm2126, %v2404, 0
        %v2451 = vsel %vm2126, %v2405, 0
        %v2454 = vsel %vm2126, %v2406, 0
        %v2457 = vsel %vm2126, %v2407, 0
        %v2460 = vsel %vm2126, %v2408, 0
        %v2463 = vsel %vm2126, %v2409, 0
        %v2466 = vsel %vm2126, %v2410, 0
        %v2469 = vsel %vm2126, %v2411, 0
        %v2472 = vsel %vm2126, %v2412, 0
        %v2475 = vsel %vm2126, %v2413, 0
        %v2478 = vsel %vm2126, %v2414, 0
        %v2481 = vsel %vm2126, %v2415, 0
        %v2484 = vsel %vm2126, %v2416, 0
        %2486 = vmatpush.msra.mxu0 0.0
        %2487 = vmatpush.msra.mxu0 0.0
        %2488 = vmatpush.msra.mxu0 0.0
        %2489 = vmatpush.msra.mxu0 0.0
        %2490 = vmatpush.msra.mxu0 %v2439
        %2491 = vmatpush.msra.mxu0 %v2437
        %2492 = vmatpush.msra.mxu0 %v2435
        %2493 = vmatpush.msra.mxu0 %v2433
        %2494 = vmatpush.msra.mxu0 %v2431
        %2495 = vmatpush.msra.mxu0 %v2429
        %2496 = vmatpush.msra.mxu0 %v2427
        %2497 = vmatpush.msra.mxu0 %v2425
        %2498 = vmatpush.msra.mxu0 %v2423
        %2499 = vmatpush.msra.mxu0 %v2421
        %2500 = vmatpush.msra.mxu0 %v2419
        %2501 = vmatpush.msra.mxu0 %v2417
        %2502 = vmatmul.f32.gmra.mxu0 %v2442
        %v2503 = vpop.f32.mrf.mxu0
        %v2504 = vadd.f32 0.0, %v2503
        %2505 = vmatmul.f32.gmra.mxu0 %v2445
        %v2506 = vpop.f32.mrf.mxu0
        %v2507 = vadd.f32 0.0, %v2506
        %2508 = vmatmul.f32.gmra.mxu0 %v2448
        %v2509 = vpop.f32.mrf.mxu0
        %v2510 = vadd.f32 0.0, %v2509
        %2511 = vmatmul.f32.gmra.mxu0 %v2451
        %v2512 = vpop.f32.mrf.mxu0
        %v2513 = vadd.f32 0.0, %v2512
        %2514 = vmatmul.f32.gmra.mxu0 %v2454
        %v2515 = vpop.f32.mrf.mxu0
        %v2516 = vadd.f32 0.0, %v2515
        %2517 = vmatmul.f32.gmra.mxu0 %v2457
        %v2518 = vpop.f32.mrf.mxu0
        %v2519 = vadd.f32 0.0, %v2518
        %2520 = vmatmul.f32.gmra.mxu0 %v2460
        %v2521 = vpop.f32.mrf.mxu0
        %v2522 = vadd.f32 0.0, %v2521
        %2523 = vmatmul.f32.gmra.mxu0 %v2463
        %v2524 = vpop.f32.mrf.mxu0
        %v2525 = vadd.f32 0.0, %v2524
        %2526 = vmatmul.f32.gmra.mxu0 %v2466
        %v2527 = vpop.f32.mrf.mxu0
        %v2528 = vadd.f32 0.0, %v2527
        %2529 = vmatmul.f32.gmra.mxu0 %v2469
        %v2530 = vpop.f32.mrf.mxu0
        %v2531 = vadd.f32 0.0, %v2530
        %2532 = vmatmul.f32.gmra.mxu0 %v2472
        %v2533 = vpop.f32.mrf.mxu0
        %v2534 = vadd.f32 0.0, %v2533
        %2535 = vmatmul.f32.gmra.mxu0 %v2475
        %v2536 = vpop.f32.mrf.mxu0
        %v2537 = vadd.f32 0.0, %v2536
        %2538 = vmatmul.f32.gmra.mxu0 %v2478
        %v2539 = vpop.f32.mrf.mxu0
        %v2540 = vadd.f32 0.0, %v2539
        %2541 = vmatmul.f32.gmra.mxu0 %v2481
        %v2542 = vpop.f32.mrf.mxu0
        %v2543 = vadd.f32 0.0, %v2542
        %2544 = vmatmul.f32.gmra.mxu0 %v2484
        %v2545 = vpop.f32.mrf.mxu0
        %v2546 = vadd.f32 0.0, %v2545
        %2547 = vdwg.mxu0
        %2548 = vmatpush.msra.mxu0 0.0
        %2549 = vmatpush.msra.mxu0 0.0
        %2550 = vmatpush.msra.mxu0 0.0
        %2551 = vmatpush.msra.mxu0 0.0
        %2552 = vmatpush.msra.mxu0 %v2440
        %2553 = vmatpush.msra.mxu0 %v2438
        %2554 = vmatpush.msra.mxu0 %v2436
        %2555 = vmatpush.msra.mxu0 %v2434
        %2556 = vmatpush.msra.mxu0 %v2432
        %2557 = vmatpush.msra.mxu0 %v2430
        %2558 = vmatpush.msra.mxu0 %v2428
        %2559 = vmatpush.msra.mxu0 %v2426
        %2560 = vmatpush.msra.mxu0 %v2424
        %2561 = vmatpush.msra.mxu0 %v2422
        %2562 = vmatpush.msra.mxu0 %v2420
        %2563 = vmatpush.msra.mxu0 %v2418
        %2564 = vmatmul.f32.gmra.mxu0 %v2442
        %v2565 = vpop.f32.mrf.mxu0
        %v2566 = vadd.f32 0.0, %v2565
        %2567 = vmatmul.f32.gmra.mxu0 %v2445
        %v2568 = vpop.f32.mrf.mxu0
        %v2569 = vadd.f32 0.0, %v2568
        %2570 = vmatmul.f32.gmra.mxu0 %v2448
        %v2571 = vpop.f32.mrf.mxu0
        %v2572 = vadd.f32 0.0, %v2571
        %2573 = vmatmul.f32.gmra.mxu0 %v2451
        %v2574 = vpop.f32.mrf.mxu0
        %v2575 = vadd.f32 0.0, %v2574
        %2576 = vmatmul.f32.gmra.mxu0 %v2454
        %v2577 = vpop.f32.mrf.mxu0
        %v2578 = vadd.f32 0.0, %v2577
        %2579 = vmatmul.f32.gmra.mxu0 %v2457
        %v2580 = vpop.f32.mrf.mxu0
        %v2581 = vadd.f32 0.0, %v2580
        %2582 = vmatmul.f32.gmra.mxu0 %v2460
        %v2583 = vpop.f32.mrf.mxu0
        %v2584 = vadd.f32 0.0, %v2583
        %2585 = vmatmul.f32.gmra.mxu0 %v2463
        %v2586 = vpop.f32.mrf.mxu0
        %v2587 = vadd.f32 0.0, %v2586
        %2588 = vmatmul.f32.gmra.mxu0 %v2466
        %v2589 = vpop.f32.mrf.mxu0
        %v2590 = vadd.f32 0.0, %v2589
        %2591 = vmatmul.f32.gmra.mxu0 %v2469
        %v2592 = vpop.f32.mrf.mxu0
        %v2593 = vadd.f32 0.0, %v2592
        %2594 = vmatmul.f32.gmra.mxu0 %v2472
        %v2595 = vpop.f32.mrf.mxu0
        %v2596 = vadd.f32 0.0, %v2595
        %2597 = vmatmul.f32.gmra.mxu0 %v2475
        %v2598 = vpop.f32.mrf.mxu0
        %v2599 = vadd.f32 0.0, %v2598
        %2600 = vmatmul.f32.gmra.mxu0 %v2478
        %v2601 = vpop.f32.mrf.mxu0
        %v2602 = vadd.f32 0.0, %v2601
        %2603 = vmatmul.f32.gmra.mxu0 %v2481
        %v2604 = vpop.f32.mrf.mxu0
        %v2605 = vadd.f32 0.0, %v2604
        %2606 = vmatmul.f32.gmra.mxu0 %v2484
        %v2607 = vpop.f32.mrf.mxu0
        %v2608 = vadd.f32 0.0, %v2607
        %2609 = vdwg.mxu0
        %v2610 = vadd.f32 %v2372, %v2504
        %v2611 = vadd.f32 %v2373, %v2566
        %v2612 = vadd.f32 %v2374, %v2507
        %v2613 = vadd.f32 %v2375, %v2569
        %v2614 = vadd.f32 %v2376, %v2510
        %v2615 = vadd.f32 %v2377, %v2572
        %v2616 = vadd.f32 %v2378, %v2513
        %v2617 = vadd.f32 %v2379, %v2575
        %v2618 = vadd.f32 %v2380, %v2516
        %v2619 = vadd.f32 %v2381, %v2578
        %v2620 = vadd.f32 %v2382, %v2519
        %v2621 = vadd.f32 %v2383, %v2581
        %v2622 = vadd.f32 %v2384, %v2522
        %v2623 = vadd.f32 %v2385, %v2584
        %v2624 = vadd.f32 %v2386, %v2525
        %v2625 = vadd.f32 %v2387, %v2587
        %v2626 = vadd.f32 %v2388, %v2528
        %v2627 = vadd.f32 %v2389, %v2590
        %v2628 = vadd.f32 %v2390, %v2531
        %v2629 = vadd.f32 %v2391, %v2593
        %v2630 = vadd.f32 %v2392, %v2534
        %v2631 = vadd.f32 %v2393, %v2596
        %v2632 = vadd.f32 %v2394, %v2537
        %v2633 = vadd.f32 %v2395, %v2599
        %v2634 = vadd.f32 %v2396, %v2540
        %v2635 = vadd.f32 %v2397, %v2602
        %v2636 = vadd.f32 %v2398, %v2543
        %v2637 = vadd.f32 %v2399, %v2605
        %v2638 = vadd.f32 %v2400, %v2546
        %v2639 = vadd.f32 %v2401, %v2608
        %v2640 = vld [vmem:[#allocation2 + $0x2] sm:$0xff]
        %v2641 = vld [vmem:[#allocation2 + $0xa] sm:$0xff]
        %v2642 = vld [vmem:[#allocation2 + $0x12] sm:$0xff]
        %v2643 = vld [vmem:[#allocation2 + $0x1a] sm:$0xff]
        %v2644 = vld [vmem:[#allocation2 + $0x22] sm:$0xff]
        %v2645 = vld [vmem:[#allocation2 + $0x2a] sm:$0xff]
        %v2646 = vld [vmem:[#allocation2 + $0x32] sm:$0xff]
        %v2647 = vld [vmem:[#allocation2 + $0x3a] sm:$0xff]
        %v2648 = vld [vmem:[#allocation2 + $0x42] sm:$0xff]
        %v2649 = vld [vmem:[#allocation2 + $0x4a] sm:$0xff]
        %v2650 = vld [vmem:[#allocation2 + $0x52] sm:$0xff]
        %v2651 = vld [vmem:[#allocation2 + $0x5a] sm:$0xff]
        %v2652 = vld [vmem:[#allocation2 + $0x62] sm:$0xff]
        %v2653 = vld [vmem:[#allocation2 + $0x6a] sm:$0xff]
        %v2654 = vld [vmem:[#allocation2 + $0x72] sm:$0x3f]
        %v2655 = vld [vmem:[#allocation7 + $0x180] sm:$0xff]
        %v2656 = vld [vmem:[#allocation7 + $0x188] sm:$0xff]
        %v2657 = vld [vmem:[#allocation7 + $0x190] sm:$0xff]
        %v2658 = vld [vmem:[#allocation7 + $0x198] sm:$0xff]
        %v2659 = vld [vmem:[#allocation7 + $0x1a0] sm:$0xff]
        %v2660 = vld [vmem:[#allocation7 + $0x1a8] sm:$0xff]
        %v2661 = vld [vmem:[#allocation7 + $0x1b0] sm:$0xff]
        %v2662 = vld [vmem:[#allocation7 + $0x1b8] sm:$0xff]
        %v2663 = vld [vmem:[#allocation7 + $0x1c0] sm:$0xff]
        %v2664 = vld [vmem:[#allocation7 + $0x1c8] sm:$0xff]
        %v2665 = vld [vmem:[#allocation7 + $0x1d0] sm:$0xff]
        %v2666 = vld [vmem:[#allocation7 + $0x1d8] sm:$0xff]
        %v2667 = vld [vmem:[#allocation7 + $0x1e0] sm:$0xff]
        %v2668 = vld [vmem:[#allocation7 + $0x1e8] sm:$0xff]
        %v2669 = vld [vmem:[#allocation7 + $0x1f0] sm:$0xff]
        %v2670 = vld [vmem:[#allocation7 + $0x1f8] sm:$0xff]
        %v2671 = vld [vmem:[#allocation7 + $0x200] sm:$0xff]
        %v2672 = vld [vmem:[#allocation7 + $0x208] sm:$0xff]
        %v2673 = vld [vmem:[#allocation7 + $0x210] sm:$0xff]
        %v2674 = vld [vmem:[#allocation7 + $0x218] sm:$0xff]
        %v2675 = vld [vmem:[#allocation7 + $0x220] sm:$0xff]
        %v2676 = vld [vmem:[#allocation7 + $0x228] sm:$0xff]
        %v2677 = vld [vmem:[#allocation7 + $0x230] sm:$0xff]
        %v2678 = vld [vmem:[#allocation7 + $0x238] sm:$0xff]
        %v2680 = vsel %vm2126, %v2640, 0
        %v2683 = vsel %vm2126, %v2641, 0
        %v2686 = vsel %vm2126, %v2642, 0
        %v2689 = vsel %vm2126, %v2643, 0
        %v2692 = vsel %vm2126, %v2644, 0
        %v2695 = vsel %vm2126, %v2645, 0
        %v2698 = vsel %vm2126, %v2646, 0
        %v2701 = vsel %vm2126, %v2647, 0
        %v2704 = vsel %vm2126, %v2648, 0
        %v2707 = vsel %vm2126, %v2649, 0
        %v2710 = vsel %vm2126, %v2650, 0
        %v2713 = vsel %vm2126, %v2651, 0
        %v2716 = vsel %vm2126, %v2652, 0
        %v2719 = vsel %vm2126, %v2653, 0
        %v2722 = vsel %vm2126, %v2654, 0
        %2724 = vmatpush.msra.mxu0 0.0
        %2725 = vmatpush.msra.mxu0 0.0
        %2726 = vmatpush.msra.mxu0 0.0
        %2727 = vmatpush.msra.mxu0 0.0
        %2728 = vmatpush.msra.mxu0 %v2677
        %2729 = vmatpush.msra.mxu0 %v2675
        %2730 = vmatpush.msra.mxu0 %v2673
        %2731 = vmatpush.msra.mxu0 %v2671
        %2732 = vmatpush.msra.mxu0 %v2669
        %2733 = vmatpush.msra.mxu0 %v2667
        %2734 = vmatpush.msra.mxu0 %v2665
        %2735 = vmatpush.msra.mxu0 %v2663
        %2736 = vmatpush.msra.mxu0 %v2661
        %2737 = vmatpush.msra.mxu0 %v2659
        %2738 = vmatpush.msra.mxu0 %v2657
        %2739 = vmatpush.msra.mxu0 %v2655
        %2740 = vmatmul.f32.gmra.mxu0 %v2680
        %v2741 = vpop.f32.mrf.mxu0
        %v2742 = vadd.f32 0.0, %v2741
        %2743 = vmatmul.f32.gmra.mxu0 %v2683
        %v2744 = vpop.f32.mrf.mxu0
        %v2745 = vadd.f32 0.0, %v2744
        %2746 = vmatmul.f32.gmra.mxu0 %v2686
        %v2747 = vpop.f32.mrf.mxu0
        %v2748 = vadd.f32 0.0, %v2747
        %2749 = vmatmul.f32.gmra.mxu0 %v2689
        %v2750 = vpop.f32.mrf.mxu0
        %v2751 = vadd.f32 0.0, %v2750
        %2752 = vmatmul.f32.gmra.mxu0 %v2692
        %v2753 = vpop.f32.mrf.mxu0
        %v2754 = vadd.f32 0.0, %v2753
        %2755 = vmatmul.f32.gmra.mxu0 %v2695
        %v2756 = vpop.f32.mrf.mxu0
        %v2757 = vadd.f32 0.0, %v2756
        %2758 = vmatmul.f32.gmra.mxu0 %v2698
        %v2759 = vpop.f32.mrf.mxu0
        %v2760 = vadd.f32 0.0, %v2759
        %2761 = vmatmul.f32.gmra.mxu0 %v2701
        %v2762 = vpop.f32.mrf.mxu0
        %v2763 = vadd.f32 0.0, %v2762
        %2764 = vmatmul.f32.gmra.mxu0 %v2704
        %v2765 = vpop.f32.mrf.mxu0
        %v2766 = vadd.f32 0.0, %v2765
        %2767 = vmatmul.f32.gmra.mxu0 %v2707
        %v2768 = vpop.f32.mrf.mxu0
        %v2769 = vadd.f32 0.0, %v2768
        %2770 = vmatmul.f32.gmra.mxu0 %v2710
        %v2771 = vpop.f32.mrf.mxu0
        %v2772 = vadd.f32 0.0, %v2771
        %2773 = vmatmul.f32.gmra.mxu0 %v2713
        %v2774 = vpop.f32.mrf.mxu0
        %v2775 = vadd.f32 0.0, %v2774
        %2776 = vmatmul.f32.gmra.mxu0 %v2716
        %v2777 = vpop.f32.mrf.mxu0
        %v2778 = vadd.f32 0.0, %v2777
        %2779 = vmatmul.f32.gmra.mxu0 %v2719
        %v2780 = vpop.f32.mrf.mxu0
        %v2781 = vadd.f32 0.0, %v2780
        %2782 = vmatmul.f32.gmra.mxu0 %v2722
        %v2783 = vpop.f32.mrf.mxu0
        %v2784 = vadd.f32 0.0, %v2783
        %2785 = vdwg.mxu0
        %2786 = vmatpush.msra.mxu0 0.0
        %2787 = vmatpush.msra.mxu0 0.0
        %2788 = vmatpush.msra.mxu0 0.0
        %2789 = vmatpush.msra.mxu0 0.0
        %2790 = vmatpush.msra.mxu0 %v2678
        %2791 = vmatpush.msra.mxu0 %v2676
        %2792 = vmatpush.msra.mxu0 %v2674
        %2793 = vmatpush.msra.mxu0 %v2672
        %2794 = vmatpush.msra.mxu0 %v2670
        %2795 = vmatpush.msra.mxu0 %v2668
        %2796 = vmatpush.msra.mxu0 %v2666
        %2797 = vmatpush.msra.mxu0 %v2664
        %2798 = vmatpush.msra.mxu0 %v2662
        %2799 = vmatpush.msra.mxu0 %v2660
        %2800 = vmatpush.msra.mxu0 %v2658
        %2801 = vmatpush.msra.mxu0 %v2656
        %2802 = vmatmul.f32.gmra.mxu0 %v2680
        %v2803 = vpop.f32.mrf.mxu0
        %v2804 = vadd.f32 0.0, %v2803
        %2805 = vmatmul.f32.gmra.mxu0 %v2683
        %v2806 = vpop.f32.mrf.mxu0
        %v2807 = vadd.f32 0.0, %v2806
        %2808 = vmatmul.f32.gmra.mxu0 %v2686
        %v2809 = vpop.f32.mrf.mxu0
        %v2810 = vadd.f32 0.0, %v2809
        %2811 = vmatmul.f32.gmra.mxu0 %v2689
        %v2812 = vpop.f32.mrf.mxu0
        %v2813 = vadd.f32 0.0, %v2812
        %2814 = vmatmul.f32.gmra.mxu0 %v2692
        %v2815 = vpop.f32.mrf.mxu0
        %v2816 = vadd.f32 0.0, %v2815
        %2817 = vmatmul.f32.gmra.mxu0 %v2695
        %v2818 = vpop.f32.mrf.mxu0
        %v2819 = vadd.f32 0.0, %v2818
        %2820 = vmatmul.f32.gmra.mxu0 %v2698
        %v2821 = vpop.f32.mrf.mxu0
        %v2822 = vadd.f32 0.0, %v2821
        %2823 = vmatmul.f32.gmra.mxu0 %v2701
        %v2824 = vpop.f32.mrf.mxu0
        %v2825 = vadd.f32 0.0, %v2824
        %2826 = vmatmul.f32.gmra.mxu0 %v2704
        %v2827 = vpop.f32.mrf.mxu0
        %v2828 = vadd.f32 0.0, %v2827
        %2829 = vmatmul.f32.gmra.mxu0 %v2707
        %v2830 = vpop.f32.mrf.mxu0
        %v2831 = vadd.f32 0.0, %v2830
        %2832 = vmatmul.f32.gmra.mxu0 %v2710
        %v2833 = vpop.f32.mrf.mxu0
        %v2834 = vadd.f32 0.0, %v2833
        %2835 = vmatmul.f32.gmra.mxu0 %v2713
        %v2836 = vpop.f32.mrf.mxu0
        %v2837 = vadd.f32 0.0, %v2836
        %2838 = vmatmul.f32.gmra.mxu0 %v2716
        %v2839 = vpop.f32.mrf.mxu0
        %v2840 = vadd.f32 0.0, %v2839
        %2841 = vmatmul.f32.gmra.mxu0 %v2719
        %v2842 = vpop.f32.mrf.mxu0
        %v2843 = vadd.f32 0.0, %v2842
        %2844 = vmatmul.f32.gmra.mxu0 %v2722
        %v2845 = vpop.f32.mrf.mxu0
        %v2846 = vadd.f32 0.0, %v2845
        %2847 = vdwg.mxu0
        %v2848 = vadd.f32 %v2610, %v2742
        %v2849 = vadd.f32 %v2611, %v2804
        %v2850 = vadd.f32 %v2612, %v2745
        %v2851 = vadd.f32 %v2613, %v2807
        %v2852 = vadd.f32 %v2614, %v2748
        %v2853 = vadd.f32 %v2615, %v2810
        %v2854 = vadd.f32 %v2616, %v2751
        %v2855 = vadd.f32 %v2617, %v2813
        %v2856 = vadd.f32 %v2618, %v2754
        %v2857 = vadd.f32 %v2619, %v2816
        %v2858 = vadd.f32 %v2620, %v2757
        %v2859 = vadd.f32 %v2621, %v2819
        %v2860 = vadd.f32 %v2622, %v2760
        %v2861 = vadd.f32 %v2623, %v2822
        %v2862 = vadd.f32 %v2624, %v2763
        %v2863 = vadd.f32 %v2625, %v2825
        %v2864 = vadd.f32 %v2626, %v2766
        %v2865 = vadd.f32 %v2627, %v2828
        %v2866 = vadd.f32 %v2628, %v2769
        %v2867 = vadd.f32 %v2629, %v2831
        %v2868 = vadd.f32 %v2630, %v2772
        %v2869 = vadd.f32 %v2631, %v2834
        %v2870 = vadd.f32 %v2632, %v2775
        %v2871 = vadd.f32 %v2633, %v2837
        %v2872 = vadd.f32 %v2634, %v2778
        %v2873 = vadd.f32 %v2635, %v2840
        %v2874 = vadd.f32 %v2636, %v2781
        %v2875 = vadd.f32 %v2637, %v2843
        %v2876 = vadd.f32 %v2638, %v2784
        %v2877 = vadd.f32 %v2639, %v2846
        %v2878 = vmax.f32 %v2848, %v2849
        %v2879 = vmax.f32 %v2850, %v2851
        %v2880 = vmax.f32 %v2852, %v2853
        %v2881 = vmax.f32 %v2854, %v2855
        %v2882 = vmax.f32 %v2856, %v2857
        %v2883 = vmax.f32 %v2858, %v2859
        %v2884 = vmax.f32 %v2860, %v2861
        %v2885 = vmax.f32 %v2862, %v2863
        %v2886 = vmax.f32 %v2864, %v2865
        %v2887 = vmax.f32 %v2866, %v2867
        %v2888 = vmax.f32 %v2868, %v2869
        %v2889 = vmax.f32 %v2870, %v2871
        %v2890 = vmax.f32 %v2872, %v2873
        %v2891 = vmax.f32 %v2874, %v2875
        %v2892 = vmax.f32 %v2876, %v2877
        %v2893 = vld [vmem:[#allocation13] sm:$0xff]
        %v2894 = vld [vmem:[#allocation13 + $0x8] sm:$0xff]
        %v2895 = vld [vmem:[#allocation13 + $0x10] sm:$0xff]
        %v2896 = vld [vmem:[#allocation13 + $0x18] sm:$0xff]
        %v2897 = vld [vmem:[#allocation13 + $0x20] sm:$0xff]
        %v2898 = vld [vmem:[#allocation13 + $0x28] sm:$0xff]
        %v2899 = vld [vmem:[#allocation13 + $0x30] sm:$0xff]
        %v2900 = vld [vmem:[#allocation13 + $0x38] sm:$0x7]
        %vm2901 = vcmask 965632
        %v2903 = vsel %vm2901, %v2893, 0
        %v2906 = vsel %vm2901, %v2894, 0
        %v2909 = vsel %vm2901, %v2895, 0
        %v2912 = vsel %vm2901, %v2896, 0
        %v2915 = vsel %vm2901, %v2897, 0
        %v2918 = vsel %vm2901, %v2898, 0
        %v2921 = vsel %vm2901, %v2899, 0
        %v2924 = vsel %vm2901, %v2900, 0
        %vm2926 = vcmask 1045504
        %v2928 = vsel %vm2926, %v2892, 0
        %2930 = vmatpush.msra.mxu0 0.0
        %2931 = vmatpush.msra.mxu0 %v2928
        %2932 = vmatpush.msra.mxu0 %v2891
        %2933 = vmatpush.msra.mxu0 %v2890
        %2934 = vmatpush.msra.mxu0 %v2889
        %2935 = vmatpush.msra.mxu0 %v2888
        %2936 = vmatpush.msra.mxu0 %v2887
        %2937 = vmatpush.msra.mxu0 %v2886
        %2938 = vmatpush.msra.mxu0 %v2885
        %2939 = vmatpush.msra.mxu0 %v2884
        %2940 = vmatpush.msra.mxu0 %v2883
        %2941 = vmatpush.msra.mxu0 %v2882
        %2942 = vmatpush.msra.mxu0 %v2881
        %2943 = vmatpush.msra.mxu0 %v2880
        %2944 = vmatpush.msra.mxu0 %v2879
        %2945 = vmatpush.msra.mxu0 %v2878
        %2946 = vmatmul.f32.gmra.mxu0 %v2903
        %v2947 = vpop.f32.mrf.mxu0
        %v2948 = vadd.f32 0.0, %v2947
        %2949 = vmatmul.f32.gmra.mxu0 %v2906
        %v2950 = vpop.f32.mrf.mxu0
        %v2951 = vadd.f32 0.0, %v2950
        %2952 = vmatmul.f32.gmra.mxu0 %v2909
        %v2953 = vpop.f32.mrf.mxu0
        %v2954 = vadd.f32 0.0, %v2953
        %2955 = vmatmul.f32.gmra.mxu0 %v2912
        %v2956 = vpop.f32.mrf.mxu0
        %v2957 = vadd.f32 0.0, %v2956
        %2958 = vmatmul.f32.gmra.mxu0 %v2915
        %v2959 = vpop.f32.mrf.mxu0
        %v2960 = vadd.f32 0.0, %v2959
        %2961 = vmatmul.f32.gmra.mxu0 %v2918
        %v2962 = vpop.f32.mrf.mxu0
        %v2963 = vadd.f32 0.0, %v2962
        %2964 = vmatmul.f32.gmra.mxu0 %v2921
        %v2965 = vpop.f32.mrf.mxu0
        %v2966 = vadd.f32 0.0, %v2965
        %2967 = vmatmul.f32.gmra.mxu0 %v2924
        %v2968 = vpop.f32.mrf.mxu0
        %v2969 = vadd.f32 0.0, %v2968
        %2970 = vdwg.mxu0
        %v2971 = vld [vmem:[#allocation14] sm:$0xff]
        %v2972 = vld [vmem:[#allocation14 + $0x8] sm:$0xff]
        %v2973 = vld [vmem:[#allocation14 + $0x10] sm:$0xff]
        %v2974 = vld [vmem:[#allocation14 + $0x18] sm:$0xff]
        %v2975 = vld [vmem:[#allocation14 + $0x20] sm:$0xff]
        %v2976 = vld [vmem:[#allocation14 + $0x28] sm:$0xff]
        %v2977 = vld [vmem:[#allocation14 + $0x30] sm:$0xff]
        %v2978 = vld [vmem:[#allocation14 + $0x38] sm:$0x7]
        %v2980 = vsel %vm2901, %v2971, 0
        %v2983 = vsel %vm2901, %v2972, 0
        %v2986 = vsel %vm2901, %v2973, 0
        %v2989 = vsel %vm2901, %v2974, 0
        %v2992 = vsel %vm2901, %v2975, 0
        %v2995 = vsel %vm2901, %v2976, 0
        %v2998 = vsel %vm2901, %v2977, 0
        %v3001 = vsel %vm2901, %v2978, 0
        %3003 = vmatpush.msra.mxu0 0.0
        %3004 = vmatpush.msra.mxu0 %v2928
        %3005 = vmatpush.msra.mxu0 %v2891
        %3006 = vmatpush.msra.mxu0 %v2890
        %3007 = vmatpush.msra.mxu0 %v2889
        %3008 = vmatpush.msra.mxu0 %v2888
        %3009 = vmatpush.msra.mxu0 %v2887
        %3010 = vmatpush.msra.mxu0 %v2886
        %3011 = vmatpush.msra.mxu0 %v2885
        %3012 = vmatpush.msra.mxu0 %v2884
        %3013 = vmatpush.msra.mxu0 %v2883
        %3014 = vmatpush.msra.mxu0 %v2882
        %3015 = vmatpush.msra.mxu0 %v2881
        %3016 = vmatpush.msra.mxu0 %v2880
        %3017 = vmatpush.msra.mxu0 %v2879
        %3018 = vmatpush.msra.mxu0 %v2878
        %3019 = vmatmul.f32.gmra.mxu0 %v2980
        %v3020 = vpop.f32.mrf.mxu0
        %v3021 = vadd.f32 0.0, %v3020
        %3022 = vmatmul.f32.gmra.mxu0 %v2983
        %v3023 = vpop.f32.mrf.mxu0
        %v3024 = vadd.f32 0.0, %v3023
        %3025 = vmatmul.f32.gmra.mxu0 %v2986
        %v3026 = vpop.f32.mrf.mxu0
        %v3027 = vadd.f32 0.0, %v3026
        %3028 = vmatmul.f32.gmra.mxu0 %v2989
        %v3029 = vpop.f32.mrf.mxu0
        %v3030 = vadd.f32 0.0, %v3029
        %3031 = vmatmul.f32.gmra.mxu0 %v2992
        %v3032 = vpop.f32.mrf.mxu0
        %v3033 = vadd.f32 0.0, %v3032
        %3034 = vmatmul.f32.gmra.mxu0 %v2995
        %v3035 = vpop.f32.mrf.mxu0
        %v3036 = vadd.f32 0.0, %v3035
        %3037 = vmatmul.f32.gmra.mxu0 %v2998
        %v3038 = vpop.f32.mrf.mxu0
        %v3039 = vadd.f32 0.0, %v3038
        %3040 = vmatmul.f32.gmra.mxu0 %v3001
        %v3041 = vpop.f32.mrf.mxu0
        %v3042 = vadd.f32 0.0, %v3041
        %3043 = vdwg.mxu0
        %v3044 = vmax.f32 %v2948, %v3021
        %v3045 = vmax.f32 %v2951, %v3024
        %v3046 = vmax.f32 %v2954, %v3027
        %v3047 = vmax.f32 %v2957, %v3030
        %v3048 = vmax.f32 %v2960, %v3033
        %v3049 = vmax.f32 %v2963, %v3036
        %v3050 = vmax.f32 %v2966, %v3039
        %v3051 = vmax.f32 %v2969, %v3042
        %v3052 = vmax.f32 %v3044, 0.0
        %v3053 = vmax.f32 %v3045, 0.0
        %v3054 = vmax.f32 %v3046, 0.0
        %v3055 = vmax.f32 %v3047, 0.0
        %v3056 = vmax.f32 %v3048, 0.0
        %v3057 = vmax.f32 %v3049, 0.0
        %v3058 = vmax.f32 %v3050, 0.0
        %v3059 = vmax.f32 %v3051, 0.0
        %3060 = vst.msk [vmem:[%s461] sm:$0xff] %vm2126, %v3052
        %3061 = vst.msk [vmem:[%s461 + $0x8] sm:$0xff] %vm2126, %v3053
        %3062 = vst.msk [vmem:[%s461 + $0x10] sm:$0xff] %vm2126, %v3054
        %3063 = vst.msk [vmem:[%s461 + $0x18] sm:$0xff] %vm2126, %v3055
        %3064 = vst.msk [vmem:[%s461 + $0x20] sm:$0xff] %vm2126, %v3056
        %3065 = vst.msk [vmem:[%s461 + $0x28] sm:$0xff] %vm2126, %v3057
        %3066 = vst.msk [vmem:[%s461 + $0x30] sm:$0xff] %vm2126, %v3058
        %vm3067 = vcmask 780288
        %3068 = vst.msk [vmem:[%s461 + $0x38] sm:$0x7] %vm3067, %v3059
        %p3069 = scmp.lt.s32.totalorder %s25, 1
        %s3070 = scalar_select %p3069, %s25, 1
        %s3071 = smul.addr %s3070, 8
        %s3072 = smul.addr %s3071, 8
        %s3073 = scalar_lea.vmem %s9, %s3072
        // Predicated region
        $region89: #{chinese_tones_cnn_forward.2} parent=55 // pred_check
          %p3074 = pneg %p237
        $region90: #{chinese_tones_cnn_forward.2} parent=55 // pred_check_branch
          %3076 = sbr.rel (%p3074) target = $region92
        $region91: #{chinese_tones_cnn_forward.2} parent=55 // pred_region
          _
        $region92: #{chinese_tones_cnn_forward.2} parent=55 // pred_fallthru
          _
      $region56: #{chinese_tones_cnn_forward.2} parent=5 // pred_fallthru
        _
      %p3077 = scmp.le.s32.totalorder 2, %s20
      // Predicated region
      $region93: #{chinese_tones_cnn_forward.2} parent=5 // pred_check
        %p3078 = pneg %p3077
      $region94: #{chinese_tones_cnn_forward.2} parent=5 // pred_check_branch
        %3080 = sbr.rel (%p3078) target = $region96
      $region95: #{chinese_tones_cnn_forward.2} parent=5 // pred_region
        %s3081 = ssub.s32 %s20, 2
        // Predicated region
        $region97: #{chinese_tones_cnn_forward.2} parent=95 // pred_check
          %p3082 = pneg %p243
        $region98: #{chinese_tones_cnn_forward.2} parent=95 // pred_check_branch
          %3084 = sbr.rel (%p3082) target = $region100
        $region99: #{chinese_tones_cnn_forward.2} parent=95 // pred_region
          %p3085 = scmp.lt.s32.totalorder %s26, 1
          %s3086 = scalar_select %p3085, %s26, 1
          %s3087 = smul.addr %s3086, 8
          %s3088 = smul.addr %s3087, 8
          %s3089 = scalar_lea.vmem %s9, %s3088
        $region100: #{chinese_tones_cnn_forward.2} parent=95 // pred_fallthru
          _
      $region96: #{chinese_tones_cnn_forward.2} parent=5 // pred_fallthru
        _
    $region6: #{chinese_tones_cnn_forward.2} parent=1 // loop_footer
      %s24 = sadd.s32 1, %s20
    $region7: #{chinese_tones_cnn_forward.2} parent=1 // loop_footer_branch
      %19 = sbr.rel target = $region3
    $region8: #{chinese_tones_cnn_forward.2} parent=1 // loop_exit
      _
    %3090 = vsyncpa [#allocation4], 1
    %s3091 = scalar_lea.sflag [#allocation4], 1
    %3092 = vsyncpa %s3091, 1
    %3093 = vsyncpa [#allocation6], 1
    %3094 = vsyncpa [#allocation9], 1
    %3095 = vsyncpa [#allocation12], 1
    %3096 = vsyncpa [#allocation15], 1

// kernel: chinese_tones_cnn_forward.3
$region0: #{chinese_tones_cnn_forward.3}
  #allocation0 [shape = 'u32[]', space=smem, size = 0x4, offset = 0x4, fixed_abs, tag = 'smem constant byte address 0x4 - core index']
  #allocation1 [shape = 'u32[72,128]{1,0:T(1,128)}', space=vmem, size = 0x9000, scoped, tag = 'internal scratch']
  %s0 = inlined_call_operand.vmem [shape: bf16[2,5664], index: 0, kind: input, shape index: {}]
  %s1 = inlined_call_operand.hbm [shape: bf16[5664,128], index: 1, kind: input, shape index: {}]
  %s2 = inlined_call_operand.hbm [shape: f32[1,128], index: 2, kind: input, shape index: {}]
  %s3 = inlined_call_operand.hbm [shape: f32[128,128], index: 3, kind: input, shape index: {}]
  %s4 = inlined_call_operand.hbm [shape: f32[1,128], index: 4, kind: input, shape index: {}]
  %s5 = inlined_call_operand.hbm [shape: f32[2,128], index: 5, kind: output, shape index: {}]
  %s6 = sld [smem:[#allocation0]]
  $region46: #{chinese_tones_cnn_forward.3} parent=0
    _
  %s8 = ssub.s32 1, %s6
  %s9 = scalar_select 0, %s8, %s6
  $region1: #{chinese_tones_cnn_forward.3} parent=0
    #allocation2 [shape = 'u8[1449984]{0}', space=vmem, size = 0x162000, scoped, tag = 'input window, operand 1, single buffered']
    #allocation3 [shape = 's32[1]{0}', space=sflag, size = 0x4, scoped, tag = 'scoped memory for chinese_tones_cnn_forward.3']
    #allocation4 [shape = 's32[1]{0}', space=sflag, size = 0x4, scoped, tag = 'scoped memory for chinese_tones_cnn_forward.3']
    #allocation5 [shape = 'u8[512]{0}', space=vmem, size = 0x400, scoped, tag = 'input window, operand 2, single buffered']
    #allocation6 [shape = 's32[1]{0}', space=sflag, size = 0x4, scoped, tag = 'scoped memory for chinese_tones_cnn_forward.3']
    #allocation7 [shape = 'u8[65536]{0}', space=vmem, size = 0x10000, scoped, tag = 'input window, operand 3, single buffered']
    #allocation8 [shape = 'u8[512]{0}', space=vmem, size = 0x400, scoped, tag = 'input window, operand 4, single buffered']
    #allocation9 [shape = 's32[1]{0}', space=sflag, size = 0x4, scoped, tag = 'scoped memory for chinese_tones_cnn_forward.3']
    #allocation10 [shape = 'u8[1024]{0}', space=vmem, size = 0x400, scoped, tag = 'output window, operand 0, single buffered']
    %10 = vsyncpa [#allocation3], 0
    %11 = vsyncpa [#allocation6], 0
    %12 = vsyncpa [#allocation9], 0
    %13 = vsyncpa [#allocation4], 0
    // Predicated region
    $region2: #{chinese_tones_cnn_forward.3} parent=1 // pred_check
      _
    $region3: #{chinese_tones_cnn_forward.3} parent=1 // pred_check_branch
      %15 = sbr.rel (0) target = $region5
    $region4: #{chinese_tones_cnn_forward.3} parent=1 // pred_region
      _
    $region5: #{chinese_tones_cnn_forward.3} parent=1 // pred_fallthru
      _
    // Predicated region
    $region6: #{chinese_tones_cnn_forward.3} parent=1 // pred_check
      _
    $region7: #{chinese_tones_cnn_forward.3} parent=1 // pred_check_branch
      %17 = sbr.rel (0) target = $region9
    $region8: #{chinese_tones_cnn_forward.3} parent=1 // pred_region
      %19 = vsyncadd [#allocation3], 0
      %s20 = sshll.u32 %s1, 4
      %s21 = int_to_ptr.hbm [resolvable:$true] %s20
      %s22 = sshll.u32 [#allocation2], 4
      %s23 = int_to_ptr.vmem [resolvable:$true] %s22
      %28 = dma.hbm_to_vmem [thread:$0]  %s21, 45312, %s23, [#allocation3], 64, 64, 4
    $region9: #{chinese_tones_cnn_forward.3} parent=1 // pred_fallthru
      _
    // Predicated region
    $region10: #{chinese_tones_cnn_forward.3} parent=1 // pred_check
      _
    $region11: #{chinese_tones_cnn_forward.3} parent=1 // pred_check_branch
      %30 = sbr.rel (0) target = $region13
    $region12: #{chinese_tones_cnn_forward.3} parent=1 // pred_region
      %32 = vsyncadd [#allocation6], 0
      %s34 = sshll.u32 %s2, 4
      %s35 = int_to_ptr.hbm [resolvable:$true] %s34
      %s36 = sshll.u32 [#allocation5], 4
      %s37 = int_to_ptr.vmem [resolvable:$true] %s36
      %39 = dma.hbm_to_vmem [thread:$0]  %s35, 16, %s37, [#allocation6]
    $region13: #{chinese_tones_cnn_forward.3} parent=1 // pred_fallthru
      _
    // Predicated region
    $region14: #{chinese_tones_cnn_forward.3} parent=1 // pred_check
      _
    $region15: #{chinese_tones_cnn_forward.3} parent=1 // pred_check_branch
      %41 = sbr.rel (0) target = $region17
    $region16: #{chinese_tones_cnn_forward.3} parent=1 // pred_region
      %43 = vsyncadd [#allocation6], 0
      %s44 = sshll.u32 %s3, 4
      %s45 = int_to_ptr.hbm [resolvable:$true] %s44
      %s46 = sshll.u32 [#allocation7], 4
      %s47 = int_to_ptr.vmem [resolvable:$true] %s46
      %52 = dma.hbm_to_vmem [thread:$0]  %s45, 2048, %s47, [#allocation6], 128, 128, 8
    $region17: #{chinese_tones_cnn_forward.3} parent=1 // pred_fallthru
      _
    // Predicated region
    $region18: #{chinese_tones_cnn_forward.3} parent=1 // pred_check
      _
    $region19: #{chinese_tones_cnn_forward.3} parent=1 // pred_check_branch
      %54 = sbr.rel (0) target = $region21
    $region20: #{chinese_tones_cnn_forward.3} parent=1 // pred_region
      %56 = vsyncadd [#allocation9], 0
      %s58 = sshll.u32 %s4, 4
      %s59 = int_to_ptr.hbm [resolvable:$true] %s58
      %s60 = sshll.u32 [#allocation8], 4
      %s61 = int_to_ptr.vmem [resolvable:$true] %s60
      %63 = dma.hbm_to_vmem [thread:$0]  %s59, 16, %s61, [#allocation9]
    $region21: #{chinese_tones_cnn_forward.3} parent=1 // pred_fallthru
      _
    // Predicated region
    $region22: #{chinese_tones_cnn_forward.3} parent=1 // pred_check
      _
    $region23: #{chinese_tones_cnn_forward.3} parent=1 // pred_check_branch
      %65 = sbr.rel (0) target = $region25
    $region24: #{chinese_tones_cnn_forward.3} parent=1 // pred_region
      %67 = dma.done [#allocation3], 45312
    $region25: #{chinese_tones_cnn_forward.3} parent=1 // pred_fallthru
      _
    // Predicated region
    $region26: #{chinese_tones_cnn_forward.3} parent=1 // pred_check
      _
    $region27: #{chinese_tones_cnn_forward.3} parent=1 // pred_check_branch
      %69 = sbr.rel (0) target = $region29
    $region28: #{chinese_tones_cnn_forward.3} parent=1 // pred_region
      %71 = dma.done [#allocation6], 16
    $region29: #{chinese_tones_cnn_forward.3} parent=1 // pred_fallthru
      _
    // Predicated region
    $region30: #{chinese_tones_cnn_forward.3} parent=1 // pred_check
      _
    $region31: #{chinese_tones_cnn_forward.3} parent=1 // pred_check_branch
      %73 = sbr.rel (0) target = $region33
    $region32: #{chinese_tones_cnn_forward.3} parent=1 // pred_region
      %75 = dma.done [#allocation6], 2048
    $region33: #{chinese_tones_cnn_forward.3} parent=1 // pred_fallthru
      _
    // Predicated region
    $region34: #{chinese_tones_cnn_forward.3} parent=1 // pred_check
      _
    $region35: #{chinese_tones_cnn_forward.3} parent=1 // pred_check_branch
      %77 = sbr.rel (0) target = $region37
    $region36: #{chinese_tones_cnn_forward.3} parent=1 // pred_region
      %79 = dma.done [#allocation9], 16
    $region37: #{chinese_tones_cnn_forward.3} parent=1 // pred_fallthru
      _
    %v81 = vld [vmem:[%s0] sm:$0xff]
    %v82 = vld [vmem:[%s0 + $0x8] sm:$0xff]
    %v83 = vld [vmem:[%s0 + $0x10] sm:$0xff]
    %v84 = vld [vmem:[%s0 + $0x18] sm:$0xff]
    %v85 = vld [vmem:[%s0 + $0x20] sm:$0xff]
    %v86 = vld [vmem:[%s0 + $0x28] sm:$0x1f]
    %v87 = vld [vmem:[#allocation2] sm:$0xf]
    %v88 = vld [vmem:[#allocation2 + $0x4] sm:$0xf]
    %v89 = vld [vmem:[#allocation2 + $0x8] sm:$0xf]
    %v90 = vld [vmem:[#allocation2 + $0xc] sm:$0xf]
    %v91 = vld [vmem:[#allocation2 + $0x10] sm:$0xf]
    %v92 = vld [vmem:[#allocation2 + $0x14] sm:$0xf]
    %v93 = vld [vmem:[#allocation2 + $0x18] sm:$0xf]
    %v94 = vld [vmem:[#allocation2 + $0x1c] sm:$0xf]
    %v95 = vld [vmem:[#allocation2 + $0x20] sm:$0xf]
    %v96 = vld [vmem:[#allocation2 + $0x24] sm:$0xf]
    %v97 = vld [vmem:[#allocation2 + $0x28] sm:$0xf]
    %v98 = vld [vmem:[#allocation2 + $0x2c] sm:$0xf]
    %v99 = vld [vmem:[#allocation2 + $0x30] sm:$0xf]
    %v100 = vld [vmem:[#allocation2 + $0x34] sm:$0xf]
    %v101 = vld [vmem:[#allocation2 + $0x38] sm:$0xf]
    %v102 = vld [vmem:[#allocation2 + $0x3c] sm:$0xf]
    %v103 = vld [vmem:[#allocation2 + $0x40] sm:$0xf]
    %v104 = vld [vmem:[#allocation2 + $0x44] sm:$0xf]
    %v105 = vld [vmem:[#allocation2 + $0x48] sm:$0xf]
    %v106 = vld [vmem:[#allocation2 + $0x4c] sm:$0xf]
    %v107 = vld [vmem:[#allocation2 + $0x50] sm:$0xf]
    %v108 = vld [vmem:[#allocation2 + $0x54] sm:$0xf]
    %v109 = vld [vmem:[#allocation2 + $0x58] sm:$0xf]
    %v110 = vld [vmem:[#allocation2 + $0x5c] sm:$0xf]
    %v111 = vld [vmem:[#allocation2 + $0x60] sm:$0xf]
    %v112 = vld [vmem:[#allocation2 + $0x64] sm:$0xf]
    %v113 = vld [vmem:[#allocation2 + $0x68] sm:$0xf]
    %v114 = vld [vmem:[#allocation2 + $0x6c] sm:$0xf]
    %v115 = vld [vmem:[#allocation2 + $0x70] sm:$0xf]
    %v116 = vld [vmem:[#allocation2 + $0x74] sm:$0xf]
    %v117 = vld [vmem:[#allocation2 + $0x78] sm:$0xf]
    %v118 = vld [vmem:[#allocation2 + $0x7c] sm:$0xf]
    %v119 = vld [vmem:[#allocation2 + $0x80] sm:$0xf]
    %v120 = vld [vmem:[#allocation2 + $0x84] sm:$0xf]
    %v121 = vld [vmem:[#allocation2 + $0x88] sm:$0xf]
    %v122 = vld [vmem:[#allocation2 + $0x8c] sm:$0xf]
    %v123 = vld [vmem:[#allocation2 + $0x90] sm:$0xf]
    %v124 = vld [vmem:[#allocation2 + $0x94] sm:$0xf]
    %v125 = vld [vmem:[#allocation2 + $0x98] sm:$0xf]
    %v126 = vld [vmem:[#allocation2 + $0x9c] sm:$0xf]
    %v127 = vld [vmem:[#allocation2 + $0xa0] sm:$0xf]
    %v128 = vld [vmem:[#allocation2 + $0xa4] sm:$0xf]
    %v129 = vld [vmem:[#allocation2 + $0xa8] sm:$0xf]
    %v130 = vld [vmem:[#allocation2 + $0xac] sm:$0xf]
    %v131 = vld [vmem:[#allocation2 + $0xb0] sm:$0xf]
    %v132 = vld [vmem:[#allocation2 + $0xb4] sm:$0xf]
    %v133 = vld [vmem:[#allocation2 + $0xb8] sm:$0xf]
    %v134 = vld [vmem:[#allocation2 + $0xbc] sm:$0xf]
    %v135 = vld [vmem:[#allocation2 + $0xc0] sm:$0xf]
    %v136 = vld [vmem:[#allocation2 + $0xc4] sm:$0xf]
    %v137 = vld [vmem:[#allocation2 + $0xc8] sm:$0xf]
    %v138 = vld [vmem:[#allocation2 + $0xcc] sm:$0xf]
    %v139 = vld [vmem:[#allocation2 + $0xd0] sm:$0xf]
    %v140 = vld [vmem:[#allocation2 + $0xd4] sm:$0xf]
    %v141 = vld [vmem:[#allocation2 + $0xd8] sm:$0xf]
    %v142 = vld [vmem:[#allocation2 + $0xdc] sm:$0xf]
    %v143 = vld [vmem:[#allocation2 + $0xe0] sm:$0xf]
    %v144 = vld [vmem:[#allocation2 + $0xe4] sm:$0xf]
    %v145 = vld [vmem:[#allocation2 + $0xe8] sm:$0xf]
    %v146 = vld [vmem:[#allocation2 + $0xec] sm:$0xf]
    %v147 = vld [vmem:[#allocation2 + $0xf0] sm:$0xf]
    %v148 = vld [vmem:[#allocation2 + $0xf4] sm:$0xf]
    %v149 = vld [vmem:[#allocation2 + $0xf8] sm:$0xf]
    %v150 = vld [vmem:[#allocation2 + $0xfc] sm:$0xf]
    %v151 = vld [vmem:[#allocation2 + $0x100] sm:$0xf]
    %v152 = vld [vmem:[#allocation2 + $0x104] sm:$0xf]
    %v153 = vld [vmem:[#allocation2 + $0x108] sm:$0xf]
    %v154 = vld [vmem:[#allocation2 + $0x10c] sm:$0xf]
    %v155 = vld [vmem:[#allocation2 + $0x110] sm:$0xf]
    %v156 = vld [vmem:[#allocation2 + $0x114] sm:$0xf]
    %v157 = vld [vmem:[#allocation2 + $0x118] sm:$0xf]
    %v158 = vld [vmem:[#allocation2 + $0x11c] sm:$0xf]
    %v159 = vld [vmem:[#allocation2 + $0x120] sm:$0xf]
    %v160 = vld [vmem:[#allocation2 + $0x124] sm:$0xf]
    %v161 = vld [vmem:[#allocation2 + $0x128] sm:$0xf]
    %v162 = vld [vmem:[#allocation2 + $0x12c] sm:$0xf]
    %v163 = vld [vmem:[#allocation2 + $0x130] sm:$0xf]
    %v164 = vld [vmem:[#allocation2 + $0x134] sm:$0xf]
    %v165 = vld [vmem:[#allocation2 + $0x138] sm:$0xf]
    %v166 = vld [vmem:[#allocation2 + $0x13c] sm:$0xf]
    %v167 = vld [vmem:[#allocation2 + $0x140] sm:$0xf]
    %v168 = vld [vmem:[#allocation2 + $0x144] sm:$0xf]
    %v169 = vld [vmem:[#allocation2 + $0x148] sm:$0xf]
    %v170 = vld [vmem:[#allocation2 + $0x14c] sm:$0xf]
    %v171 = vld [vmem:[#allocation2 + $0x150] sm:$0xf]
    %v172 = vld [vmem:[#allocation2 + $0x154] sm:$0xf]
    %v173 = vld [vmem:[#allocation2 + $0x158] sm:$0xf]
    %v174 = vld [vmem:[#allocation2 + $0x15c] sm:$0xf]
    %v175 = vld [vmem:[#allocation2 + $0x160] sm:$0xf]
    %v176 = vld [vmem:[#allocation2 + $0x164] sm:$0xf]
    %v177 = vld [vmem:[#allocation2 + $0x168] sm:$0xf]
    %v178 = vld [vmem:[#allocation2 + $0x16c] sm:$0xf]
    %v179 = vld [vmem:[#allocation2 + $0x170] sm:$0xf]
    %v180 = vld [vmem:[#allocation2 + $0x174] sm:$0xf]
    %v181 = vld [vmem:[#allocation2 + $0x178] sm:$0xf]
    %v182 = vld [vmem:[#allocation2 + $0x17c] sm:$0xf]
    %v183 = vld [vmem:[#allocation2 + $0x180] sm:$0xf]
    %v184 = vld [vmem:[#allocation2 + $0x184] sm:$0xf]
    %v185 = vld [vmem:[#allocation2 + $0x188] sm:$0xf]
    %v186 = vld [vmem:[#allocation2 + $0x18c] sm:$0xf]
    %v187 = vld [vmem:[#allocation2 + $0x190] sm:$0xf]
    %v188 = vld [vmem:[#allocation2 + $0x194] sm:$0xf]
    %v189 = vld [vmem:[#allocation2 + $0x198] sm:$0xf]
    %v190 = vld [vmem:[#allocation2 + $0x19c] sm:$0xf]
    %v191 = vld [vmem:[#allocation2 + $0x1a0] sm:$0xf]
    %v192 = vld [vmem:[#allocation2 + $0x1a4] sm:$0xf]
    %v193 = vld [vmem:[#allocation2 + $0x1a8] sm:$0xf]
    %v194 = vld [vmem:[#allocation2 + $0x1ac] sm:$0xf]
    %v195 = vld [vmem:[#allocation2 + $0x1b0] sm:$0xf]
    %v196 = vld [vmem:[#allocation2 + $0x1b4] sm:$0xf]
    %v197 = vld [vmem:[#allocation2 + $0x1b8] sm:$0xf]
    %v198 = vld [vmem:[#allocation2 + $0x1bc] sm:$0xf]
    %v199 = vld [vmem:[#allocation2 + $0x1c0] sm:$0xf]
    %v200 = vld [vmem:[#allocation2 + $0x1c4] sm:$0xf]
    %v201 = vld [vmem:[#allocation2 + $0x1c8] sm:$0xf]
    %v202 = vld [vmem:[#allocation2 + $0x1cc] sm:$0xf]
    %v203 = vld [vmem:[#allocation2 + $0x1d0] sm:$0xf]
    %v204 = vld [vmem:[#allocation2 + $0x1d4] sm:$0xf]
    %v205 = vld [vmem:[#allocation2 + $0x1d8] sm:$0xf]
    %v206 = vld [vmem:[#allocation2 + $0x1dc] sm:$0xf]
    %v207 = vld [vmem:[#allocation2 + $0x1e0] sm:$0xf]
    %v208 = vld [vmem:[#allocation2 + $0x1e4] sm:$0xf]
    %v209 = vld [vmem:[#allocation2 + $0x1e8] sm:$0xf]
    %v210 = vld [vmem:[#allocation2 + $0x1ec] sm:$0xf]
    %v211 = vld [vmem:[#allocation2 + $0x1f0] sm:$0xf]
    %v212 = vld [vmem:[#allocation2 + $0x1f4] sm:$0xf]
    %v213 = vld [vmem:[#allocation2 + $0x1f8] sm:$0xf]
    %v214 = vld [vmem:[#allocation2 + $0x1fc] sm:$0xf]
    %v215 = vld [vmem:[#allocation2 + $0x200] sm:$0xf]
    %v216 = vld [vmem:[#allocation2 + $0x204] sm:$0xf]
    %v217 = vld [vmem:[#allocation2 + $0x208] sm:$0xf]
    %v218 = vld [vmem:[#allocation2 + $0x20c] sm:$0xf]
    %v219 = vld [vmem:[#allocation2 + $0x210] sm:$0xf]
    %v220 = vld [vmem:[#allocation2 + $0x214] sm:$0xf]
    %v221 = vld [vmem:[#allocation2 + $0x218] sm:$0xf]
    %v222 = vld [vmem:[#allocation2 + $0x21c] sm:$0xf]
    %v223 = vld [vmem:[#allocation2 + $0x220] sm:$0xf]
    %v224 = vld [vmem:[#allocation2 + $0x224] sm:$0xf]
    %v225 = vld [vmem:[#allocation2 + $0x228] sm:$0xf]
    %v226 = vld [vmem:[#allocation2 + $0x22c] sm:$0xf]
    %v227 = vld [vmem:[#allocation2 + $0x230] sm:$0xf]
    %v228 = vld [vmem:[#allocation2 + $0x234] sm:$0xf]
    %v229 = vld [vmem:[#allocation2 + $0x238] sm:$0xf]
    %v230 = vld [vmem:[#allocation2 + $0x23c] sm:$0xf]
    %v231 = vld [vmem:[#allocation2 + $0x240] sm:$0xf]
    %v232 = vld [vmem:[#allocation2 + $0x244] sm:$0xf]
    %v233 = vld [vmem:[#allocation2 + $0x248] sm:$0xf]
    %v234 = vld [vmem:[#allocation2 + $0x24c] sm:$0xf]
    %v235 = vld [vmem:[#allocation2 + $0x250] sm:$0xf]
    %v236 = vld [vmem:[#allocation2 + $0x254] sm:$0xf]
    %v237 = vld [vmem:[#allocation2 + $0x258] sm:$0xf]
    %v238 = vld [vmem:[#allocation2 + $0x25c] sm:$0xf]
    %v239 = vld [vmem:[#allocation2 + $0x260] sm:$0xf]
    %v240 = vld [vmem:[#allocation2 + $0x264] sm:$0xf]
    %v241 = vld [vmem:[#allocation2 + $0x268] sm:$0xf]
    %v242 = vld [vmem:[#allocation2 + $0x26c] sm:$0xf]
    %v243 = vld [vmem:[#allocation2 + $0x270] sm:$0xf]
    %v244 = vld [vmem:[#allocation2 + $0x274] sm:$0xf]
    %v245 = vld [vmem:[#allocation2 + $0x278] sm:$0xf]
    %v246 = vld [vmem:[#allocation2 + $0x27c] sm:$0xf]
    %v247 = vld [vmem:[#allocation2 + $0x280] sm:$0xf]
    %v248 = vld [vmem:[#allocation2 + $0x284] sm:$0xf]
    %v249 = vld [vmem:[#allocation2 + $0x288] sm:$0xf]
    %v250 = vld [vmem:[#allocation2 + $0x28c] sm:$0xf]
    %v251 = vld [vmem:[#allocation2 + $0x290] sm:$0xf]
    %v252 = vld [vmem:[#allocation2 + $0x294] sm:$0xf]
    %v253 = vld [vmem:[#allocation2 + $0x298] sm:$0xf]
    %v254 = vld [vmem:[#allocation2 + $0x29c] sm:$0xf]
    %v255 = vld [vmem:[#allocation2 + $0x2a0] sm:$0xf]
    %v256 = vld [vmem:[#allocation2 + $0x2a4] sm:$0xf]
    %v257 = vld [vmem:[#allocation2 + $0x2a8] sm:$0xf]
    %v258 = vld [vmem:[#allocation2 + $0x2ac] sm:$0xf]
    %v259 = vld [vmem:[#allocation2 + $0x2b0] sm:$0xf]
    %v260 = vld [vmem:[#allocation2 + $0x2b4] sm:$0xf]
    %v261 = vld [vmem:[#allocation2 + $0x2b8] sm:$0xf]
    %v262 = vld [vmem:[#allocation2 + $0x2bc] sm:$0xf]
    %v263 = vld [vmem:[#allocation2 + $0x2c0] sm:$0xf]
    %v264 = vld [vmem:[#allocation2 + $0x2c4] sm:$0xf]
    %v265 = vld [vmem:[#allocation2 + $0x2c8] sm:$0xf]
    %v266 = vld [vmem:[#allocation2 + $0x2cc] sm:$0xf]
    %v267 = vld [vmem:[#allocation2 + $0x2d0] sm:$0xf]
    %v268 = vld [vmem:[#allocation2 + $0x2d4] sm:$0xf]
    %v269 = vld [vmem:[#allocation2 + $0x2d8] sm:$0xf]
    %v270 = vld [vmem:[#allocation2 + $0x2dc] sm:$0xf]
    %v271 = vld [vmem:[#allocation2 + $0x2e0] sm:$0xf]
    %v272 = vld [vmem:[#allocation2 + $0x2e4] sm:$0xf]
    %v273 = vld [vmem:[#allocation2 + $0x2e8] sm:$0xf]
    %v274 = vld [vmem:[#allocation2 + $0x2ec] sm:$0xf]
    %v275 = vld [vmem:[#allocation2 + $0x2f0] sm:$0xf]
    %v276 = vld [vmem:[#allocation2 + $0x2f4] sm:$0xf]
    %v277 = vld [vmem:[#allocation2 + $0x2f8] sm:$0xf]
    %v278 = vld [vmem:[#allocation2 + $0x2fc] sm:$0xf]
    %v279 = vld [vmem:[#allocation2 + $0x300] sm:$0xf]
    %v280 = vld [vmem:[#allocation2 + $0x304] sm:$0xf]
    %v281 = vld [vmem:[#allocation2 + $0x308] sm:$0xf]
    %v282 = vld [vmem:[#allocation2 + $0x30c] sm:$0xf]
    %v283 = vld [vmem:[#allocation2 + $0x310] sm:$0xf]
    %v284 = vld [vmem:[#allocation2 + $0x314] sm:$0xf]
    %v285 = vld [vmem:[#allocation2 + $0x318] sm:$0xf]
    %v286 = vld [vmem:[#allocation2 + $0x31c] sm:$0xf]
    %v287 = vld [vmem:[#allocation2 + $0x320] sm:$0xf]
    %v288 = vld [vmem:[#allocation2 + $0x324] sm:$0xf]
    %v289 = vld [vmem:[#allocation2 + $0x328] sm:$0xf]
    %v290 = vld [vmem:[#allocation2 + $0x32c] sm:$0xf]
    %v291 = vld [vmem:[#allocation2 + $0x330] sm:$0xf]
    %v292 = vld [vmem:[#allocation2 + $0x334] sm:$0xf]
    %v293 = vld [vmem:[#allocation2 + $0x338] sm:$0xf]
    %v294 = vld [vmem:[#allocation2 + $0x33c] sm:$0xf]
    %v295 = vld [vmem:[#allocation2 + $0x340] sm:$0xf]
    %v296 = vld [vmem:[#allocation2 + $0x344] sm:$0xf]
    %v297 = vld [vmem:[#allocation2 + $0x348] sm:$0xf]
    %v298 = vld [vmem:[#allocation2 + $0x34c] sm:$0xf]
    %v299 = vld [vmem:[#allocation2 + $0x350] sm:$0xf]
    %v300 = vld [vmem:[#allocation2 + $0x354] sm:$0xf]
    %v301 = vld [vmem:[#allocation2 + $0x358] sm:$0xf]
    %v302 = vld [vmem:[#allocation2 + $0x35c] sm:$0xf]
    %v303 = vld [vmem:[#allocation2 + $0x360] sm:$0xf]
    %v304 = vld [vmem:[#allocation2 + $0x364] sm:$0xf]
    %v305 = vld [vmem:[#allocation2 + $0x368] sm:$0xf]
    %v306 = vld [vmem:[#allocation2 + $0x36c] sm:$0xf]
    %v307 = vld [vmem:[#allocation2 + $0x370] sm:$0xf]
    %v308 = vld [vmem:[#allocation2 + $0x374] sm:$0xf]
    %v309 = vld [vmem:[#allocation2 + $0x378] sm:$0xf]
    %v310 = vld [vmem:[#allocation2 + $0x37c] sm:$0xf]
    %v311 = vld [vmem:[#allocation2 + $0x380] sm:$0xf]
    %v312 = vld [vmem:[#allocation2 + $0x384] sm:$0xf]
    %v313 = vld [vmem:[#allocation2 + $0x388] sm:$0xf]
    %v314 = vld [vmem:[#allocation2 + $0x38c] sm:$0xf]
    %v315 = vld [vmem:[#allocation2 + $0x390] sm:$0xf]
    %v316 = vld [vmem:[#allocation2 + $0x394] sm:$0xf]
    %v317 = vld [vmem:[#allocation2 + $0x398] sm:$0xf]
    %v318 = vld [vmem:[#allocation2 + $0x39c] sm:$0xf]
    %v319 = vld [vmem:[#allocation2 + $0x3a0] sm:$0xf]
    %v320 = vld [vmem:[#allocation2 + $0x3a4] sm:$0xf]
    %v321 = vld [vmem:[#allocation2 + $0x3a8] sm:$0xf]
    %v322 = vld [vmem:[#allocation2 + $0x3ac] sm:$0xf]
    %v323 = vld [vmem:[#allocation2 + $0x3b0] sm:$0xf]
    %v324 = vld [vmem:[#allocation2 + $0x3b4] sm:$0xf]
    %v325 = vld [vmem:[#allocation2 + $0x3b8] sm:$0xf]
    %v326 = vld [vmem:[#allocation2 + $0x3bc] sm:$0xf]
    %v327 = vld [vmem:[#allocation2 + $0x3c0] sm:$0xf]
    %v328 = vld [vmem:[#allocation2 + $0x3c4] sm:$0xf]
    %v329 = vld [vmem:[#allocation2 + $0x3c8] sm:$0xf]
    %v330 = vld [vmem:[#allocation2 + $0x3cc] sm:$0xf]
    %v331 = vld [vmem:[#allocation2 + $0x3d0] sm:$0xf]
    %v332 = vld [vmem:[#allocation2 + $0x3d4] sm:$0xf]
    %v333 = vld [vmem:[#allocation2 + $0x3d8] sm:$0xf]
    %v334 = vld [vmem:[#allocation2 + $0x3dc] sm:$0xf]
    %v335 = vld [vmem:[#allocation2 + $0x3e0] sm:$0xf]
    %v336 = vld [vmem:[#allocation2 + $0x3e4] sm:$0xf]
    %v337 = vld [vmem:[#allocation2 + $0x3e8] sm:$0xf]
    %v338 = vld [vmem:[#allocation2 + $0x3ec] sm:$0xf]
    %v339 = vld [vmem:[#allocation2 + $0x3f0] sm:$0xf]
    %v340 = vld [vmem:[#allocation2 + $0x3f4] sm:$0xf]
    %v341 = vld [vmem:[#allocation2 + $0x3f8] sm:$0xf]
    %v342 = vld [vmem:[#allocation2 + $0x3fc] sm:$0xf]
    %v343 = vld [vmem:[#allocation2 + $0x400] sm:$0xf]
    %v344 = vld [vmem:[#allocation2 + $0x404] sm:$0xf]
    %v345 = vld [vmem:[#allocation2 + $0x408] sm:$0xf]
    %v346 = vld [vmem:[#allocation2 + $0x40c] sm:$0xf]
    %v347 = vld [vmem:[#allocation2 + $0x410] sm:$0xf]
    %v348 = vld [vmem:[#allocation2 + $0x414] sm:$0xf]
    %v349 = vld [vmem:[#allocation2 + $0x418] sm:$0xf]
    %v350 = vld [vmem:[#allocation2 + $0x41c] sm:$0xf]
    %v351 = vld [vmem:[#allocation2 + $0x420] sm:$0xf]
    %v352 = vld [vmem:[#allocation2 + $0x424] sm:$0xf]
    %v353 = vld [vmem:[#allocation2 + $0x428] sm:$0xf]
    %v354 = vld [vmem:[#allocation2 + $0x42c] sm:$0xf]
    %v355 = vld [vmem:[#allocation2 + $0x430] sm:$0xf]
    %v356 = vld [vmem:[#allocation2 + $0x434] sm:$0xf]
    %v357 = vld [vmem:[#allocation2 + $0x438] sm:$0xf]
    %v358 = vld [vmem:[#allocation2 + $0x43c] sm:$0xf]
    %v359 = vld [vmem:[#allocation2 + $0x440] sm:$0xf]
    %v360 = vld [vmem:[#allocation2 + $0x444] sm:$0xf]
    %v361 = vld [vmem:[#allocation2 + $0x448] sm:$0xf]
    %v362 = vld [vmem:[#allocation2 + $0x44c] sm:$0xf]
    %v363 = vld [vmem:[#allocation2 + $0x450] sm:$0xf]
    %v364 = vld [vmem:[#allocation2 + $0x454] sm:$0xf]
    %v365 = vld [vmem:[#allocation2 + $0x458] sm:$0xf]
    %v366 = vld [vmem:[#allocation2 + $0x45c] sm:$0xf]
    %v367 = vld [vmem:[#allocation2 + $0x460] sm:$0xf]
    %v368 = vld [vmem:[#allocation2 + $0x464] sm:$0xf]
    %v369 = vld [vmem:[#allocation2 + $0x468] sm:$0xf]
    %v370 = vld [vmem:[#allocation2 + $0x46c] sm:$0xf]
    %v371 = vld [vmem:[#allocation2 + $0x470] sm:$0xf]
    %v372 = vld [vmem:[#allocation2 + $0x474] sm:$0xf]
    %v373 = vld [vmem:[#allocation2 + $0x478] sm:$0xf]
    %v374 = vld [vmem:[#allocation2 + $0x47c] sm:$0xf]
    %v375 = vld [vmem:[#allocation2 + $0x480] sm:$0xf]
    %v376 = vld [vmem:[#allocation2 + $0x484] sm:$0xf]
    %v377 = vld [vmem:[#allocation2 + $0x488] sm:$0xf]
    %v378 = vld [vmem:[#allocation2 + $0x48c] sm:$0xf]
    %v379 = vld [vmem:[#allocation2 + $0x490] sm:$0xf]
    %v380 = vld [vmem:[#allocation2 + $0x494] sm:$0xf]
    %v381 = vld [vmem:[#allocation2 + $0x498] sm:$0xf]
    %v382 = vld [vmem:[#allocation2 + $0x49c] sm:$0xf]
    %v383 = vld [vmem:[#allocation2 + $0x4a0] sm:$0xf]
    %v384 = vld [vmem:[#allocation2 + $0x4a4] sm:$0xf]
    %v385 = vld [vmem:[#allocation2 + $0x4a8] sm:$0xf]
    %v386 = vld [vmem:[#allocation2 + $0x4ac] sm:$0xf]
    %v387 = vld [vmem:[#allocation2 + $0x4b0] sm:$0xf]
    %v388 = vld [vmem:[#allocation2 + $0x4b4] sm:$0xf]
    %v389 = vld [vmem:[#allocation2 + $0x4b8] sm:$0xf]
    %v390 = vld [vmem:[#allocation2 + $0x4bc] sm:$0xf]
    %v391 = vld [vmem:[#allocation2 + $0x4c0] sm:$0xf]
    %v392 = vld [vmem:[#allocation2 + $0x4c4] sm:$0xf]
    %v393 = vld [vmem:[#allocation2 + $0x4c8] sm:$0xf]
    %v394 = vld [vmem:[#allocation2 + $0x4cc] sm:$0xf]
    %v395 = vld [vmem:[#allocation2 + $0x4d0] sm:$0xf]
    %v396 = vld [vmem:[#allocation2 + $0x4d4] sm:$0xf]
    %v397 = vld [vmem:[#allocation2 + $0x4d8] sm:$0xf]
    %v398 = vld [vmem:[#allocation2 + $0x4dc] sm:$0xf]
    %v399 = vld [vmem:[#allocation2 + $0x4e0] sm:$0xf]
    %v400 = vld [vmem:[#allocation2 + $0x4e4] sm:$0xf]
    %v401 = vld [vmem:[#allocation2 + $0x4e8] sm:$0xf]
    %v402 = vld [vmem:[#allocation2 + $0x4ec] sm:$0xf]
    %v403 = vld [vmem:[#allocation2 + $0x4f0] sm:$0xf]
    %v404 = vld [vmem:[#allocation2 + $0x4f4] sm:$0xf]
    %v405 = vld [vmem:[#allocation2 + $0x4f8] sm:$0xf]
    %v406 = vld [vmem:[#allocation2 + $0x4fc] sm:$0xf]
    %v407 = vld [vmem:[#allocation2 + $0x500] sm:$0xf]
    %v408 = vld [vmem:[#allocation2 + $0x504] sm:$0xf]
    %v409 = vld [vmem:[#allocation2 + $0x508] sm:$0xf]
    %v410 = vld [vmem:[#allocation2 + $0x50c] sm:$0xf]
    %v411 = vld [vmem:[#allocation2 + $0x510] sm:$0xf]
    %v412 = vld [vmem:[#allocation2 + $0x514] sm:$0xf]
    %v413 = vld [vmem:[#allocation2 + $0x518] sm:$0xf]
    %v414 = vld [vmem:[#allocation2 + $0x51c] sm:$0xf]
    %v415 = vld [vmem:[#allocation2 + $0x520] sm:$0xf]
    %v416 = vld [vmem:[#allocation2 + $0x524] sm:$0xf]
    %v417 = vld [vmem:[#allocation2 + $0x528] sm:$0xf]
    %v418 = vld [vmem:[#allocation2 + $0x52c] sm:$0xf]
    %v419 = vld [vmem:[#allocation2 + $0x530] sm:$0xf]
    %v420 = vld [vmem:[#allocation2 + $0x534] sm:$0xf]
    %v421 = vld [vmem:[#allocation2 + $0x538] sm:$0xf]
    %v422 = vld [vmem:[#allocation2 + $0x53c] sm:$0xf]
    %v423 = vld [vmem:[#allocation2 + $0x540] sm:$0xf]
    %v424 = vld [vmem:[#allocation2 + $0x544] sm:$0xf]
    %v425 = vld [vmem:[#allocation2 + $0x548] sm:$0xf]
    %v426 = vld [vmem:[#allocation2 + $0x54c] sm:$0xf]
    %v427 = vld [vmem:[#allocation2 + $0x550] sm:$0xf]
    %v428 = vld [vmem:[#allocation2 + $0x554] sm:$0xf]
    %v429 = vld [vmem:[#allocation2 + $0x558] sm:$0xf]
    %v430 = vld [vmem:[#allocation2 + $0x55c] sm:$0xf]
    %v431 = vld [vmem:[#allocation2 + $0x560] sm:$0xf]
    %v432 = vld [vmem:[#allocation2 + $0x564] sm:$0xf]
    %v433 = vld [vmem:[#allocation2 + $0x568] sm:$0xf]
    %v434 = vld [vmem:[#allocation2 + $0x56c] sm:$0xf]
    %v435 = vld [vmem:[#allocation2 + $0x570] sm:$0xf]
    %v436 = vld [vmem:[#allocation2 + $0x574] sm:$0xf]
    %v437 = vld [vmem:[#allocation2 + $0x578] sm:$0xf]
    %v438 = vld [vmem:[#allocation2 + $0x57c] sm:$0xf]
    %v439 = vld [vmem:[#allocation2 + $0x580] sm:$0xf]
    %v440 = vld [vmem:[#allocation2 + $0x584] sm:$0xf]
    %v441 = vld [vmem:[#allocation2 + $0x588] sm:$0xf]
    %v442 = vld [vmem:[#allocation2 + $0x58c] sm:$0xf]
    %v443 = vld [vmem:[#allocation2 + $0x590] sm:$0xf]
    %v444 = vld [vmem:[#allocation2 + $0x594] sm:$0xf]
    %v445 = vld [vmem:[#allocation2 + $0x598] sm:$0xf]
    %v446 = vld [vmem:[#allocation2 + $0x59c] sm:$0xf]
    %v447 = vld [vmem:[#allocation2 + $0x5a0] sm:$0xf]
    %v448 = vld [vmem:[#allocation2 + $0x5a4] sm:$0xf]
    %v449 = vld [vmem:[#allocation2 + $0x5a8] sm:$0xf]
    %v450 = vld [vmem:[#allocation2 + $0x5ac] sm:$0xf]
    %v451 = vld [vmem:[#allocation2 + $0x5b0] sm:$0xf]
    %v452 = vld [vmem:[#allocation2 + $0x5b4] sm:$0xf]
    %v453 = vld [vmem:[#allocation2 + $0x5b8] sm:$0xf]
    %v454 = vld [vmem:[#allocation2 + $0x5bc] sm:$0xf]
    %v455 = vld [vmem:[#allocation2 + $0x5c0] sm:$0xf]
    %v456 = vld [vmem:[#allocation2 + $0x5c4] sm:$0xf]
    %v457 = vld [vmem:[#allocation2 + $0x5c8] sm:$0xf]
    %v458 = vld [vmem:[#allocation2 + $0x5cc] sm:$0xf]
    %v459 = vld [vmem:[#allocation2 + $0x5d0] sm:$0xf]
    %v460 = vld [vmem:[#allocation2 + $0x5d4] sm:$0xf]
    %v461 = vld [vmem:[#allocation2 + $0x5d8] sm:$0xf]
    %v462 = vld [vmem:[#allocation2 + $0x5dc] sm:$0xf]
    %v463 = vld [vmem:[#allocation2 + $0x5e0] sm:$0xf]
    %v464 = vld [vmem:[#allocation2 + $0x5e4] sm:$0xf]
    %v465 = vld [vmem:[#allocation2 + $0x5e8] sm:$0xf]
    %v466 = vld [vmem:[#allocation2 + $0x5ec] sm:$0xf]
    %v467 = vld [vmem:[#allocation2 + $0x5f0] sm:$0xf]
    %v468 = vld [vmem:[#allocation2 + $0x5f4] sm:$0xf]
    %v469 = vld [vmem:[#allocation2 + $0x5f8] sm:$0xf]
    %v470 = vld [vmem:[#allocation2 + $0x5fc] sm:$0xf]
    %v471 = vld [vmem:[#allocation2 + $0x600] sm:$0xf]
    %v472 = vld [vmem:[#allocation2 + $0x604] sm:$0xf]
    %v473 = vld [vmem:[#allocation2 + $0x608] sm:$0xf]
    %v474 = vld [vmem:[#allocation2 + $0x60c] sm:$0xf]
    %v475 = vld [vmem:[#allocation2 + $0x610] sm:$0xf]
    %v476 = vld [vmem:[#allocation2 + $0x614] sm:$0xf]
    %v477 = vld [vmem:[#allocation2 + $0x618] sm:$0xf]
    %v478 = vld [vmem:[#allocation2 + $0x61c] sm:$0xf]
    %v479 = vld [vmem:[#allocation2 + $0x620] sm:$0xf]
    %v480 = vld [vmem:[#allocation2 + $0x624] sm:$0xf]
    %v481 = vld [vmem:[#allocation2 + $0x628] sm:$0xf]
    %v482 = vld [vmem:[#allocation2 + $0x62c] sm:$0xf]
    %v483 = vld [vmem:[#allocation2 + $0x630] sm:$0xf]
    %v484 = vld [vmem:[#allocation2 + $0x634] sm:$0xf]
    %v485 = vld [vmem:[#allocation2 + $0x638] sm:$0xf]
    %v486 = vld [vmem:[#allocation2 + $0x63c] sm:$0xf]
    %v487 = vld [vmem:[#allocation2 + $0x640] sm:$0xf]
    %v488 = vld [vmem:[#allocation2 + $0x644] sm:$0xf]
    %v489 = vld [vmem:[#allocation2 + $0x648] sm:$0xf]
    %v490 = vld [vmem:[#allocation2 + $0x64c] sm:$0xf]
    %v491 = vld [vmem:[#allocation2 + $0x650] sm:$0xf]
    %v492 = vld [vmem:[#allocation2 + $0x654] sm:$0xf]
    %v493 = vld [vmem:[#allocation2 + $0x658] sm:$0xf]
    %v494 = vld [vmem:[#allocation2 + $0x65c] sm:$0xf]
    %v495 = vld [vmem:[#allocation2 + $0x660] sm:$0xf]
    %v496 = vld [vmem:[#allocation2 + $0x664] sm:$0xf]
    %v497 = vld [vmem:[#allocation2 + $0x668] sm:$0xf]
    %v498 = vld [vmem:[#allocation2 + $0x66c] sm:$0xf]
    %v499 = vld [vmem:[#allocation2 + $0x670] sm:$0xf]
    %v500 = vld [vmem:[#allocation2 + $0x674] sm:$0xf]
    %v501 = vld [vmem:[#allocation2 + $0x678] sm:$0xf]
    %v502 = vld [vmem:[#allocation2 + $0x67c] sm:$0xf]
    %v503 = vld [vmem:[#allocation2 + $0x680] sm:$0xf]
    %v504 = vld [vmem:[#allocation2 + $0x684] sm:$0xf]
    %v505 = vld [vmem:[#allocation2 + $0x688] sm:$0xf]
    %v506 = vld [vmem:[#allocation2 + $0x68c] sm:$0xf]
    %v507 = vld [vmem:[#allocation2 + $0x690] sm:$0xf]
    %v508 = vld [vmem:[#allocation2 + $0x694] sm:$0xf]
    %v509 = vld [vmem:[#allocation2 + $0x698] sm:$0xf]
    %v510 = vld [vmem:[#allocation2 + $0x69c] sm:$0xf]
    %v511 = vld [vmem:[#allocation2 + $0x6a0] sm:$0xf]
    %v512 = vld [vmem:[#allocation2 + $0x6a4] sm:$0xf]
    %v513 = vld [vmem:[#allocation2 + $0x6a8] sm:$0xf]
    %v514 = vld [vmem:[#allocation2 + $0x6ac] sm:$0xf]
    %v515 = vld [vmem:[#allocation2 + $0x6b0] sm:$0xf]
    %v516 = vld [vmem:[#allocation2 + $0x6b4] sm:$0xf]
    %v517 = vld [vmem:[#allocation2 + $0x6b8] sm:$0xf]
    %v518 = vld [vmem:[#allocation2 + $0x6bc] sm:$0xf]
    %v519 = vld [vmem:[#allocation2 + $0x6c0] sm:$0xf]
    %v520 = vld [vmem:[#allocation2 + $0x6c4] sm:$0xf]
    %v521 = vld [vmem:[#allocation2 + $0x6c8] sm:$0xf]
    %v522 = vld [vmem:[#allocation2 + $0x6cc] sm:$0xf]
    %v523 = vld [vmem:[#allocation2 + $0x6d0] sm:$0xf]
    %v524 = vld [vmem:[#allocation2 + $0x6d4] sm:$0xf]
    %v525 = vld [vmem:[#allocation2 + $0x6d8] sm:$0xf]
    %v526 = vld [vmem:[#allocation2 + $0x6dc] sm:$0xf]
    %v527 = vld [vmem:[#allocation2 + $0x6e0] sm:$0xf]
    %v528 = vld [vmem:[#allocation2 + $0x6e4] sm:$0xf]
    %v529 = vld [vmem:[#allocation2 + $0x6e8] sm:$0xf]
    %v530 = vld [vmem:[#allocation2 + $0x6ec] sm:$0xf]
    %v531 = vld [vmem:[#allocation2 + $0x6f0] sm:$0xf]
    %v532 = vld [vmem:[#allocation2 + $0x6f4] sm:$0xf]
    %v533 = vld [vmem:[#allocation2 + $0x6f8] sm:$0xf]
    %v534 = vld [vmem:[#allocation2 + $0x6fc] sm:$0xf]
    %v535 = vld [vmem:[#allocation2 + $0x700] sm:$0xf]
    %v536 = vld [vmem:[#allocation2 + $0x704] sm:$0xf]
    %v537 = vld [vmem:[#allocation2 + $0x708] sm:$0xf]
    %v538 = vld [vmem:[#allocation2 + $0x70c] sm:$0xf]
    %v539 = vld [vmem:[#allocation2 + $0x710] sm:$0xf]
    %v540 = vld [vmem:[#allocation2 + $0x714] sm:$0xf]
    %v541 = vld [vmem:[#allocation2 + $0x718] sm:$0xf]
    %v542 = vld [vmem:[#allocation2 + $0x71c] sm:$0xf]
    %v543 = vld [vmem:[#allocation2 + $0x720] sm:$0xf]
    %v544 = vld [vmem:[#allocation2 + $0x724] sm:$0xf]
    %v545 = vld [vmem:[#allocation2 + $0x728] sm:$0xf]
    %v546 = vld [vmem:[#allocation2 + $0x72c] sm:$0xf]
    %v547 = vld [vmem:[#allocation2 + $0x730] sm:$0xf]
    %v548 = vld [vmem:[#allocation2 + $0x734] sm:$0xf]
    %v549 = vld [vmem:[#allocation2 + $0x738] sm:$0xf]
    %v550 = vld [vmem:[#allocation2 + $0x73c] sm:$0xf]
    %v551 = vld [vmem:[#allocation2 + $0x740] sm:$0xf]
    %v552 = vld [vmem:[#allocation2 + $0x744] sm:$0xf]
    %v553 = vld [vmem:[#allocation2 + $0x748] sm:$0xf]
    %v554 = vld [vmem:[#allocation2 + $0x74c] sm:$0xf]
    %v555 = vld [vmem:[#allocation2 + $0x750] sm:$0xf]
    %v556 = vld [vmem:[#allocation2 + $0x754] sm:$0xf]
    %v557 = vld [vmem:[#allocation2 + $0x758] sm:$0xf]
    %v558 = vld [vmem:[#allocation2 + $0x75c] sm:$0xf]
    %v559 = vld [vmem:[#allocation2 + $0x760] sm:$0xf]
    %v560 = vld [vmem:[#allocation2 + $0x764] sm:$0xf]
    %v561 = vld [vmem:[#allocation2 + $0x768] sm:$0xf]
    %v562 = vld [vmem:[#allocation2 + $0x76c] sm:$0xf]
    %v563 = vld [vmem:[#allocation2 + $0x770] sm:$0xf]
    %v564 = vld [vmem:[#allocation2 + $0x774] sm:$0xf]
    %v565 = vld [vmem:[#allocation2 + $0x778] sm:$0xf]
    %v566 = vld [vmem:[#allocation2 + $0x77c] sm:$0xf]
    %v567 = vld [vmem:[#allocation2 + $0x780] sm:$0xf]
    %v568 = vld [vmem:[#allocation2 + $0x784] sm:$0xf]
    %v569 = vld [vmem:[#allocation2 + $0x788] sm:$0xf]
    %v570 = vld [vmem:[#allocation2 + $0x78c] sm:$0xf]
    %v571 = vld [vmem:[#allocation2 + $0x790] sm:$0xf]
    %v572 = vld [vmem:[#allocation2 + $0x794] sm:$0xf]
    %v573 = vld [vmem:[#allocation2 + $0x798] sm:$0xf]
    %v574 = vld [vmem:[#allocation2 + $0x79c] sm:$0xf]
    %v575 = vld [vmem:[#allocation2 + $0x7a0] sm:$0xf]
    %v576 = vld [vmem:[#allocation2 + $0x7a4] sm:$0xf]
    %v577 = vld [vmem:[#allocation2 + $0x7a8] sm:$0xf]
    %v578 = vld [vmem:[#allocation2 + $0x7ac] sm:$0xf]
    %v579 = vld [vmem:[#allocation2 + $0x7b0] sm:$0xf]
    %v580 = vld [vmem:[#allocation2 + $0x7b4] sm:$0xf]
    %v581 = vld [vmem:[#allocation2 + $0x7b8] sm:$0xf]
    %v582 = vld [vmem:[#allocation2 + $0x7bc] sm:$0xf]
    %v583 = vld [vmem:[#allocation2 + $0x7c0] sm:$0xf]
    %v584 = vld [vmem:[#allocation2 + $0x7c4] sm:$0xf]
    %v585 = vld [vmem:[#allocation2 + $0x7c8] sm:$0xf]
    %v586 = vld [vmem:[#allocation2 + $0x7cc] sm:$0xf]
    %v587 = vld [vmem:[#allocation2 + $0x7d0] sm:$0xf]
    %v588 = vld [vmem:[#allocation2 + $0x7d4] sm:$0xf]
    %v589 = vld [vmem:[#allocation2 + $0x7d8] sm:$0xf]
    %v590 = vld [vmem:[#allocation2 + $0x7dc] sm:$0xf]
    %v591 = vld [vmem:[#allocation2 + $0x7e0] sm:$0xf]
    %v592 = vld [vmem:[#allocation2 + $0x7e4] sm:$0xf]
    %v593 = vld [vmem:[#allocation2 + $0x7e8] sm:$0xf]
    %v594 = vld [vmem:[#allocation2 + $0x7ec] sm:$0xf]
    %v595 = vld [vmem:[#allocation2 + $0x7f0] sm:$0xf]
    %v596 = vld [vmem:[#allocation2 + $0x7f4] sm:$0xf]
    %v597 = vld [vmem:[#allocation2 + $0x7f8] sm:$0xf]
    %v598 = vld [vmem:[#allocation2 + $0x7fc] sm:$0xf]
    %v599 = vld [vmem:[#allocation2 + $0x800] sm:$0xf]
    %v600 = vld [vmem:[#allocation2 + $0x804] sm:$0xf]
    %v601 = vld [vmem:[#allocation2 + $0x808] sm:$0xf]
    %v602 = vld [vmem:[#allocation2 + $0x80c] sm:$0xf]
    %v603 = vld [vmem:[#allocation2 + $0x810] sm:$0xf]
    %v604 = vld [vmem:[#allocation2 + $0x814] sm:$0xf]
    %v605 = vld [vmem:[#allocation2 + $0x818] sm:$0xf]
    %v606 = vld [vmem:[#allocation2 + $0x81c] sm:$0xf]
    %v607 = vld [vmem:[#allocation2 + $0x820] sm:$0xf]
    %v608 = vld [vmem:[#allocation2 + $0x824] sm:$0xf]
    %v609 = vld [vmem:[#allocation2 + $0x828] sm:$0xf]
    %v610 = vld [vmem:[#allocation2 + $0x82c] sm:$0xf]
    %v611 = vld [vmem:[#allocation2 + $0x830] sm:$0xf]
    %v612 = vld [vmem:[#allocation2 + $0x834] sm:$0xf]
    %v613 = vld [vmem:[#allocation2 + $0x838] sm:$0xf]
    %v614 = vld [vmem:[#allocation2 + $0x83c] sm:$0xf]
    %v615 = vld [vmem:[#allocation2 + $0x840] sm:$0xf]
    %v616 = vld [vmem:[#allocation2 + $0x844] sm:$0xf]
    %v617 = vld [vmem:[#allocation2 + $0x848] sm:$0xf]
    %v618 = vld [vmem:[#allocation2 + $0x84c] sm:$0xf]
    %v619 = vld [vmem:[#allocation2 + $0x850] sm:$0xf]
    %v620 = vld [vmem:[#allocation2 + $0x854] sm:$0xf]
    %v621 = vld [vmem:[#allocation2 + $0x858] sm:$0xf]
    %v622 = vld [vmem:[#allocation2 + $0x85c] sm:$0xf]
    %v623 = vld [vmem:[#allocation2 + $0x860] sm:$0xf]
    %v624 = vld [vmem:[#allocation2 + $0x864] sm:$0xf]
    %v625 = vld [vmem:[#allocation2 + $0x868] sm:$0xf]
    %v626 = vld [vmem:[#allocation2 + $0x86c] sm:$0xf]
    %v627 = vld [vmem:[#allocation2 + $0x870] sm:$0xf]
    %v628 = vld [vmem:[#allocation2 + $0x874] sm:$0xf]
    %v629 = vld [vmem:[#allocation2 + $0x878] sm:$0xf]
    %v630 = vld [vmem:[#allocation2 + $0x87c] sm:$0xf]
    %v631 = vld [vmem:[#allocation2 + $0x880] sm:$0xf]
    %v632 = vld [vmem:[#allocation2 + $0x884] sm:$0xf]
    %v633 = vld [vmem:[#allocation2 + $0x888] sm:$0xf]
    %v634 = vld [vmem:[#allocation2 + $0x88c] sm:$0xf]
    %v635 = vld [vmem:[#allocation2 + $0x890] sm:$0xf]
    %v636 = vld [vmem:[#allocation2 + $0x894] sm:$0xf]
    %v637 = vld [vmem:[#allocation2 + $0x898] sm:$0xf]
    %v638 = vld [vmem:[#allocation2 + $0x89c] sm:$0xf]
    %v639 = vld [vmem:[#allocation2 + $0x8a0] sm:$0xf]
    %v640 = vld [vmem:[#allocation2 + $0x8a4] sm:$0xf]
    %v641 = vld [vmem:[#allocation2 + $0x8a8] sm:$0xf]
    %v642 = vld [vmem:[#allocation2 + $0x8ac] sm:$0xf]
    %v643 = vld [vmem:[#allocation2 + $0x8b0] sm:$0xf]
    %v644 = vld [vmem:[#allocation2 + $0x8b4] sm:$0xf]
    %v645 = vld [vmem:[#allocation2 + $0x8b8] sm:$0xf]
    %v646 = vld [vmem:[#allocation2 + $0x8bc] sm:$0xf]
    %v647 = vld [vmem:[#allocation2 + $0x8c0] sm:$0xf]
    %v648 = vld [vmem:[#allocation2 + $0x8c4] sm:$0xf]
    %v649 = vld [vmem:[#allocation2 + $0x8c8] sm:$0xf]
    %v650 = vld [vmem:[#allocation2 + $0x8cc] sm:$0xf]
    %v651 = vld [vmem:[#allocation2 + $0x8d0] sm:$0xf]
    %v652 = vld [vmem:[#allocation2 + $0x8d4] sm:$0xf]
    %v653 = vld [vmem:[#allocation2 + $0x8d8] sm:$0xf]
    %v654 = vld [vmem:[#allocation2 + $0x8dc] sm:$0xf]
    %v655 = vld [vmem:[#allocation2 + $0x8e0] sm:$0xf]
    %v656 = vld [vmem:[#allocation2 + $0x8e4] sm:$0xf]
    %v657 = vld [vmem:[#allocation2 + $0x8e8] sm:$0xf]
    %v658 = vld [vmem:[#allocation2 + $0x8ec] sm:$0xf]
    %v659 = vld [vmem:[#allocation2 + $0x8f0] sm:$0xf]
    %v660 = vld [vmem:[#allocation2 + $0x8f4] sm:$0xf]
    %v661 = vld [vmem:[#allocation2 + $0x8f8] sm:$0xf]
    %v662 = vld [vmem:[#allocation2 + $0x8fc] sm:$0xf]
    %v663 = vld [vmem:[#allocation2 + $0x900] sm:$0xf]
    %v664 = vld [vmem:[#allocation2 + $0x904] sm:$0xf]
    %v665 = vld [vmem:[#allocation2 + $0x908] sm:$0xf]
    %v666 = vld [vmem:[#allocation2 + $0x90c] sm:$0xf]
    %v667 = vld [vmem:[#allocation2 + $0x910] sm:$0xf]
    %v668 = vld [vmem:[#allocation2 + $0x914] sm:$0xf]
    %v669 = vld [vmem:[#allocation2 + $0x918] sm:$0xf]
    %v670 = vld [vmem:[#allocation2 + $0x91c] sm:$0xf]
    %v671 = vld [vmem:[#allocation2 + $0x920] sm:$0xf]
    %v672 = vld [vmem:[#allocation2 + $0x924] sm:$0xf]
    %v673 = vld [vmem:[#allocation2 + $0x928] sm:$0xf]
    %v674 = vld [vmem:[#allocation2 + $0x92c] sm:$0xf]
    %v675 = vld [vmem:[#allocation2 + $0x930] sm:$0xf]
    %v676 = vld [vmem:[#allocation2 + $0x934] sm:$0xf]
    %v677 = vld [vmem:[#allocation2 + $0x938] sm:$0xf]
    %v678 = vld [vmem:[#allocation2 + $0x93c] sm:$0xf]
    %v679 = vld [vmem:[#allocation2 + $0x940] sm:$0xf]
    %v680 = vld [vmem:[#allocation2 + $0x944] sm:$0xf]
    %v681 = vld [vmem:[#allocation2 + $0x948] sm:$0xf]
    %v682 = vld [vmem:[#allocation2 + $0x94c] sm:$0xf]
    %v683 = vld [vmem:[#allocation2 + $0x950] sm:$0xf]
    %v684 = vld [vmem:[#allocation2 + $0x954] sm:$0xf]
    %v685 = vld [vmem:[#allocation2 + $0x958] sm:$0xf]
    %v686 = vld [vmem:[#allocation2 + $0x95c] sm:$0xf]
    %v687 = vld [vmem:[#allocation2 + $0x960] sm:$0xf]
    %v688 = vld [vmem:[#allocation2 + $0x964] sm:$0xf]
    %v689 = vld [vmem:[#allocation2 + $0x968] sm:$0xf]
    %v690 = vld [vmem:[#allocation2 + $0x96c] sm:$0xf]
    %v691 = vld [vmem:[#allocation2 + $0x970] sm:$0xf]
    %v692 = vld [vmem:[#allocation2 + $0x974] sm:$0xf]
    %v693 = vld [vmem:[#allocation2 + $0x978] sm:$0xf]
    %v694 = vld [vmem:[#allocation2 + $0x97c] sm:$0xf]
    %v695 = vld [vmem:[#allocation2 + $0x980] sm:$0xf]
    %v696 = vld [vmem:[#allocation2 + $0x984] sm:$0xf]
    %v697 = vld [vmem:[#allocation2 + $0x988] sm:$0xf]
    %v698 = vld [vmem:[#allocation2 + $0x98c] sm:$0xf]
    %v699 = vld [vmem:[#allocation2 + $0x990] sm:$0xf]
    %v700 = vld [vmem:[#allocation2 + $0x994] sm:$0xf]
    %v701 = vld [vmem:[#allocation2 + $0x998] sm:$0xf]
    %v702 = vld [vmem:[#allocation2 + $0x99c] sm:$0xf]
    %v703 = vld [vmem:[#allocation2 + $0x9a0] sm:$0xf]
    %v704 = vld [vmem:[#allocation2 + $0x9a4] sm:$0xf]
    %v705 = vld [vmem:[#allocation2 + $0x9a8] sm:$0xf]
    %v706 = vld [vmem:[#allocation2 + $0x9ac] sm:$0xf]
    %v707 = vld [vmem:[#allocation2 + $0x9b0] sm:$0xf]
    %v708 = vld [vmem:[#allocation2 + $0x9b4] sm:$0xf]
    %v709 = vld [vmem:[#allocation2 + $0x9b8] sm:$0xf]
    %v710 = vld [vmem:[#allocation2 + $0x9bc] sm:$0xf]
    %v711 = vld [vmem:[#allocation2 + $0x9c0] sm:$0xf]
    %v712 = vld [vmem:[#allocation2 + $0x9c4] sm:$0xf]
    %v713 = vld [vmem:[#allocation2 + $0x9c8] sm:$0xf]
    %v714 = vld [vmem:[#allocation2 + $0x9cc] sm:$0xf]
    %v715 = vld [vmem:[#allocation2 + $0x9d0] sm:$0xf]
    %v716 = vld [vmem:[#allocation2 + $0x9d4] sm:$0xf]
    %v717 = vld [vmem:[#allocation2 + $0x9d8] sm:$0xf]
    %v718 = vld [vmem:[#allocation2 + $0x9dc] sm:$0xf]
    %v719 = vld [vmem:[#allocation2 + $0x9e0] sm:$0xf]
    %v720 = vld [vmem:[#allocation2 + $0x9e4] sm:$0xf]
    %v721 = vld [vmem:[#allocation2 + $0x9e8] sm:$0xf]
    %v722 = vld [vmem:[#allocation2 + $0x9ec] sm:$0xf]
    %v723 = vld [vmem:[#allocation2 + $0x9f0] sm:$0xf]
    %v724 = vld [vmem:[#allocation2 + $0x9f4] sm:$0xf]
    %v725 = vld [vmem:[#allocation2 + $0x9f8] sm:$0xf]
    %v726 = vld [vmem:[#allocation2 + $0x9fc] sm:$0xf]
    %v727 = vld [vmem:[#allocation2 + $0xa00] sm:$0xf]
    %v728 = vld [vmem:[#allocation2 + $0xa04] sm:$0xf]
    %v729 = vld [vmem:[#allocation2 + $0xa08] sm:$0xf]
    %v730 = vld [vmem:[#allocation2 + $0xa0c] sm:$0xf]
    %v731 = vld [vmem:[#allocation2 + $0xa10] sm:$0xf]
    %v732 = vld [vmem:[#allocation2 + $0xa14] sm:$0xf]
    %v733 = vld [vmem:[#allocation2 + $0xa18] sm:$0xf]
    %v734 = vld [vmem:[#allocation2 + $0xa1c] sm:$0xf]
    %v735 = vld [vmem:[#allocation2 + $0xa20] sm:$0xf]
    %v736 = vld [vmem:[#allocation2 + $0xa24] sm:$0xf]
    %v737 = vld [vmem:[#allocation2 + $0xa28] sm:$0xf]
    %v738 = vld [vmem:[#allocation2 + $0xa2c] sm:$0xf]
    %v739 = vld [vmem:[#allocation2 + $0xa30] sm:$0xf]
    %v740 = vld [vmem:[#allocation2 + $0xa34] sm:$0xf]
    %v741 = vld [vmem:[#allocation2 + $0xa38] sm:$0xf]
    %v742 = vld [vmem:[#allocation2 + $0xa3c] sm:$0xf]
    %v743 = vld [vmem:[#allocation2 + $0xa40] sm:$0xf]
    %v744 = vld [vmem:[#allocation2 + $0xa44] sm:$0xf]
    %v745 = vld [vmem:[#allocation2 + $0xa48] sm:$0xf]
    %v746 = vld [vmem:[#allocation2 + $0xa4c] sm:$0xf]
    %v747 = vld [vmem:[#allocation2 + $0xa50] sm:$0xf]
    %v748 = vld [vmem:[#allocation2 + $0xa54] sm:$0xf]
    %v749 = vld [vmem:[#allocation2 + $0xa58] sm:$0xf]
    %v750 = vld [vmem:[#allocation2 + $0xa5c] sm:$0xf]
    %v751 = vld [vmem:[#allocation2 + $0xa60] sm:$0xf]
    %v752 = vld [vmem:[#allocation2 + $0xa64] sm:$0xf]
    %v753 = vld [vmem:[#allocation2 + $0xa68] sm:$0xf]
    %v754 = vld [vmem:[#allocation2 + $0xa6c] sm:$0xf]
    %v755 = vld [vmem:[#allocation2 + $0xa70] sm:$0xf]
    %v756 = vld [vmem:[#allocation2 + $0xa74] sm:$0xf]
    %v757 = vld [vmem:[#allocation2 + $0xa78] sm:$0xf]
    %v758 = vld [vmem:[#allocation2 + $0xa7c] sm:$0xf]
    %v759 = vld [vmem:[#allocation2 + $0xa80] sm:$0xf]
    %v760 = vld [vmem:[#allocation2 + $0xa84] sm:$0xf]
    %v761 = vld [vmem:[#allocation2 + $0xa88] sm:$0xf]
    %v762 = vld [vmem:[#allocation2 + $0xa8c] sm:$0xf]
    %v763 = vld [vmem:[#allocation2 + $0xa90] sm:$0xf]
    %v764 = vld [vmem:[#allocation2 + $0xa94] sm:$0xf]
    %v765 = vld [vmem:[#allocation2 + $0xa98] sm:$0xf]
    %v766 = vld [vmem:[#allocation2 + $0xa9c] sm:$0xf]
    %v767 = vld [vmem:[#allocation2 + $0xaa0] sm:$0xf]
    %v768 = vld [vmem:[#allocation2 + $0xaa4] sm:$0xf]
    %v769 = vld [vmem:[#allocation2 + $0xaa8] sm:$0xf]
    %v770 = vld [vmem:[#allocation2 + $0xaac] sm:$0xf]
    %v771 = vld [vmem:[#allocation2 + $0xab0] sm:$0xf]
    %v772 = vld [vmem:[#allocation2 + $0xab4] sm:$0xf]
    %v773 = vld [vmem:[#allocation2 + $0xab8] sm:$0xf]
    %v774 = vld [vmem:[#allocation2 + $0xabc] sm:$0xf]
    %v775 = vld [vmem:[#allocation2 + $0xac0] sm:$0xf]
    %v776 = vld [vmem:[#allocation2 + $0xac4] sm:$0xf]
    %v777 = vld [vmem:[#allocation2 + $0xac8] sm:$0xf]
    %v778 = vld [vmem:[#allocation2 + $0xacc] sm:$0xf]
    %v779 = vld [vmem:[#allocation2 + $0xad0] sm:$0xf]
    %v780 = vld [vmem:[#allocation2 + $0xad4] sm:$0xf]
    %v781 = vld [vmem:[#allocation2 + $0xad8] sm:$0xf]
    %v782 = vld [vmem:[#allocation2 + $0xadc] sm:$0xf]
    %v783 = vld [vmem:[#allocation2 + $0xae0] sm:$0xf]
    %v784 = vld [vmem:[#allocation2 + $0xae4] sm:$0xf]
    %v785 = vld [vmem:[#allocation2 + $0xae8] sm:$0xf]
    %v786 = vld [vmem:[#allocation2 + $0xaec] sm:$0xf]
    %v787 = vld [vmem:[#allocation2 + $0xaf0] sm:$0xf]
    %v788 = vld [vmem:[#allocation2 + $0xaf4] sm:$0xf]
    %v789 = vld [vmem:[#allocation2 + $0xaf8] sm:$0xf]
    %v790 = vld [vmem:[#allocation2 + $0xafc] sm:$0xf]
    %v791 = vld [vmem:[#allocation2 + $0xb00] sm:$0xf]
    %v792 = vld [vmem:[#allocation2 + $0xb04] sm:$0xf]
    %v793 = vld [vmem:[#allocation2 + $0xb08] sm:$0xf]
    %v794 = vld [vmem:[#allocation2 + $0xb0c] sm:$0xf]
    %v795 = vld [vmem:[#allocation5] sm:$0x1]
    %v797 = vperm.slane %v795, 0
    %800 = vst [vmem:[#allocation1] ss:$9 sm:$0xff] %v81
    %v801 = vld [vmem:[#allocation1] sm:$0xff]
    %v802 = vld [vmem:[#allocation1 + $0x9] sm:$0xff]
    %v803 = vld [vmem:[#allocation1 + $0x12] sm:$0xff]
    %v804 = vld [vmem:[#allocation1 + $0x1b] sm:$0xff]
    %v805 = vld [vmem:[#allocation1 + $0x24] sm:$0xff]
    %v806 = vld [vmem:[#allocation1 + $0x2d] sm:$0xff]
    %v807 = vld [vmem:[#allocation1 + $0x36] sm:$0xff]
    %v808 = vld [vmem:[#allocation1 + $0x3f] sm:$0xff]
    %810 = vst [vmem:[#allocation1] ss:$9 sm:$0xff] %v82
    %v811 = vld [vmem:[#allocation1] sm:$0xff]
    %v812 = vld [vmem:[#allocation1 + $0x9] sm:$0xff]
    %v813 = vld [vmem:[#allocation1 + $0x12] sm:$0xff]
    %v814 = vld [vmem:[#allocation1 + $0x1b] sm:$0xff]
    %v815 = vld [vmem:[#allocation1 + $0x24] sm:$0xff]
    %v816 = vld [vmem:[#allocation1 + $0x2d] sm:$0xff]
    %v817 = vld [vmem:[#allocation1 + $0x36] sm:$0xff]
    %v818 = vld [vmem:[#allocation1 + $0x3f] sm:$0xff]
    %820 = vst [vmem:[#allocation1] ss:$9 sm:$0xff] %v83
    %v821 = vld [vmem:[#allocation1] sm:$0xff]
    %v822 = vld [vmem:[#allocation1 + $0x9] sm:$0xff]
    %v823 = vld [vmem:[#allocation1 + $0x12] sm:$0xff]
    %v824 = vld [vmem:[#allocation1 + $0x1b] sm:$0xff]
    %v825 = vld [vmem:[#allocation1 + $0x24] sm:$0xff]
    %v826 = vld [vmem:[#allocation1 + $0x2d] sm:$0xff]
    %v827 = vld [vmem:[#allocation1 + $0x36] sm:$0xff]
    %v828 = vld [vmem:[#allocation1 + $0x3f] sm:$0xff]
    %830 = vst [vmem:[#allocation1] ss:$9 sm:$0xff] %v84
    %v831 = vld [vmem:[#allocation1] sm:$0xff]
    %v832 = vld [vmem:[#allocation1 + $0x9] sm:$0xff]
    %v833 = vld [vmem:[#allocation1 + $0x12] sm:$0xff]
    %v834 = vld [vmem:[#allocation1 + $0x1b] sm:$0xff]
    %v835 = vld [vmem:[#allocation1 + $0x24] sm:$0xff]
    %v836 = vld [vmem:[#allocation1 + $0x2d] sm:$0xff]
    %v837 = vld [vmem:[#allocation1 + $0x36] sm:$0xff]
    %v838 = vld [vmem:[#allocation1 + $0x3f] sm:$0xff]
    %840 = vst [vmem:[#allocation1] ss:$9 sm:$0xff] %v85
    %v841 = vld [vmem:[#allocation1] sm:$0xff]
    %v842 = vld [vmem:[#allocation1 + $0x9] sm:$0xff]
    %v843 = vld [vmem:[#allocation1 + $0x12] sm:$0xff]
    %v844 = vld [vmem:[#allocation1 + $0x1b] sm:$0xff]
    %v845 = vld [vmem:[#allocation1 + $0x24] sm:$0xff]
    %v846 = vld [vmem:[#allocation1 + $0x2d] sm:$0xff]
    %v847 = vld [vmem:[#allocation1 + $0x36] sm:$0xff]
    %v848 = vld [vmem:[#allocation1 + $0x3f] sm:$0xff]
    %850 = vst [vmem:[#allocation1] ss:$9 sm:$0xff] %v86
    %v851 = vld [vmem:[#allocation1] sm:$0xff]
    %v852 = vld [vmem:[#allocation1 + $0x9] sm:$0xff]
    %v853 = vld [vmem:[#allocation1 + $0x12] sm:$0xff]
    %v854 = vld [vmem:[#allocation1 + $0x1b] sm:$0xff]
    %v855 = vld [vmem:[#allocation1 + $0x24] sm:$0xff]
    %v1608 = vunpack.c.l.b16 %v87
    %v1609 = vunpack.c.l.b16 %v88
    %v1610 = vunpack.c.l.b16 %v89
    %v1611 = vunpack.c.l.b16 %v90
    %v1612 = vunpack.c.l.b16 %v91
    %v1613 = vunpack.c.l.b16 %v92
    %v1614 = vunpack.c.l.b16 %v93
    %v1615 = vunpack.c.l.b16 %v94
    %v1616 = vunpack.c.l.b16 %v95
    %v1617 = vunpack.c.l.b16 %v96
    %v1618 = vunpack.c.l.b16 %v97
    %v1619 = vunpack.c.l.b16 %v98
    %v1620 = vunpack.c.l.b16 %v99
    %v1621 = vunpack.c.l.b16 %v100
    %v1622 = vunpack.c.l.b16 %v101
    %v1623 = vunpack.c.l.b16 %v102
    %v1624 = vunpack.c.l.b16 %v103
    %v1625 = vunpack.c.l.b16 %v104
    %v1626 = vunpack.c.l.b16 %v105
    %v1627 = vunpack.c.l.b16 %v106
    %v1628 = vunpack.c.l.b16 %v107
    %v1629 = vunpack.c.l.b16 %v108
    %v1630 = vunpack.c.l.b16 %v109
    %v1631 = vunpack.c.l.b16 %v110
    %v1632 = vunpack.c.l.b16 %v111
    %v1633 = vunpack.c.l.b16 %v112
    %v1634 = vunpack.c.l.b16 %v113
    %v1635 = vunpack.c.l.b16 %v114
    %v1636 = vunpack.c.l.b16 %v115
    %v1637 = vunpack.c.l.b16 %v116
    %v1638 = vunpack.c.l.b16 %v117
    %v1639 = vunpack.c.l.b16 %v118
    %v1640 = vunpack.c.l.b16 %v119
    %v1641 = vunpack.c.l.b16 %v120
    %v1642 = vunpack.c.l.b16 %v121
    %v1643 = vunpack.c.l.b16 %v122
    %v1644 = vunpack.c.l.b16 %v123
    %v1645 = vunpack.c.l.b16 %v124
    %v1646 = vunpack.c.l.b16 %v125
    %v1647 = vunpack.c.l.b16 %v126
    %v1648 = vunpack.c.l.b16 %v127
    %v1649 = vunpack.c.l.b16 %v128
    %v1650 = vunpack.c.l.b16 %v129
    %v1651 = vunpack.c.l.b16 %v130
    %v1652 = vunpack.c.l.b16 %v131
    %v1653 = vunpack.c.l.b16 %v132
    %v1654 = vunpack.c.l.b16 %v133
    %v1655 = vunpack.c.l.b16 %v134
    %v1656 = vunpack.c.l.b16 %v135
    %v1657 = vunpack.c.l.b16 %v136
    %v1658 = vunpack.c.l.b16 %v137
    %v1659 = vunpack.c.l.b16 %v138
    %v1660 = vunpack.c.l.b16 %v139
    %v1661 = vunpack.c.l.b16 %v140
    %v1662 = vunpack.c.l.b16 %v141
    %v1663 = vunpack.c.l.b16 %v142
    %v1664 = vunpack.c.l.b16 %v143
    %v1665 = vunpack.c.l.b16 %v144
    %v1666 = vunpack.c.l.b16 %v145
    %v1667 = vunpack.c.l.b16 %v146
    %v1668 = vunpack.c.l.b16 %v147
    %v1669 = vunpack.c.l.b16 %v148
    %v1670 = vunpack.c.l.b16 %v149
    %v1671 = vunpack.c.l.b16 %v150
    %v1672 = vunpack.c.l.b16 %v151
    %v1673 = vunpack.c.l.b16 %v152
    %v1674 = vunpack.c.l.b16 %v153
    %v1675 = vunpack.c.l.b16 %v154
    %v1676 = vunpack.c.l.b16 %v155
    %v1677 = vunpack.c.l.b16 %v156
    %v1678 = vunpack.c.l.b16 %v157
    %v1679 = vunpack.c.l.b16 %v158
    %v1680 = vunpack.c.l.b16 %v159
    %v1681 = vunpack.c.l.b16 %v160
    %v1682 = vunpack.c.l.b16 %v161
    %v1683 = vunpack.c.l.b16 %v162
    %v1684 = vunpack.c.l.b16 %v163
    %v1685 = vunpack.c.l.b16 %v164
    %v1686 = vunpack.c.l.b16 %v165
    %v1687 = vunpack.c.l.b16 %v166
    %v1688 = vunpack.c.l.b16 %v167
    %v1689 = vunpack.c.l.b16 %v168
    %v1690 = vunpack.c.l.b16 %v169
    %v1691 = vunpack.c.l.b16 %v170
    %v1692 = vunpack.c.l.b16 %v171
    %v1693 = vunpack.c.l.b16 %v172
    %v1694 = vunpack.c.l.b16 %v173
    %v1695 = vunpack.c.l.b16 %v174
    %v1696 = vunpack.c.l.b16 %v175
    %v1697 = vunpack.c.l.b16 %v176
    %v1698 = vunpack.c.l.b16 %v177
    %v1699 = vunpack.c.l.b16 %v178
    %v1700 = vunpack.c.l.b16 %v179
    %v1701 = vunpack.c.l.b16 %v180
    %v1702 = vunpack.c.l.b16 %v181
    %v1703 = vunpack.c.l.b16 %v182
    %v1704 = vunpack.c.l.b16 %v183
    %v1705 = vunpack.c.l.b16 %v184
    %v1706 = vunpack.c.l.b16 %v185
    %v1707 = vunpack.c.l.b16 %v186
    %v1708 = vunpack.c.l.b16 %v187
    %v1709 = vunpack.c.l.b16 %v188
    %v1710 = vunpack.c.l.b16 %v189
    %v1711 = vunpack.c.l.b16 %v190
    %v1712 = vunpack.c.l.b16 %v191
    %v1713 = vunpack.c.l.b16 %v192
    %v1714 = vunpack.c.l.b16 %v193
    %v1715 = vunpack.c.l.b16 %v194
    %v1716 = vunpack.c.l.b16 %v195
    %v1717 = vunpack.c.l.b16 %v196
    %v1718 = vunpack.c.l.b16 %v197
    %v1719 = vunpack.c.l.b16 %v198
    %v1720 = vunpack.c.l.b16 %v199
    %v1721 = vunpack.c.l.b16 %v200
    %v1722 = vunpack.c.l.b16 %v201
    %v1723 = vunpack.c.l.b16 %v202
    %v1724 = vunpack.c.l.b16 %v203
    %v1725 = vunpack.c.l.b16 %v204
    %v1726 = vunpack.c.l.b16 %v205
    %v1727 = vunpack.c.l.b16 %v206
    %v1728 = vunpack.c.l.b16 %v207
    %v1729 = vunpack.c.l.b16 %v208
    %v1730 = vunpack.c.l.b16 %v209
    %v1731 = vunpack.c.l.b16 %v210
    %v1732 = vunpack.c.l.b16 %v211
    %v1733 = vunpack.c.l.b16 %v212
    %v1734 = vunpack.c.l.b16 %v213
    %v1735 = vunpack.c.l.b16 %v214
    %v1736 = vunpack.c.l.b16 %v215
    %v1737 = vunpack.c.l.b16 %v216
    %v1738 = vunpack.c.l.b16 %v217
    %v1739 = vunpack.c.l.b16 %v218
    %v1740 = vunpack.c.l.b16 %v219
    %v1741 = vunpack.c.l.b16 %v220
    %v1742 = vunpack.c.l.b16 %v221
    %v1743 = vunpack.c.l.b16 %v222
    %v1744 = vunpack.c.l.b16 %v223
    %v1745 = vunpack.c.l.b16 %v224
    %v1746 = vunpack.c.l.b16 %v225
    %v1747 = vunpack.c.l.b16 %v226
    %v1748 = vunpack.c.l.b16 %v227
    %v1749 = vunpack.c.l.b16 %v228
    %v1750 = vunpack.c.l.b16 %v229
    %v1751 = vunpack.c.l.b16 %v230
    %v1752 = vunpack.c.l.b16 %v231
    %v1753 = vunpack.c.l.b16 %v232
    %v1754 = vunpack.c.l.b16 %v233
    %v1755 = vunpack.c.l.b16 %v234
    %v1756 = vunpack.c.l.b16 %v235
    %v1757 = vunpack.c.l.b16 %v236
    %v1758 = vunpack.c.l.b16 %v237
    %v1759 = vunpack.c.l.b16 %v238
    %v1760 = vunpack.c.l.b16 %v239
    %v1761 = vunpack.c.l.b16 %v240
    %v1762 = vunpack.c.l.b16 %v241
    %v1763 = vunpack.c.l.b16 %v242
    %v1764 = vunpack.c.l.b16 %v243
    %v1765 = vunpack.c.l.b16 %v244
    %v1766 = vunpack.c.l.b16 %v245
    %v1767 = vunpack.c.l.b16 %v246
    %v1768 = vunpack.c.l.b16 %v247
    %v1769 = vunpack.c.l.b16 %v248
    %v1770 = vunpack.c.l.b16 %v249
    %v1771 = vunpack.c.l.b16 %v250
    %v1772 = vunpack.c.l.b16 %v251
    %v1773 = vunpack.c.l.b16 %v252
    %v1774 = vunpack.c.l.b16 %v253
    %v1775 = vunpack.c.l.b16 %v254
    %v1776 = vunpack.c.l.b16 %v255
    %v1777 = vunpack.c.l.b16 %v256
    %v1778 = vunpack.c.l.b16 %v257
    %v1779 = vunpack.c.l.b16 %v258
    %v1780 = vunpack.c.l.b16 %v259
    %v1781 = vunpack.c.l.b16 %v260
    %v1782 = vunpack.c.l.b16 %v261
    %v1783 = vunpack.c.l.b16 %v262
    %v1784 = vunpack.c.l.b16 %v263
    %v1785 = vunpack.c.l.b16 %v264
    %v1786 = vunpack.c.l.b16 %v265
    %v1787 = vunpack.c.l.b16 %v266
    %v1788 = vunpack.c.l.b16 %v267
    %v1789 = vunpack.c.l.b16 %v268
    %v1790 = vunpack.c.l.b16 %v269
    %v1791 = vunpack.c.l.b16 %v270
    %v1792 = vunpack.c.l.b16 %v271
    %v1793 = vunpack.c.l.b16 %v272
    %v1794 = vunpack.c.l.b16 %v273
    %v1795 = vunpack.c.l.b16 %v274
    %v1796 = vunpack.c.l.b16 %v275
    %v1797 = vunpack.c.l.b16 %v276
    %v1798 = vunpack.c.l.b16 %v277
    %v1799 = vunpack.c.l.b16 %v278
    %v1800 = vunpack.c.l.b16 %v279
    %v1801 = vunpack.c.l.b16 %v280
    %v1802 = vunpack.c.l.b16 %v281
    %v1803 = vunpack.c.l.b16 %v282
    %v1804 = vunpack.c.l.b16 %v283
    %v1805 = vunpack.c.l.b16 %v284
    %v1806 = vunpack.c.l.b16 %v285
    %v1807 = vunpack.c.l.b16 %v286
    %v1808 = vunpack.c.l.b16 %v287
    %v1809 = vunpack.c.l.b16 %v288
    %v1810 = vunpack.c.l.b16 %v289
    %v1811 = vunpack.c.l.b16 %v290
    %v1812 = vunpack.c.l.b16 %v291
    %v1813 = vunpack.c.l.b16 %v292
    %v1814 = vunpack.c.l.b16 %v293
    %v1815 = vunpack.c.l.b16 %v294
    %v1816 = vunpack.c.l.b16 %v295
    %v1817 = vunpack.c.l.b16 %v296
    %v1818 = vunpack.c.l.b16 %v297
    %v1819 = vunpack.c.l.b16 %v298
    %v1820 = vunpack.c.l.b16 %v299
    %v1821 = vunpack.c.l.b16 %v300
    %v1822 = vunpack.c.l.b16 %v301
    %v1823 = vunpack.c.l.b16 %v302
    %v1824 = vunpack.c.l.b16 %v303
    %v1825 = vunpack.c.l.b16 %v304
    %v1826 = vunpack.c.l.b16 %v305
    %v1827 = vunpack.c.l.b16 %v306
    %v1828 = vunpack.c.l.b16 %v307
    %v1829 = vunpack.c.l.b16 %v308
    %v1830 = vunpack.c.l.b16 %v309
    %v1831 = vunpack.c.l.b16 %v310
    %v1832 = vunpack.c.l.b16 %v311
    %v1833 = vunpack.c.l.b16 %v312
    %v1834 = vunpack.c.l.b16 %v313
    %v1835 = vunpack.c.l.b16 %v314
    %v1836 = vunpack.c.l.b16 %v315
    %v1837 = vunpack.c.l.b16 %v316
    %v1838 = vunpack.c.l.b16 %v317
    %v1839 = vunpack.c.l.b16 %v318
    %v1840 = vunpack.c.l.b16 %v319
    %v1841 = vunpack.c.l.b16 %v320
    %v1842 = vunpack.c.l.b16 %v321
    %v1843 = vunpack.c.l.b16 %v322
    %v1844 = vunpack.c.l.b16 %v323
    %v1845 = vunpack.c.l.b16 %v324
    %v1846 = vunpack.c.l.b16 %v325
    %v1847 = vunpack.c.l.b16 %v326
    %v1848 = vunpack.c.l.b16 %v327
    %v1849 = vunpack.c.l.b16 %v328
    %v1850 = vunpack.c.l.b16 %v329
    %v1851 = vunpack.c.l.b16 %v330
    %v1852 = vunpack.c.l.b16 %v331
    %v1853 = vunpack.c.l.b16 %v332
    %v1854 = vunpack.c.l.b16 %v333
    %v1855 = vunpack.c.l.b16 %v334
    %v1856 = vunpack.c.l.b16 %v335
    %v1857 = vunpack.c.l.b16 %v336
    %v1858 = vunpack.c.l.b16 %v337
    %v1859 = vunpack.c.l.b16 %v338
    %v1860 = vunpack.c.l.b16 %v339
    %v1861 = vunpack.c.l.b16 %v340
    %v1862 = vunpack.c.l.b16 %v341
    %v1863 = vunpack.c.l.b16 %v342
    %v1864 = vunpack.c.l.b16 %v343
    %v1865 = vunpack.c.l.b16 %v344
    %v1866 = vunpack.c.l.b16 %v345
    %v1867 = vunpack.c.l.b16 %v346
    %v1868 = vunpack.c.l.b16 %v347
    %v1869 = vunpack.c.l.b16 %v348
    %v1870 = vunpack.c.l.b16 %v349
    %v1871 = vunpack.c.l.b16 %v350
    %v1872 = vunpack.c.l.b16 %v351
    %v1873 = vunpack.c.l.b16 %v352
    %v1874 = vunpack.c.l.b16 %v353
    %v1875 = vunpack.c.l.b16 %v354
    %v1876 = vunpack.c.l.b16 %v355
    %v1877 = vunpack.c.l.b16 %v356
    %v1878 = vunpack.c.l.b16 %v357
    %v1879 = vunpack.c.l.b16 %v358
    %v1880 = vunpack.c.l.b16 %v359
    %v1881 = vunpack.c.l.b16 %v360
    %v1882 = vunpack.c.l.b16 %v361
    %v1883 = vunpack.c.l.b16 %v362
    %v1884 = vunpack.c.l.b16 %v363
    %v1885 = vunpack.c.l.b16 %v364
    %v1886 = vunpack.c.l.b16 %v365
    %v1887 = vunpack.c.l.b16 %v366
    %v1888 = vunpack.c.l.b16 %v367
    %v1889 = vunpack.c.l.b16 %v368
    %v1890 = vunpack.c.l.b16 %v369
    %v1891 = vunpack.c.l.b16 %v370
    %v1892 = vunpack.c.l.b16 %v371
    %v1893 = vunpack.c.l.b16 %v372
    %v1894 = vunpack.c.l.b16 %v373
    %v1895 = vunpack.c.l.b16 %v374
    %v1896 = vunpack.c.l.b16 %v375
    %v1897 = vunpack.c.l.b16 %v376
    %v1898 = vunpack.c.l.b16 %v377
    %v1899 = vunpack.c.l.b16 %v378
    %v1900 = vunpack.c.l.b16 %v379
    %v1901 = vunpack.c.l.b16 %v380
    %v1902 = vunpack.c.l.b16 %v381
    %v1903 = vunpack.c.l.b16 %v382
    %v1904 = vunpack.c.l.b16 %v383
    %v1905 = vunpack.c.l.b16 %v384
    %v1906 = vunpack.c.l.b16 %v385
    %v1907 = vunpack.c.l.b16 %v386
    %v1908 = vunpack.c.l.b16 %v387
    %v1909 = vunpack.c.l.b16 %v388
    %v1910 = vunpack.c.l.b16 %v389
    %v1911 = vunpack.c.l.b16 %v390
    %v1912 = vunpack.c.l.b16 %v391
    %v1913 = vunpack.c.l.b16 %v392
    %v1914 = vunpack.c.l.b16 %v393
    %v1915 = vunpack.c.l.b16 %v394
    %v1916 = vunpack.c.l.b16 %v395
    %v1917 = vunpack.c.l.b16 %v396
    %v1918 = vunpack.c.l.b16 %v397
    %v1919 = vunpack.c.l.b16 %v398
    %v1920 = vunpack.c.l.b16 %v399
    %v1921 = vunpack.c.l.b16 %v400
    %v1922 = vunpack.c.l.b16 %v401
    %v1923 = vunpack.c.l.b16 %v402
    %v1924 = vunpack.c.l.b16 %v403
    %v1925 = vunpack.c.l.b16 %v404
    %v1926 = vunpack.c.l.b16 %v405
    %v1927 = vunpack.c.l.b16 %v406
    %v1928 = vunpack.c.l.b16 %v407
    %v1929 = vunpack.c.l.b16 %v408
    %v1930 = vunpack.c.l.b16 %v409
    %v1931 = vunpack.c.l.b16 %v410
    %v1932 = vunpack.c.l.b16 %v411
    %v1933 = vunpack.c.l.b16 %v412
    %v1934 = vunpack.c.l.b16 %v413
    %v1935 = vunpack.c.l.b16 %v414
    %v1936 = vunpack.c.l.b16 %v415
    %v1937 = vunpack.c.l.b16 %v416
    %v1938 = vunpack.c.l.b16 %v417
    %v1939 = vunpack.c.l.b16 %v418
    %v1940 = vunpack.c.l.b16 %v419
    %v1941 = vunpack.c.l.b16 %v420
    %v1942 = vunpack.c.l.b16 %v421
    %v1943 = vunpack.c.l.b16 %v422
    %v1944 = vunpack.c.l.b16 %v423
    %v1945 = vunpack.c.l.b16 %v424
    %v1946 = vunpack.c.l.b16 %v425
    %v1947 = vunpack.c.l.b16 %v426
    %v1948 = vunpack.c.l.b16 %v427
    %v1949 = vunpack.c.l.b16 %v428
    %v1950 = vunpack.c.l.b16 %v429
    %v1951 = vunpack.c.l.b16 %v430
    %v1952 = vunpack.c.l.b16 %v431
    %v1953 = vunpack.c.l.b16 %v432
    %v1954 = vunpack.c.l.b16 %v433
    %v1955 = vunpack.c.l.b16 %v434
    %v1956 = vunpack.c.l.b16 %v435
    %v1957 = vunpack.c.l.b16 %v436
    %v1958 = vunpack.c.l.b16 %v437
    %v1959 = vunpack.c.l.b16 %v438
    %v1960 = vunpack.c.l.b16 %v439
    %v1961 = vunpack.c.l.b16 %v440
    %v1962 = vunpack.c.l.b16 %v441
    %v1963 = vunpack.c.l.b16 %v442
    %v1964 = vunpack.c.l.b16 %v443
    %v1965 = vunpack.c.l.b16 %v444
    %v1966 = vunpack.c.l.b16 %v445
    %v1967 = vunpack.c.l.b16 %v446
    %v1968 = vunpack.c.l.b16 %v447
    %v1969 = vunpack.c.l.b16 %v448
    %v1970 = vunpack.c.l.b16 %v449
    %v1971 = vunpack.c.l.b16 %v450
    %v1972 = vunpack.c.l.b16 %v451
    %v1973 = vunpack.c.l.b16 %v452
    %v1974 = vunpack.c.l.b16 %v453
    %v1975 = vunpack.c.l.b16 %v454
    %v1976 = vunpack.c.l.b16 %v455
    %v1977 = vunpack.c.l.b16 %v456
    %v1978 = vunpack.c.l.b16 %v457
    %v1979 = vunpack.c.l.b16 %v458
    %v1980 = vunpack.c.l.b16 %v459
    %v1981 = vunpack.c.l.b16 %v460
    %v1982 = vunpack.c.l.b16 %v461
    %v1983 = vunpack.c.l.b16 %v462
    %v1984 = vunpack.c.l.b16 %v463
    %v1985 = vunpack.c.l.b16 %v464
    %v1986 = vunpack.c.l.b16 %v465
    %v1987 = vunpack.c.l.b16 %v466
    %v1988 = vunpack.c.l.b16 %v467
    %v1989 = vunpack.c.l.b16 %v468
    %v1990 = vunpack.c.l.b16 %v469
    %v1991 = vunpack.c.l.b16 %v470
    %v1992 = vunpack.c.l.b16 %v471
    %v1993 = vunpack.c.l.b16 %v472
    %v1994 = vunpack.c.l.b16 %v473
    %v1995 = vunpack.c.l.b16 %v474
    %v1996 = vunpack.c.l.b16 %v475
    %v1997 = vunpack.c.l.b16 %v476
    %v1998 = vunpack.c.l.b16 %v477
    %v1999 = vunpack.c.l.b16 %v478
    %v2000 = vunpack.c.l.b16 %v479
    %v2001 = vunpack.c.l.b16 %v480
    %v2002 = vunpack.c.l.b16 %v481
    %v2003 = vunpack.c.l.b16 %v482
    %v2004 = vunpack.c.l.b16 %v483
    %v2005 = vunpack.c.l.b16 %v484
    %v2006 = vunpack.c.l.b16 %v485
    %v2007 = vunpack.c.l.b16 %v486
    %v2008 = vunpack.c.l.b16 %v487
    %v2009 = vunpack.c.l.b16 %v488
    %v2010 = vunpack.c.l.b16 %v489
    %v2011 = vunpack.c.l.b16 %v490
    %v2012 = vunpack.c.l.b16 %v491
    %v2013 = vunpack.c.l.b16 %v492
    %v2014 = vunpack.c.l.b16 %v493
    %v2015 = vunpack.c.l.b16 %v494
    %v2016 = vunpack.c.l.b16 %v495
    %v2017 = vunpack.c.l.b16 %v496
    %v2018 = vunpack.c.l.b16 %v497
    %v2019 = vunpack.c.l.b16 %v498
    %v2020 = vunpack.c.l.b16 %v499
    %v2021 = vunpack.c.l.b16 %v500
    %v2022 = vunpack.c.l.b16 %v501
    %v2023 = vunpack.c.l.b16 %v502
    %v2024 = vunpack.c.l.b16 %v503
    %v2025 = vunpack.c.l.b16 %v504
    %v2026 = vunpack.c.l.b16 %v505
    %v2027 = vunpack.c.l.b16 %v506
    %v2028 = vunpack.c.l.b16 %v507
    %v2029 = vunpack.c.l.b16 %v508
    %v2030 = vunpack.c.l.b16 %v509
    %v2031 = vunpack.c.l.b16 %v510
    %v2032 = vunpack.c.l.b16 %v511
    %v2033 = vunpack.c.l.b16 %v512
    %v2034 = vunpack.c.l.b16 %v513
    %v2035 = vunpack.c.l.b16 %v514
    %v2036 = vunpack.c.l.b16 %v515
    %v2037 = vunpack.c.l.b16 %v516
    %v2038 = vunpack.c.l.b16 %v517
    %v2039 = vunpack.c.l.b16 %v518
    %v2040 = vunpack.c.l.b16 %v519
    %v2041 = vunpack.c.l.b16 %v520
    %v2042 = vunpack.c.l.b16 %v521
    %v2043 = vunpack.c.l.b16 %v522
    %v2044 = vunpack.c.l.b16 %v523
    %v2045 = vunpack.c.l.b16 %v524
    %v2046 = vunpack.c.l.b16 %v525
    %v2047 = vunpack.c.l.b16 %v526
    %v2048 = vunpack.c.l.b16 %v527
    %v2049 = vunpack.c.l.b16 %v528
    %v2050 = vunpack.c.l.b16 %v529
    %v2051 = vunpack.c.l.b16 %v530
    %v2052 = vunpack.c.l.b16 %v531
    %v2053 = vunpack.c.l.b16 %v532
    %v2054 = vunpack.c.l.b16 %v533
    %v2055 = vunpack.c.l.b16 %v534
    %v2056 = vunpack.c.l.b16 %v535
    %v2057 = vunpack.c.l.b16 %v536
    %v2058 = vunpack.c.l.b16 %v537
    %v2059 = vunpack.c.l.b16 %v538
    %v2060 = vunpack.c.l.b16 %v539
    %v2061 = vunpack.c.l.b16 %v540
    %v2062 = vunpack.c.l.b16 %v541
    %v2063 = vunpack.c.l.b16 %v542
    %v2064 = vunpack.c.l.b16 %v543
    %v2065 = vunpack.c.l.b16 %v544
    %v2066 = vunpack.c.l.b16 %v545
    %v2067 = vunpack.c.l.b16 %v546
    %v2068 = vunpack.c.l.b16 %v547
    %v2069 = vunpack.c.l.b16 %v548
    %v2070 = vunpack.c.l.b16 %v549
    %v2071 = vunpack.c.l.b16 %v550
    %v2072 = vunpack.c.l.b16 %v551
    %v2073 = vunpack.c.l.b16 %v552
    %v2074 = vunpack.c.l.b16 %v553
    %v2075 = vunpack.c.l.b16 %v554
    %v2076 = vunpack.c.l.b16 %v555
    %v2077 = vunpack.c.l.b16 %v556
    %v2078 = vunpack.c.l.b16 %v557
    %v2079 = vunpack.c.l.b16 %v558
    %v2080 = vunpack.c.l.b16 %v559
    %v2081 = vunpack.c.l.b16 %v560
    %v2082 = vunpack.c.l.b16 %v561
    %v2083 = vunpack.c.l.b16 %v562
    %v2084 = vunpack.c.l.b16 %v563
    %v2085 = vunpack.c.l.b16 %v564
    %v2086 = vunpack.c.l.b16 %v565
    %v2087 = vunpack.c.l.b16 %v566
    %v2088 = vunpack.c.l.b16 %v567
    %v2089 = vunpack.c.l.b16 %v568
    %v2090 = vunpack.c.l.b16 %v569
    %v2091 = vunpack.c.l.b16 %v570
    %v2092 = vunpack.c.l.b16 %v571
    %v2093 = vunpack.c.l.b16 %v572
    %v2094 = vunpack.c.l.b16 %v573
    %v2095 = vunpack.c.l.b16 %v574
    %v2096 = vunpack.c.l.b16 %v575
    %v2097 = vunpack.c.l.b16 %v576
    %v2098 = vunpack.c.l.b16 %v577
    %v2099 = vunpack.c.l.b16 %v578
    %v2100 = vunpack.c.l.b16 %v579
    %v2101 = vunpack.c.l.b16 %v580
    %v2102 = vunpack.c.l.b16 %v581
    %v2103 = vunpack.c.l.b16 %v582
    %v2104 = vunpack.c.l.b16 %v583
    %v2105 = vunpack.c.l.b16 %v584
    %v2106 = vunpack.c.l.b16 %v585
    %v2107 = vunpack.c.l.b16 %v586
    %v2108 = vunpack.c.l.b16 %v587
    %v2109 = vunpack.c.l.b16 %v588
    %v2110 = vunpack.c.l.b16 %v589
    %v2111 = vunpack.c.l.b16 %v590
    %v2112 = vunpack.c.l.b16 %v591
    %v2113 = vunpack.c.l.b16 %v592
    %v2114 = vunpack.c.l.b16 %v593
    %v2115 = vunpack.c.l.b16 %v594
    %v2116 = vunpack.c.l.b16 %v595
    %v2117 = vunpack.c.l.b16 %v596
    %v2118 = vunpack.c.l.b16 %v597
    %v2119 = vunpack.c.l.b16 %v598
    %v2120 = vunpack.c.l.b16 %v599
    %v2121 = vunpack.c.l.b16 %v600
    %v2122 = vunpack.c.l.b16 %v601
    %v2123 = vunpack.c.l.b16 %v602
    %v2124 = vunpack.c.l.b16 %v603
    %v2125 = vunpack.c.l.b16 %v604
    %v2126 = vunpack.c.l.b16 %v605
    %v2127 = vunpack.c.l.b16 %v606
    %v2128 = vunpack.c.l.b16 %v607
    %v2129 = vunpack.c.l.b16 %v608
    %v2130 = vunpack.c.l.b16 %v609
    %v2131 = vunpack.c.l.b16 %v610
    %v2132 = vunpack.c.l.b16 %v611
    %v2133 = vunpack.c.l.b16 %v612
    %v2134 = vunpack.c.l.b16 %v613
    %v2135 = vunpack.c.l.b16 %v614
    %v2136 = vunpack.c.l.b16 %v615
    %v2137 = vunpack.c.l.b16 %v616
    %v2138 = vunpack.c.l.b16 %v617
    %v2139 = vunpack.c.l.b16 %v618
    %v2140 = vunpack.c.l.b16 %v619
    %v2141 = vunpack.c.l.b16 %v620
    %v2142 = vunpack.c.l.b16 %v621
    %v2143 = vunpack.c.l.b16 %v622
    %v2144 = vunpack.c.l.b16 %v623
    %v2145 = vunpack.c.l.b16 %v624
    %v2146 = vunpack.c.l.b16 %v625
    %v2147 = vunpack.c.l.b16 %v626
    %v2148 = vunpack.c.l.b16 %v627
    %v2149 = vunpack.c.l.b16 %v628
    %v2150 = vunpack.c.l.b16 %v629
    %v2151 = vunpack.c.l.b16 %v630
    %v2152 = vunpack.c.l.b16 %v631
    %v2153 = vunpack.c.l.b16 %v632
    %v2154 = vunpack.c.l.b16 %v633
    %v2155 = vunpack.c.l.b16 %v634
    %v2156 = vunpack.c.l.b16 %v635
    %v2157 = vunpack.c.l.b16 %v636
    %v2158 = vunpack.c.l.b16 %v637
    %v2159 = vunpack.c.l.b16 %v638
    %v2160 = vunpack.c.l.b16 %v639
    %v2161 = vunpack.c.l.b16 %v640
    %v2162 = vunpack.c.l.b16 %v641
    %v2163 = vunpack.c.l.b16 %v642
    %v2164 = vunpack.c.l.b16 %v643
    %v2165 = vunpack.c.l.b16 %v644
    %v2166 = vunpack.c.l.b16 %v645
    %v2167 = vunpack.c.l.b16 %v646
    %v2168 = vunpack.c.l.b16 %v647
    %v2169 = vunpack.c.l.b16 %v648
    %v2170 = vunpack.c.l.b16 %v649
    %v2171 = vunpack.c.l.b16 %v650
    %v2172 = vunpack.c.l.b16 %v651
    %v2173 = vunpack.c.l.b16 %v652
    %v2174 = vunpack.c.l.b16 %v653
    %v2175 = vunpack.c.l.b16 %v654
    %v2176 = vunpack.c.l.b16 %v655
    %v2177 = vunpack.c.l.b16 %v656
    %v2178 = vunpack.c.l.b16 %v657
    %v2179 = vunpack.c.l.b16 %v658
    %v2180 = vunpack.c.l.b16 %v659
    %v2181 = vunpack.c.l.b16 %v660
    %v2182 = vunpack.c.l.b16 %v661
    %v2183 = vunpack.c.l.b16 %v662
    %v2184 = vunpack.c.l.b16 %v663
    %v2185 = vunpack.c.l.b16 %v664
    %v2186 = vunpack.c.l.b16 %v665
    %v2187 = vunpack.c.l.b16 %v666
    %v2188 = vunpack.c.l.b16 %v667
    %v2189 = vunpack.c.l.b16 %v668
    %v2190 = vunpack.c.l.b16 %v669
    %v2191 = vunpack.c.l.b16 %v670
    %v2192 = vunpack.c.l.b16 %v671
    %v2193 = vunpack.c.l.b16 %v672
    %v2194 = vunpack.c.l.b16 %v673
    %v2195 = vunpack.c.l.b16 %v674
    %v2196 = vunpack.c.l.b16 %v675
    %v2197 = vunpack.c.l.b16 %v676
    %v2198 = vunpack.c.l.b16 %v677
    %v2199 = vunpack.c.l.b16 %v678
    %v2200 = vunpack.c.l.b16 %v679
    %v2201 = vunpack.c.l.b16 %v680
    %v2202 = vunpack.c.l.b16 %v681
    %v2203 = vunpack.c.l.b16 %v682
    %v2204 = vunpack.c.l.b16 %v683
    %v2205 = vunpack.c.l.b16 %v684
    %v2206 = vunpack.c.l.b16 %v685
    %v2207 = vunpack.c.l.b16 %v686
    %v2208 = vunpack.c.l.b16 %v687
    %v2209 = vunpack.c.l.b16 %v688
    %v2210 = vunpack.c.l.b16 %v689
    %v2211 = vunpack.c.l.b16 %v690
    %v2212 = vunpack.c.l.b16 %v691
    %v2213 = vunpack.c.l.b16 %v692
    %v2214 = vunpack.c.l.b16 %v693
    %v2215 = vunpack.c.l.b16 %v694
    %v2216 = vunpack.c.l.b16 %v695
    %v2217 = vunpack.c.l.b16 %v696
    %v2218 = vunpack.c.l.b16 %v697
    %v2219 = vunpack.c.l.b16 %v698
    %v2220 = vunpack.c.l.b16 %v699
    %v2221 = vunpack.c.l.b16 %v700
    %v2222 = vunpack.c.l.b16 %v701
    %v2223 = vunpack.c.l.b16 %v702
    %v2224 = vunpack.c.l.b16 %v703
    %v2225 = vunpack.c.l.b16 %v704
    %v2226 = vunpack.c.l.b16 %v705
    %v2227 = vunpack.c.l.b16 %v706
    %v2228 = vunpack.c.l.b16 %v707
    %v2229 = vunpack.c.l.b16 %v708
    %v2230 = vunpack.c.l.b16 %v709
    %v2231 = vunpack.c.l.b16 %v710
    %v2232 = vunpack.c.l.b16 %v711
    %v2233 = vunpack.c.l.b16 %v712
    %v2234 = vunpack.c.l.b16 %v713
    %v2235 = vunpack.c.l.b16 %v714
    %v2236 = vunpack.c.l.b16 %v715
    %v2237 = vunpack.c.l.b16 %v716
    %v2238 = vunpack.c.l.b16 %v717
    %v2239 = vunpack.c.l.b16 %v718
    %v2240 = vunpack.c.l.b16 %v719
    %v2241 = vunpack.c.l.b16 %v720
    %v2242 = vunpack.c.l.b16 %v721
    %v2243 = vunpack.c.l.b16 %v722
    %v2244 = vunpack.c.l.b16 %v723
    %v2245 = vunpack.c.l.b16 %v724
    %v2246 = vunpack.c.l.b16 %v725
    %v2247 = vunpack.c.l.b16 %v726
    %v2248 = vunpack.c.l.b16 %v727
    %v2249 = vunpack.c.l.b16 %v728
    %v2250 = vunpack.c.l.b16 %v729
    %v2251 = vunpack.c.l.b16 %v730
    %v2252 = vunpack.c.l.b16 %v731
    %v2253 = vunpack.c.l.b16 %v732
    %v2254 = vunpack.c.l.b16 %v733
    %v2255 = vunpack.c.l.b16 %v734
    %v2256 = vunpack.c.l.b16 %v735
    %v2257 = vunpack.c.l.b16 %v736
    %v2258 = vunpack.c.l.b16 %v737
    %v2259 = vunpack.c.l.b16 %v738
    %v2260 = vunpack.c.l.b16 %v739
    %v2261 = vunpack.c.l.b16 %v740
    %v2262 = vunpack.c.l.b16 %v741
    %v2263 = vunpack.c.l.b16 %v742
    %v2264 = vunpack.c.l.b16 %v743
    %v2265 = vunpack.c.l.b16 %v744
    %v2266 = vunpack.c.l.b16 %v745
    %v2267 = vunpack.c.l.b16 %v746
    %v2268 = vunpack.c.l.b16 %v747
    %v2269 = vunpack.c.l.b16 %v748
    %v2270 = vunpack.c.l.b16 %v749
    %v2271 = vunpack.c.l.b16 %v750
    %v2272 = vunpack.c.l.b16 %v751
    %v2273 = vunpack.c.l.b16 %v752
    %v2274 = vunpack.c.l.b16 %v753
    %v2275 = vunpack.c.l.b16 %v754
    %v2276 = vunpack.c.l.b16 %v755
    %v2277 = vunpack.c.l.b16 %v756
    %v2278 = vunpack.c.l.b16 %v757
    %v2279 = vunpack.c.l.b16 %v758
    %v2280 = vunpack.c.l.b16 %v759
    %v2281 = vunpack.c.l.b16 %v760
    %v2282 = vunpack.c.l.b16 %v761
    %v2283 = vunpack.c.l.b16 %v762
    %v2284 = vunpack.c.l.b16 %v763
    %v2285 = vunpack.c.l.b16 %v764
    %v2286 = vunpack.c.l.b16 %v765
    %v2287 = vunpack.c.l.b16 %v766
    %v2288 = vunpack.c.l.b16 %v767
    %v2289 = vunpack.c.l.b16 %v768
    %v2290 = vunpack.c.l.b16 %v769
    %v2291 = vunpack.c.l.b16 %v770
    %v2292 = vunpack.c.l.b16 %v771
    %v2293 = vunpack.c.l.b16 %v772
    %v2294 = vunpack.c.l.b16 %v773
    %v2295 = vunpack.c.l.b16 %v774
    %v2296 = vunpack.c.l.b16 %v775
    %v2297 = vunpack.c.l.b16 %v776
    %v2298 = vunpack.c.l.b16 %v777
    %v2299 = vunpack.c.l.b16 %v778
    %v2300 = vunpack.c.l.b16 %v779
    %v2301 = vunpack.c.l.b16 %v780
    %v2302 = vunpack.c.l.b16 %v781
    %v2303 = vunpack.c.l.b16 %v782
    %v2304 = vunpack.c.l.b16 %v783
    %v2305 = vunpack.c.l.b16 %v784
    %v2306 = vunpack.c.l.b16 %v785
    %v2307 = vunpack.c.l.b16 %v786
    %v2308 = vunpack.c.l.b16 %v787
    %v2309 = vunpack.c.l.b16 %v788
    %v2310 = vunpack.c.l.b16 %v789
    %v2311 = vunpack.c.l.b16 %v790
    %v2312 = vunpack.c.l.b16 %v791
    %v2313 = vunpack.c.l.b16 %v792
    %v2314 = vunpack.c.l.b16 %v793
    %v2315 = vunpack.c.l.b16 %v794
    %v2316 = vpack.c.b16 %v1609, %v1608
    %v2317 = vpack.c.b16 %v1611, %v1610
    %v2318 = vpack.c.b16 %v1613, %v1612
    %v2319 = vpack.c.b16 %v1615, %v1614
    %v2320 = vpack.c.b16 %v1617, %v1616
    %v2321 = vpack.c.b16 %v1619, %v1618
    %v2322 = vpack.c.b16 %v1621, %v1620
    %v2323 = vpack.c.b16 %v1623, %v1622
    %v2324 = vpack.c.b16 %v1625, %v1624
    %v2325 = vpack.c.b16 %v1627, %v1626
    %v2326 = vpack.c.b16 %v1629, %v1628
    %v2327 = vpack.c.b16 %v1631, %v1630
    %v2328 = vpack.c.b16 %v1633, %v1632
    %v2329 = vpack.c.b16 %v1635, %v1634
    %v2330 = vpack.c.b16 %v1637, %v1636
    %v2331 = vpack.c.b16 %v1639, %v1638
    %v2332 = vpack.c.b16 %v1641, %v1640
    %v2333 = vpack.c.b16 %v1643, %v1642
    %v2334 = vpack.c.b16 %v1645, %v1644
    %v2335 = vpack.c.b16 %v1647, %v1646
    %v2336 = vpack.c.b16 %v1649, %v1648
    %v2337 = vpack.c.b16 %v1651, %v1650
    %v2338 = vpack.c.b16 %v1653, %v1652
    %v2339 = vpack.c.b16 %v1655, %v1654
    %v2340 = vpack.c.b16 %v1657, %v1656
    %v2341 = vpack.c.b16 %v1659, %v1658
    %v2342 = vpack.c.b16 %v1661, %v1660
    %v2343 = vpack.c.b16 %v1663, %v1662
    %v2344 = vpack.c.b16 %v1665, %v1664
    %v2345 = vpack.c.b16 %v1667, %v1666
    %v2346 = vpack.c.b16 %v1669, %v1668
    %v2347 = vpack.c.b16 %v1671, %v1670
    %v2348 = vpack.c.b16 %v1673, %v1672
    %v2349 = vpack.c.b16 %v1675, %v1674
    %v2350 = vpack.c.b16 %v1677, %v1676
    %v2351 = vpack.c.b16 %v1679, %v1678
    %v2352 = vpack.c.b16 %v1681, %v1680
    %v2353 = vpack.c.b16 %v1683, %v1682
    %v2354 = vpack.c.b16 %v1685, %v1684
    %v2355 = vpack.c.b16 %v1687, %v1686
    %v2356 = vpack.c.b16 %v1689, %v1688
    %v2357 = vpack.c.b16 %v1691, %v1690
    %v2358 = vpack.c.b16 %v1693, %v1692
    %v2359 = vpack.c.b16 %v1695, %v1694
    %v2360 = vpack.c.b16 %v1697, %v1696
    %v2361 = vpack.c.b16 %v1699, %v1698
    %v2362 = vpack.c.b16 %v1701, %v1700
    %v2363 = vpack.c.b16 %v1703, %v1702
    %v2364 = vpack.c.b16 %v1705, %v1704
    %v2365 = vpack.c.b16 %v1707, %v1706
    %v2366 = vpack.c.b16 %v1709, %v1708
    %v2367 = vpack.c.b16 %v1711, %v1710
    %v2368 = vpack.c.b16 %v1713, %v1712
    %v2369 = vpack.c.b16 %v1715, %v1714
    %v2370 = vpack.c.b16 %v1717, %v1716
    %v2371 = vpack.c.b16 %v1719, %v1718
    %v2372 = vpack.c.b16 %v1721, %v1720
    %v2373 = vpack.c.b16 %v1723, %v1722
    %v2374 = vpack.c.b16 %v1725, %v1724
    %v2375 = vpack.c.b16 %v1727, %v1726
    %v2376 = vpack.c.b16 %v1729, %v1728
    %v2377 = vpack.c.b16 %v1731, %v1730
    %v2378 = vpack.c.b16 %v1733, %v1732
    %v2379 = vpack.c.b16 %v1735, %v1734
    %v2380 = vpack.c.b16 %v1737, %v1736
    %v2381 = vpack.c.b16 %v1739, %v1738
    %v2382 = vpack.c.b16 %v1741, %v1740
    %v2383 = vpack.c.b16 %v1743, %v1742
    %v2384 = vpack.c.b16 %v1745, %v1744
    %v2385 = vpack.c.b16 %v1747, %v1746
    %v2386 = vpack.c.b16 %v1749, %v1748
    %v2387 = vpack.c.b16 %v1751, %v1750
    %v2388 = vpack.c.b16 %v1753, %v1752
    %v2389 = vpack.c.b16 %v1755, %v1754
    %v2390 = vpack.c.b16 %v1757, %v1756
    %v2391 = vpack.c.b16 %v1759, %v1758
    %v2392 = vpack.c.b16 %v1761, %v1760
    %v2393 = vpack.c.b16 %v1763, %v1762
    %v2394 = vpack.c.b16 %v1765, %v1764
    %v2395 = vpack.c.b16 %v1767, %v1766
    %v2396 = vpack.c.b16 %v1769, %v1768
    %v2397 = vpack.c.b16 %v1771, %v1770
    %v2398 = vpack.c.b16 %v1773, %v1772
    %v2399 = vpack.c.b16 %v1775, %v1774
    %v2400 = vpack.c.b16 %v1777, %v1776
    %v2401 = vpack.c.b16 %v1779, %v1778
    %v2402 = vpack.c.b16 %v1781, %v1780
    %v2403 = vpack.c.b16 %v1783, %v1782
    %v2404 = vpack.c.b16 %v1785, %v1784
    %v2405 = vpack.c.b16 %v1787, %v1786
    %v2406 = vpack.c.b16 %v1789, %v1788
    %v2407 = vpack.c.b16 %v1791, %v1790
    %v2408 = vpack.c.b16 %v1793, %v1792
    %v2409 = vpack.c.b16 %v1795, %v1794
    %v2410 = vpack.c.b16 %v1797, %v1796
    %v2411 = vpack.c.b16 %v1799, %v1798
    %v2412 = vpack.c.b16 %v1801, %v1800
    %v2413 = vpack.c.b16 %v1803, %v1802
    %v2414 = vpack.c.b16 %v1805, %v1804
    %v2415 = vpack.c.b16 %v1807, %v1806
    %v2416 = vpack.c.b16 %v1809, %v1808
    %v2417 = vpack.c.b16 %v1811, %v1810
    %v2418 = vpack.c.b16 %v1813, %v1812
    %v2419 = vpack.c.b16 %v1815, %v1814
    %v2420 = vpack.c.b16 %v1817, %v1816
    %v2421 = vpack.c.b16 %v1819, %v1818
    %v2422 = vpack.c.b16 %v1821, %v1820
    %v2423 = vpack.c.b16 %v1823, %v1822
    %v2424 = vpack.c.b16 %v1825, %v1824
    %v2425 = vpack.c.b16 %v1827, %v1826
    %v2426 = vpack.c.b16 %v1829, %v1828
    %v2427 = vpack.c.b16 %v1831, %v1830
    %v2428 = vpack.c.b16 %v1833, %v1832
    %v2429 = vpack.c.b16 %v1835, %v1834
    %v2430 = vpack.c.b16 %v1837, %v1836
    %v2431 = vpack.c.b16 %v1839, %v1838
    %v2432 = vpack.c.b16 %v1841, %v1840
    %v2433 = vpack.c.b16 %v1843, %v1842
    %v2434 = vpack.c.b16 %v1845, %v1844
    %v2435 = vpack.c.b16 %v1847, %v1846
    %v2436 = vpack.c.b16 %v1849, %v1848
    %v2437 = vpack.c.b16 %v1851, %v1850
    %v2438 = vpack.c.b16 %v1853, %v1852
    %v2439 = vpack.c.b16 %v1855, %v1854
    %v2440 = vpack.c.b16 %v1857, %v1856
    %v2441 = vpack.c.b16 %v1859, %v1858
    %v2442 = vpack.c.b16 %v1861, %v1860
    %v2443 = vpack.c.b16 %v1863, %v1862
    %v2444 = vpack.c.b16 %v1865, %v1864
    %v2445 = vpack.c.b16 %v1867, %v1866
    %v2446 = vpack.c.b16 %v1869, %v1868
    %v2447 = vpack.c.b16 %v1871, %v1870
    %v2448 = vpack.c.b16 %v1873, %v1872
    %v2449 = vpack.c.b16 %v1875, %v1874
    %v2450 = vpack.c.b16 %v1877, %v1876
    %v2451 = vpack.c.b16 %v1879, %v1878
    %v2452 = vpack.c.b16 %v1881, %v1880
    %v2453 = vpack.c.b16 %v1883, %v1882
    %v2454 = vpack.c.b16 %v1885, %v1884
    %v2455 = vpack.c.b16 %v1887, %v1886
    %v2456 = vpack.c.b16 %v1889, %v1888
    %v2457 = vpack.c.b16 %v1891, %v1890
    %v2458 = vpack.c.b16 %v1893, %v1892
    %v2459 = vpack.c.b16 %v1895, %v1894
    %v2460 = vpack.c.b16 %v1897, %v1896
    %v2461 = vpack.c.b16 %v1899, %v1898
    %v2462 = vpack.c.b16 %v1901, %v1900
    %v2463 = vpack.c.b16 %v1903, %v1902
    %v2464 = vpack.c.b16 %v1905, %v1904
    %v2465 = vpack.c.b16 %v1907, %v1906
    %v2466 = vpack.c.b16 %v1909, %v1908
    %v2467 = vpack.c.b16 %v1911, %v1910
    %v2468 = vpack.c.b16 %v1913, %v1912
    %v2469 = vpack.c.b16 %v1915, %v1914
    %v2470 = vpack.c.b16 %v1917, %v1916
    %v2471 = vpack.c.b16 %v1919, %v1918
    %v2472 = vpack.c.b16 %v1921, %v1920
    %v2473 = vpack.c.b16 %v1923, %v1922
    %v2474 = vpack.c.b16 %v1925, %v1924
    %v2475 = vpack.c.b16 %v1927, %v1926
    %v2476 = vpack.c.b16 %v1929, %v1928
    %v2477 = vpack.c.b16 %v1931, %v1930
    %v2478 = vpack.c.b16 %v1933, %v1932
    %v2479 = vpack.c.b16 %v1935, %v1934
    %v2480 = vpack.c.b16 %v1937, %v1936
    %v2481 = vpack.c.b16 %v1939, %v1938
    %v2482 = vpack.c.b16 %v1941, %v1940
    %v2483 = vpack.c.b16 %v1943, %v1942
    %v2484 = vpack.c.b16 %v1945, %v1944
    %v2485 = vpack.c.b16 %v1947, %v1946
    %v2486 = vpack.c.b16 %v1949, %v1948
    %v2487 = vpack.c.b16 %v1951, %v1950
    %v2488 = vpack.c.b16 %v1953, %v1952
    %v2489 = vpack.c.b16 %v1955, %v1954
    %v2490 = vpack.c.b16 %v1957, %v1956
    %v2491 = vpack.c.b16 %v1959, %v1958
    %v2492 = vpack.c.b16 %v1961, %v1960
    %v2493 = vpack.c.b16 %v1963, %v1962
    %v2494 = vpack.c.b16 %v1965, %v1964
    %v2495 = vpack.c.b16 %v1967, %v1966
    %v2496 = vpack.c.b16 %v1969, %v1968
    %v2497 = vpack.c.b16 %v1971, %v1970
    %v2498 = vpack.c.b16 %v1973, %v1972
    %v2499 = vpack.c.b16 %v1975, %v1974
    %v2500 = vpack.c.b16 %v1977, %v1976
    %v2501 = vpack.c.b16 %v1979, %v1978
    %v2502 = vpack.c.b16 %v1981, %v1980
    %v2503 = vpack.c.b16 %v1983, %v1982
    %v2504 = vpack.c.b16 %v1985, %v1984
    %v2505 = vpack.c.b16 %v1987, %v1986
    %v2506 = vpack.c.b16 %v1989, %v1988
    %v2507 = vpack.c.b16 %v1991, %v1990
    %v2508 = vpack.c.b16 %v1993, %v1992
    %v2509 = vpack.c.b16 %v1995, %v1994
    %v2510 = vpack.c.b16 %v1997, %v1996
    %v2511 = vpack.c.b16 %v1999, %v1998
    %v2512 = vpack.c.b16 %v2001, %v2000
    %v2513 = vpack.c.b16 %v2003, %v2002
    %v2514 = vpack.c.b16 %v2005, %v2004
    %v2515 = vpack.c.b16 %v2007, %v2006
    %v2516 = vpack.c.b16 %v2009, %v2008
    %v2517 = vpack.c.b16 %v2011, %v2010
    %v2518 = vpack.c.b16 %v2013, %v2012
    %v2519 = vpack.c.b16 %v2015, %v2014
    %v2520 = vpack.c.b16 %v2017, %v2016
    %v2521 = vpack.c.b16 %v2019, %v2018
    %v2522 = vpack.c.b16 %v2021, %v2020
    %v2523 = vpack.c.b16 %v2023, %v2022
    %v2524 = vpack.c.b16 %v2025, %v2024
    %v2525 = vpack.c.b16 %v2027, %v2026
    %v2526 = vpack.c.b16 %v2029, %v2028
    %v2527 = vpack.c.b16 %v2031, %v2030
    %v2528 = vpack.c.b16 %v2033, %v2032
    %v2529 = vpack.c.b16 %v2035, %v2034
    %v2530 = vpack.c.b16 %v2037, %v2036
    %v2531 = vpack.c.b16 %v2039, %v2038
    %v2532 = vpack.c.b16 %v2041, %v2040
    %v2533 = vpack.c.b16 %v2043, %v2042
    %v2534 = vpack.c.b16 %v2045, %v2044
    %v2535 = vpack.c.b16 %v2047, %v2046
    %v2536 = vpack.c.b16 %v2049, %v2048
    %v2537 = vpack.c.b16 %v2051, %v2050
    %v2538 = vpack.c.b16 %v2053, %v2052
    %v2539 = vpack.c.b16 %v2055, %v2054
    %v2540 = vpack.c.b16 %v2057, %v2056
    %v2541 = vpack.c.b16 %v2059, %v2058
    %v2542 = vpack.c.b16 %v2061, %v2060
    %v2543 = vpack.c.b16 %v2063, %v2062
    %v2544 = vpack.c.b16 %v2065, %v2064
    %v2545 = vpack.c.b16 %v2067, %v2066
    %v2546 = vpack.c.b16 %v2069, %v2068
    %v2547 = vpack.c.b16 %v2071, %v2070
    %v2548 = vpack.c.b16 %v2073, %v2072
    %v2549 = vpack.c.b16 %v2075, %v2074
    %v2550 = vpack.c.b16 %v2077, %v2076
    %v2551 = vpack.c.b16 %v2079, %v2078
    %v2552 = vpack.c.b16 %v2081, %v2080
    %v2553 = vpack.c.b16 %v2083, %v2082
    %v2554 = vpack.c.b16 %v2085, %v2084
    %v2555 = vpack.c.b16 %v2087, %v2086
    %v2556 = vpack.c.b16 %v2089, %v2088
    %v2557 = vpack.c.b16 %v2091, %v2090
    %v2558 = vpack.c.b16 %v2093, %v2092
    %v2559 = vpack.c.b16 %v2095, %v2094
    %v2560 = vpack.c.b16 %v2097, %v2096
    %v2561 = vpack.c.b16 %v2099, %v2098
    %v2562 = vpack.c.b16 %v2101, %v2100
    %v2563 = vpack.c.b16 %v2103, %v2102
    %v2564 = vpack.c.b16 %v2105, %v2104
    %v2565 = vpack.c.b16 %v2107, %v2106
    %v2566 = vpack.c.b16 %v2109, %v2108
    %v2567 = vpack.c.b16 %v2111, %v2110
    %v2568 = vpack.c.b16 %v2113, %v2112
    %v2569 = vpack.c.b16 %v2115, %v2114
    %v2570 = vpack.c.b16 %v2117, %v2116
    %v2571 = vpack.c.b16 %v2119, %v2118
    %v2572 = vpack.c.b16 %v2121, %v2120
    %v2573 = vpack.c.b16 %v2123, %v2122
    %v2574 = vpack.c.b16 %v2125, %v2124
    %v2575 = vpack.c.b16 %v2127, %v2126
    %v2576 = vpack.c.b16 %v2129, %v2128
    %v2577 = vpack.c.b16 %v2131, %v2130
    %v2578 = vpack.c.b16 %v2133, %v2132
    %v2579 = vpack.c.b16 %v2135, %v2134
    %v2580 = vpack.c.b16 %v2137, %v2136
    %v2581 = vpack.c.b16 %v2139, %v2138
    %v2582 = vpack.c.b16 %v2141, %v2140
    %v2583 = vpack.c.b16 %v2143, %v2142
    %v2584 = vpack.c.b16 %v2145, %v2144
    %v2585 = vpack.c.b16 %v2147, %v2146
    %v2586 = vpack.c.b16 %v2149, %v2148
    %v2587 = vpack.c.b16 %v2151, %v2150
    %v2588 = vpack.c.b16 %v2153, %v2152
    %v2589 = vpack.c.b16 %v2155, %v2154
    %v2590 = vpack.c.b16 %v2157, %v2156
    %v2591 = vpack.c.b16 %v2159, %v2158
    %v2592 = vpack.c.b16 %v2161, %v2160
    %v2593 = vpack.c.b16 %v2163, %v2162
    %v2594 = vpack.c.b16 %v2165, %v2164
    %v2595 = vpack.c.b16 %v2167, %v2166
    %v2596 = vpack.c.b16 %v2169, %v2168
    %v2597 = vpack.c.b16 %v2171, %v2170
    %v2598 = vpack.c.b16 %v2173, %v2172
    %v2599 = vpack.c.b16 %v2175, %v2174
    %v2600 = vpack.c.b16 %v2177, %v2176
    %v2601 = vpack.c.b16 %v2179, %v2178
    %v2602 = vpack.c.b16 %v2181, %v2180
    %v2603 = vpack.c.b16 %v2183, %v2182
    %v2604 = vpack.c.b16 %v2185, %v2184
    %v2605 = vpack.c.b16 %v2187, %v2186
    %v2606 = vpack.c.b16 %v2189, %v2188
    %v2607 = vpack.c.b16 %v2191, %v2190
    %v2608 = vpack.c.b16 %v2193, %v2192
    %v2609 = vpack.c.b16 %v2195, %v2194
    %v2610 = vpack.c.b16 %v2197, %v2196
    %v2611 = vpack.c.b16 %v2199, %v2198
    %v2612 = vpack.c.b16 %v2201, %v2200
    %v2613 = vpack.c.b16 %v2203, %v2202
    %v2614 = vpack.c.b16 %v2205, %v2204
    %v2615 = vpack.c.b16 %v2207, %v2206
    %v2616 = vpack.c.b16 %v2209, %v2208
    %v2617 = vpack.c.b16 %v2211, %v2210
    %v2618 = vpack.c.b16 %v2213, %v2212
    %v2619 = vpack.c.b16 %v2215, %v2214
    %v2620 = vpack.c.b16 %v2217, %v2216
    %v2621 = vpack.c.b16 %v2219, %v2218
    %v2622 = vpack.c.b16 %v2221, %v2220
    %v2623 = vpack.c.b16 %v2223, %v2222
    %v2624 = vpack.c.b16 %v2225, %v2224
    %v2625 = vpack.c.b16 %v2227, %v2226
    %v2626 = vpack.c.b16 %v2229, %v2228
    %v2627 = vpack.c.b16 %v2231, %v2230
    %v2628 = vpack.c.b16 %v2233, %v2232
    %v2629 = vpack.c.b16 %v2235, %v2234
    %v2630 = vpack.c.b16 %v2237, %v2236
    %v2631 = vpack.c.b16 %v2239, %v2238
    %v2632 = vpack.c.b16 %v2241, %v2240
    %v2633 = vpack.c.b16 %v2243, %v2242
    %v2634 = vpack.c.b16 %v2245, %v2244
    %v2635 = vpack.c.b16 %v2247, %v2246
    %v2636 = vpack.c.b16 %v2249, %v2248
    %v2637 = vpack.c.b16 %v2251, %v2250
    %v2638 = vpack.c.b16 %v2253, %v2252
    %v2639 = vpack.c.b16 %v2255, %v2254
    %v2640 = vpack.c.b16 %v2257, %v2256
    %v2641 = vpack.c.b16 %v2259, %v2258
    %v2642 = vpack.c.b16 %v2261, %v2260
    %v2643 = vpack.c.b16 %v2263, %v2262
    %v2644 = vpack.c.b16 %v2265, %v2264
    %v2645 = vpack.c.b16 %v2267, %v2266
    %v2646 = vpack.c.b16 %v2269, %v2268
    %v2647 = vpack.c.b16 %v2271, %v2270
    %v2648 = vpack.c.b16 %v2273, %v2272
    %v2649 = vpack.c.b16 %v2275, %v2274
    %v2650 = vpack.c.b16 %v2277, %v2276
    %v2651 = vpack.c.b16 %v2279, %v2278
    %v2652 = vpack.c.b16 %v2281, %v2280
    %v2653 = vpack.c.b16 %v2283, %v2282
    %v2654 = vpack.c.b16 %v2285, %v2284
    %v2655 = vpack.c.b16 %v2287, %v2286
    %v2656 = vpack.c.b16 %v2289, %v2288
    %v2657 = vpack.c.b16 %v2291, %v2290
    %v2658 = vpack.c.b16 %v2293, %v2292
    %v2659 = vpack.c.b16 %v2295, %v2294
    %v2660 = vpack.c.b16 %v2297, %v2296
    %v2661 = vpack.c.b16 %v2299, %v2298
    %v2662 = vpack.c.b16 %v2301, %v2300
    %v2663 = vpack.c.b16 %v2303, %v2302
    %v2664 = vpack.c.b16 %v2305, %v2304
    %v2665 = vpack.c.b16 %v2307, %v2306
    %v2666 = vpack.c.b16 %v2309, %v2308
    %v2667 = vpack.c.b16 %v2311, %v2310
    %v2668 = vpack.c.b16 %v2313, %v2312
    %v2669 = vpack.c.b16 %v2315, %v2314
    %vm3024 = vcmask 261120
    %v3025 = vsel %vm3024, %v855, 0
    %3027 = vmatpush.bf16.msra.mxu0 %v2323
    %3028 = vmatpush.bf16.msra.mxu0 %v2322
    %3029 = vmatpush.bf16.msra.mxu0 %v2321
    %3030 = vmatpush.bf16.msra.mxu0 %v2320
    %3031 = vmatpush.bf16.msra.mxu0 %v2319
    %3032 = vmatpush.bf16.msra.mxu0 %v2318
    %3033 = vmatpush.bf16.msra.mxu0 %v2317
    %3034 = vmatpush.bf16.msra.mxu0 %v2316
    %3035 = vmatmul.bf16.gmra.mxu0 %v801
    %v3036 = vpop.f32.mrf.mxu0
    %v3037 = vadd.f32 %v797, %v3036
    %v3038 = vpop.f32.mrf.mxu0
    %3039 = vdwg.mxu0
    %3040 = vmatpush.bf16.msra.mxu0 %v2331
    %3041 = vmatpush.bf16.msra.mxu0 %v2330
    %3042 = vmatpush.bf16.msra.mxu0 %v2329
    %3043 = vmatpush.bf16.msra.mxu0 %v2328
    %3044 = vmatpush.bf16.msra.mxu0 %v2327
    %3045 = vmatpush.bf16.msra.mxu0 %v2326
    %3046 = vmatpush.bf16.msra.mxu0 %v2325
    %3047 = vmatpush.bf16.msra.mxu0 %v2324
    %3048 = vmatmul.bf16.gmra.mxu0 %v802
    %v3049 = vpop.f32.mrf.mxu0
    %v3050 = vadd.f32 %v3037, %v3049
    %v3051 = vpop.f32.mrf.mxu0
    %3052 = vdwg.mxu0
    %3053 = vmatpush.bf16.msra.mxu0 %v2339
    %3054 = vmatpush.bf16.msra.mxu0 %v2338
    %3055 = vmatpush.bf16.msra.mxu0 %v2337
    %3056 = vmatpush.bf16.msra.mxu0 %v2336
    %3057 = vmatpush.bf16.msra.mxu0 %v2335
    %3058 = vmatpush.bf16.msra.mxu0 %v2334
    %3059 = vmatpush.bf16.msra.mxu0 %v2333
    %3060 = vmatpush.bf16.msra.mxu0 %v2332
    %3061 = vmatmul.bf16.gmra.mxu0 %v803
    %v3062 = vpop.f32.mrf.mxu0
    %v3063 = vadd.f32 %v3050, %v3062
    %v3064 = vpop.f32.mrf.mxu0
    %3065 = vdwg.mxu0
    %3066 = vmatpush.bf16.msra.mxu0 %v2347
    %3067 = vmatpush.bf16.msra.mxu0 %v2346
    %3068 = vmatpush.bf16.msra.mxu0 %v2345
    %3069 = vmatpush.bf16.msra.mxu0 %v2344
    %3070 = vmatpush.bf16.msra.mxu0 %v2343
    %3071 = vmatpush.bf16.msra.mxu0 %v2342
    %3072 = vmatpush.bf16.msra.mxu0 %v2341
    %3073 = vmatpush.bf16.msra.mxu0 %v2340
    %3074 = vmatmul.bf16.gmra.mxu0 %v804
    %v3075 = vpop.f32.mrf.mxu0
    %v3076 = vadd.f32 %v3063, %v3075
    %v3077 = vpop.f32.mrf.mxu0
    %3078 = vdwg.mxu0
    %3079 = vmatpush.bf16.msra.mxu0 %v2355
    %3080 = vmatpush.bf16.msra.mxu0 %v2354
    %3081 = vmatpush.bf16.msra.mxu0 %v2353
    %3082 = vmatpush.bf16.msra.mxu0 %v2352
    %3083 = vmatpush.bf16.msra.mxu0 %v2351
    %3084 = vmatpush.bf16.msra.mxu0 %v2350
    %3085 = vmatpush.bf16.msra.mxu0 %v2349
    %3086 = vmatpush.bf16.msra.mxu0 %v2348
    %3087 = vmatmul.bf16.gmra.mxu0 %v805
    %v3088 = vpop.f32.mrf.mxu0
    %v3089 = vadd.f32 %v3076, %v3088
    %v3090 = vpop.f32.mrf.mxu0
    %3091 = vdwg.mxu0
    %3092 = vmatpush.bf16.msra.mxu0 %v2363
    %3093 = vmatpush.bf16.msra.mxu0 %v2362
    %3094 = vmatpush.bf16.msra.mxu0 %v2361
    %3095 = vmatpush.bf16.msra.mxu0 %v2360
    %3096 = vmatpush.bf16.msra.mxu0 %v2359
    %3097 = vmatpush.bf16.msra.mxu0 %v2358
    %3098 = vmatpush.bf16.msra.mxu0 %v2357
    %3099 = vmatpush.bf16.msra.mxu0 %v2356
    %3100 = vmatmul.bf16.gmra.mxu0 %v806
    %v3101 = vpop.f32.mrf.mxu0
    %v3102 = vadd.f32 %v3089, %v3101
    %v3103 = vpop.f32.mrf.mxu0
    %3104 = vdwg.mxu0
    %3105 = vmatpush.bf16.msra.mxu0 %v2371
    %3106 = vmatpush.bf16.msra.mxu0 %v2370
    %3107 = vmatpush.bf16.msra.mxu0 %v2369
    %3108 = vmatpush.bf16.msra.mxu0 %v2368
    %3109 = vmatpush.bf16.msra.mxu0 %v2367
    %3110 = vmatpush.bf16.msra.mxu0 %v2366
    %3111 = vmatpush.bf16.msra.mxu0 %v2365
    %3112 = vmatpush.bf16.msra.mxu0 %v2364
    %3113 = vmatmul.bf16.gmra.mxu0 %v807
    %v3114 = vpop.f32.mrf.mxu0
    %v3115 = vadd.f32 %v3102, %v3114
    %v3116 = vpop.f32.mrf.mxu0
    %3117 = vdwg.mxu0
    %3118 = vmatpush.bf16.msra.mxu0 %v2379
    %3119 = vmatpush.bf16.msra.mxu0 %v2378
    %3120 = vmatpush.bf16.msra.mxu0 %v2377
    %3121 = vmatpush.bf16.msra.mxu0 %v2376
    %3122 = vmatpush.bf16.msra.mxu0 %v2375
    %3123 = vmatpush.bf16.msra.mxu0 %v2374
    %3124 = vmatpush.bf16.msra.mxu0 %v2373
    %3125 = vmatpush.bf16.msra.mxu0 %v2372
    %3126 = vmatmul.bf16.gmra.mxu0 %v808
    %v3127 = vpop.f32.mrf.mxu0
    %v3128 = vadd.f32 %v3115, %v3127
    %v3129 = vpop.f32.mrf.mxu0
    %3130 = vdwg.mxu0
    %3131 = vmatpush.bf16.msra.mxu0 %v2387
    %3132 = vmatpush.bf16.msra.mxu0 %v2386
    %3133 = vmatpush.bf16.msra.mxu0 %v2385
    %3134 = vmatpush.bf16.msra.mxu0 %v2384
    %3135 = vmatpush.bf16.msra.mxu0 %v2383
    %3136 = vmatpush.bf16.msra.mxu0 %v2382
    %3137 = vmatpush.bf16.msra.mxu0 %v2381
    %3138 = vmatpush.bf16.msra.mxu0 %v2380
    %3139 = vmatmul.bf16.gmra.mxu0 %v811
    %v3140 = vpop.f32.mrf.mxu0
    %v3141 = vadd.f32 %v3128, %v3140
    %v3142 = vpop.f32.mrf.mxu0
    %3143 = vdwg.mxu0
    %3144 = vmatpush.bf16.msra.mxu0 %v2395
    %3145 = vmatpush.bf16.msra.mxu0 %v2394
    %3146 = vmatpush.bf16.msra.mxu0 %v2393
    %3147 = vmatpush.bf16.msra.mxu0 %v2392
    %3148 = vmatpush.bf16.msra.mxu0 %v2391
    %3149 = vmatpush.bf16.msra.mxu0 %v2390
    %3150 = vmatpush.bf16.msra.mxu0 %v2389
    %3151 = vmatpush.bf16.msra.mxu0 %v2388
    %3152 = vmatmul.bf16.gmra.mxu0 %v812
    %v3153 = vpop.f32.mrf.mxu0
    %v3154 = vadd.f32 %v3141, %v3153
    %v3155 = vpop.f32.mrf.mxu0
    %3156 = vdwg.mxu0
    %3157 = vmatpush.bf16.msra.mxu0 %v2403
    %3158 = vmatpush.bf16.msra.mxu0 %v2402
    %3159 = vmatpush.bf16.msra.mxu0 %v2401
    %3160 = vmatpush.bf16.msra.mxu0 %v2400
    %3161 = vmatpush.bf16.msra.mxu0 %v2399
    %3162 = vmatpush.bf16.msra.mxu0 %v2398
    %3163 = vmatpush.bf16.msra.mxu0 %v2397
    %3164 = vmatpush.bf16.msra.mxu0 %v2396
    %3165 = vmatmul.bf16.gmra.mxu0 %v813
    %v3166 = vpop.f32.mrf.mxu0
    %v3167 = vadd.f32 %v3154, %v3166
    %v3168 = vpop.f32.mrf.mxu0
    %3169 = vdwg.mxu0
    %3170 = vmatpush.bf16.msra.mxu0 %v2411
    %3171 = vmatpush.bf16.msra.mxu0 %v2410
    %3172 = vmatpush.bf16.msra.mxu0 %v2409
    %3173 = vmatpush.bf16.msra.mxu0 %v2408
    %3174 = vmatpush.bf16.msra.mxu0 %v2407
    %3175 = vmatpush.bf16.msra.mxu0 %v2406
    %3176 = vmatpush.bf16.msra.mxu0 %v2405
    %3177 = vmatpush.bf16.msra.mxu0 %v2404
    %3178 = vmatmul.bf16.gmra.mxu0 %v814
    %v3179 = vpop.f32.mrf.mxu0
    %v3180 = vadd.f32 %v3167, %v3179
    %v3181 = vpop.f32.mrf.mxu0
    %3182 = vdwg.mxu0
    %3183 = vmatpush.bf16.msra.mxu0 %v2419
    %3184 = vmatpush.bf16.msra.mxu0 %v2418
    %3185 = vmatpush.bf16.msra.mxu0 %v2417
    %3186 = vmatpush.bf16.msra.mxu0 %v2416
    %3187 = vmatpush.bf16.msra.mxu0 %v2415
    %3188 = vmatpush.bf16.msra.mxu0 %v2414
    %3189 = vmatpush.bf16.msra.mxu0 %v2413
    %3190 = vmatpush.bf16.msra.mxu0 %v2412
    %3191 = vmatmul.bf16.gmra.mxu0 %v815
    %v3192 = vpop.f32.mrf.mxu0
    %v3193 = vadd.f32 %v3180, %v3192
    %v3194 = vpop.f32.mrf.mxu0
    %3195 = vdwg.mxu0
    %3196 = vmatpush.bf16.msra.mxu0 %v2427
    %3197 = vmatpush.bf16.msra.mxu0 %v2426
    %3198 = vmatpush.bf16.msra.mxu0 %v2425
    %3199 = vmatpush.bf16.msra.mxu0 %v2424
    %3200 = vmatpush.bf16.msra.mxu0 %v2423
    %3201 = vmatpush.bf16.msra.mxu0 %v2422
    %3202 = vmatpush.bf16.msra.mxu0 %v2421
    %3203 = vmatpush.bf16.msra.mxu0 %v2420
    %3204 = vmatmul.bf16.gmra.mxu0 %v816
    %v3205 = vpop.f32.mrf.mxu0
    %v3206 = vadd.f32 %v3193, %v3205
    %v3207 = vpop.f32.mrf.mxu0
    %3208 = vdwg.mxu0
    %3209 = vmatpush.bf16.msra.mxu0 %v2435
    %3210 = vmatpush.bf16.msra.mxu0 %v2434
    %3211 = vmatpush.bf16.msra.mxu0 %v2433
    %3212 = vmatpush.bf16.msra.mxu0 %v2432
    %3213 = vmatpush.bf16.msra.mxu0 %v2431
    %3214 = vmatpush.bf16.msra.mxu0 %v2430
    %3215 = vmatpush.bf16.msra.mxu0 %v2429
    %3216 = vmatpush.bf16.msra.mxu0 %v2428
    %3217 = vmatmul.bf16.gmra.mxu0 %v817
    %v3218 = vpop.f32.mrf.mxu0
    %v3219 = vadd.f32 %v3206, %v3218
    %v3220 = vpop.f32.mrf.mxu0
    %3221 = vdwg.mxu0
    %3222 = vmatpush.bf16.msra.mxu0 %v2443
    %3223 = vmatpush.bf16.msra.mxu0 %v2442
    %3224 = vmatpush.bf16.msra.mxu0 %v2441
    %3225 = vmatpush.bf16.msra.mxu0 %v2440
    %3226 = vmatpush.bf16.msra.mxu0 %v2439
    %3227 = vmatpush.bf16.msra.mxu0 %v2438
    %3228 = vmatpush.bf16.msra.mxu0 %v2437
    %3229 = vmatpush.bf16.msra.mxu0 %v2436
    %3230 = vmatmul.bf16.gmra.mxu0 %v818
    %v3231 = vpop.f32.mrf.mxu0
    %v3232 = vadd.f32 %v3219, %v3231
    %v3233 = vpop.f32.mrf.mxu0
    %3234 = vdwg.mxu0
    %3235 = vmatpush.bf16.msra.mxu0 %v2451
    %3236 = vmatpush.bf16.msra.mxu0 %v2450
    %3237 = vmatpush.bf16.msra.mxu0 %v2449
    %3238 = vmatpush.bf16.msra.mxu0 %v2448
    %3239 = vmatpush.bf16.msra.mxu0 %v2447
    %3240 = vmatpush.bf16.msra.mxu0 %v2446
    %3241 = vmatpush.bf16.msra.mxu0 %v2445
    %3242 = vmatpush.bf16.msra.mxu0 %v2444
    %3243 = vmatmul.bf16.gmra.mxu0 %v821
    %v3244 = vpop.f32.mrf.mxu0
    %v3245 = vadd.f32 %v3232, %v3244
    %v3246 = vpop.f32.mrf.mxu0
    %3247 = vdwg.mxu0
    %3248 = vmatpush.bf16.msra.mxu0 %v2459
    %3249 = vmatpush.bf16.msra.mxu0 %v2458
    %3250 = vmatpush.bf16.msra.mxu0 %v2457
    %3251 = vmatpush.bf16.msra.mxu0 %v2456
    %3252 = vmatpush.bf16.msra.mxu0 %v2455
    %3253 = vmatpush.bf16.msra.mxu0 %v2454
    %3254 = vmatpush.bf16.msra.mxu0 %v2453
    %3255 = vmatpush.bf16.msra.mxu0 %v2452
    %3256 = vmatmul.bf16.gmra.mxu0 %v822
    %v3257 = vpop.f32.mrf.mxu0
    %v3258 = vadd.f32 %v3245, %v3257
    %v3259 = vpop.f32.mrf.mxu0
    %3260 = vdwg.mxu0
    %3261 = vmatpush.bf16.msra.mxu0 %v2467
    %3262 = vmatpush.bf16.msra.mxu0 %v2466
    %3263 = vmatpush.bf16.msra.mxu0 %v2465
    %3264 = vmatpush.bf16.msra.mxu0 %v2464
    %3265 = vmatpush.bf16.msra.mxu0 %v2463
    %3266 = vmatpush.bf16.msra.mxu0 %v2462
    %3267 = vmatpush.bf16.msra.mxu0 %v2461
    %3268 = vmatpush.bf16.msra.mxu0 %v2460
    %3269 = vmatmul.bf16.gmra.mxu0 %v823
    %v3270 = vpop.f32.mrf.mxu0
    %v3271 = vadd.f32 %v3258, %v3270
    %v3272 = vpop.f32.mrf.mxu0
    %3273 = vdwg.mxu0
    %3274 = vmatpush.bf16.msra.mxu0 %v2475
    %3275 = vmatpush.bf16.msra.mxu0 %v2474
    %3276 = vmatpush.bf16.msra.mxu0 %v2473
    %3277 = vmatpush.bf16.msra.mxu0 %v2472
    %3278 = vmatpush.bf16.msra.mxu0 %v2471
    %3279 = vmatpush.bf16.msra.mxu0 %v2470
    %3280 = vmatpush.bf16.msra.mxu0 %v2469
    %3281 = vmatpush.bf16.msra.mxu0 %v2468
    %3282 = vmatmul.bf16.gmra.mxu0 %v824
    %v3283 = vpop.f32.mrf.mxu0
    %v3284 = vadd.f32 %v3271, %v3283
    %v3285 = vpop.f32.mrf.mxu0
    %3286 = vdwg.mxu0
    %3287 = vmatpush.bf16.msra.mxu0 %v2483
    %3288 = vmatpush.bf16.msra.mxu0 %v2482
    %3289 = vmatpush.bf16.msra.mxu0 %v2481
    %3290 = vmatpush.bf16.msra.mxu0 %v2480
    %3291 = vmatpush.bf16.msra.mxu0 %v2479
    %3292 = vmatpush.bf16.msra.mxu0 %v2478
    %3293 = vmatpush.bf16.msra.mxu0 %v2477
    %3294 = vmatpush.bf16.msra.mxu0 %v2476
    %3295 = vmatmul.bf16.gmra.mxu0 %v825
    %v3296 = vpop.f32.mrf.mxu0
    %v3297 = vadd.f32 %v3284, %v3296
    %v3298 = vpop.f32.mrf.mxu0
    %3299 = vdwg.mxu0
    %3300 = vmatpush.bf16.msra.mxu0 %v2491
    %3301 = vmatpush.bf16.msra.mxu0 %v2490
    %3302 = vmatpush.bf16.msra.mxu0 %v2489
    %3303 = vmatpush.bf16.msra.mxu0 %v2488
    %3304 = vmatpush.bf16.msra.mxu0 %v2487
    %3305 = vmatpush.bf16.msra.mxu0 %v2486
    %3306 = vmatpush.bf16.msra.mxu0 %v2485
    %3307 = vmatpush.bf16.msra.mxu0 %v2484
    %3308 = vmatmul.bf16.gmra.mxu0 %v826
    %v3309 = vpop.f32.mrf.mxu0
    %v3310 = vadd.f32 %v3297, %v3309
    %v3311 = vpop.f32.mrf.mxu0
    %3312 = vdwg.mxu0
    %3313 = vmatpush.bf16.msra.mxu0 %v2499
    %3314 = vmatpush.bf16.msra.mxu0 %v2498
    %3315 = vmatpush.bf16.msra.mxu0 %v2497
    %3316 = vmatpush.bf16.msra.mxu0 %v2496
    %3317 = vmatpush.bf16.msra.mxu0 %v2495
    %3318 = vmatpush.bf16.msra.mxu0 %v2494
    %3319 = vmatpush.bf16.msra.mxu0 %v2493
    %3320 = vmatpush.bf16.msra.mxu0 %v2492
    %3321 = vmatmul.bf16.gmra.mxu0 %v827
    %v3322 = vpop.f32.mrf.mxu0
    %v3323 = vadd.f32 %v3310, %v3322
    %v3324 = vpop.f32.mrf.mxu0
    %3325 = vdwg.mxu0
    %3326 = vmatpush.bf16.msra.mxu0 %v2507
    %3327 = vmatpush.bf16.msra.mxu0 %v2506
    %3328 = vmatpush.bf16.msra.mxu0 %v2505
    %3329 = vmatpush.bf16.msra.mxu0 %v2504
    %3330 = vmatpush.bf16.msra.mxu0 %v2503
    %3331 = vmatpush.bf16.msra.mxu0 %v2502
    %3332 = vmatpush.bf16.msra.mxu0 %v2501
    %3333 = vmatpush.bf16.msra.mxu0 %v2500
    %3334 = vmatmul.bf16.gmra.mxu0 %v828
    %v3335 = vpop.f32.mrf.mxu0
    %v3336 = vadd.f32 %v3323, %v3335
    %v3337 = vpop.f32.mrf.mxu0
    %3338 = vdwg.mxu0
    %3339 = vmatpush.bf16.msra.mxu0 %v2515
    %3340 = vmatpush.bf16.msra.mxu0 %v2514
    %3341 = vmatpush.bf16.msra.mxu0 %v2513
    %3342 = vmatpush.bf16.msra.mxu0 %v2512
    %3343 = vmatpush.bf16.msra.mxu0 %v2511
    %3344 = vmatpush.bf16.msra.mxu0 %v2510
    %3345 = vmatpush.bf16.msra.mxu0 %v2509
    %3346 = vmatpush.bf16.msra.mxu0 %v2508
    %3347 = vmatmul.bf16.gmra.mxu0 %v831
    %v3348 = vpop.f32.mrf.mxu0
    %v3349 = vadd.f32 %v3336, %v3348
    %v3350 = vpop.f32.mrf.mxu0
    %3351 = vdwg.mxu0
    %3352 = vmatpush.bf16.msra.mxu0 %v2523
    %3353 = vmatpush.bf16.msra.mxu0 %v2522
    %3354 = vmatpush.bf16.msra.mxu0 %v2521
    %3355 = vmatpush.bf16.msra.mxu0 %v2520
    %3356 = vmatpush.bf16.msra.mxu0 %v2519
    %3357 = vmatpush.bf16.msra.mxu0 %v2518
    %3358 = vmatpush.bf16.msra.mxu0 %v2517
    %3359 = vmatpush.bf16.msra.mxu0 %v2516
    %3360 = vmatmul.bf16.gmra.mxu0 %v832
    %v3361 = vpop.f32.mrf.mxu0
    %v3362 = vadd.f32 %v3349, %v3361
    %v3363 = vpop.f32.mrf.mxu0
    %3364 = vdwg.mxu0
    %3365 = vmatpush.bf16.msra.mxu0 %v2531
    %3366 = vmatpush.bf16.msra.mxu0 %v2530
    %3367 = vmatpush.bf16.msra.mxu0 %v2529
    %3368 = vmatpush.bf16.msra.mxu0 %v2528
    %3369 = vmatpush.bf16.msra.mxu0 %v2527
    %3370 = vmatpush.bf16.msra.mxu0 %v2526
    %3371 = vmatpush.bf16.msra.mxu0 %v2525
    %3372 = vmatpush.bf16.msra.mxu0 %v2524
    %3373 = vmatmul.bf16.gmra.mxu0 %v833
    %v3374 = vpop.f32.mrf.mxu0
    %v3375 = vadd.f32 %v3362, %v3374
    %v3376 = vpop.f32.mrf.mxu0
    %3377 = vdwg.mxu0
    %3378 = vmatpush.bf16.msra.mxu0 %v2539
    %3379 = vmatpush.bf16.msra.mxu0 %v2538
    %3380 = vmatpush.bf16.msra.mxu0 %v2537
    %3381 = vmatpush.bf16.msra.mxu0 %v2536
    %3382 = vmatpush.bf16.msra.mxu0 %v2535
    %3383 = vmatpush.bf16.msra.mxu0 %v2534
    %3384 = vmatpush.bf16.msra.mxu0 %v2533
    %3385 = vmatpush.bf16.msra.mxu0 %v2532
    %3386 = vmatmul.bf16.gmra.mxu0 %v834
    %v3387 = vpop.f32.mrf.mxu0
    %v3388 = vadd.f32 %v3375, %v3387
    %v3389 = vpop.f32.mrf.mxu0
    %3390 = vdwg.mxu0
    %3391 = vmatpush.bf16.msra.mxu0 %v2547
    %3392 = vmatpush.bf16.msra.mxu0 %v2546
    %3393 = vmatpush.bf16.msra.mxu0 %v2545
    %3394 = vmatpush.bf16.msra.mxu0 %v2544
    %3395 = vmatpush.bf16.msra.mxu0 %v2543
    %3396 = vmatpush.bf16.msra.mxu0 %v2542
    %3397 = vmatpush.bf16.msra.mxu0 %v2541
    %3398 = vmatpush.bf16.msra.mxu0 %v2540
    %3399 = vmatmul.bf16.gmra.mxu0 %v835
    %v3400 = vpop.f32.mrf.mxu0
    %v3401 = vadd.f32 %v3388, %v3400
    %v3402 = vpop.f32.mrf.mxu0
    %3403 = vdwg.mxu0
    %3404 = vmatpush.bf16.msra.mxu0 %v2555
    %3405 = vmatpush.bf16.msra.mxu0 %v2554
    %3406 = vmatpush.bf16.msra.mxu0 %v2553
    %3407 = vmatpush.bf16.msra.mxu0 %v2552
    %3408 = vmatpush.bf16.msra.mxu0 %v2551
    %3409 = vmatpush.bf16.msra.mxu0 %v2550
    %3410 = vmatpush.bf16.msra.mxu0 %v2549
    %3411 = vmatpush.bf16.msra.mxu0 %v2548
    %3412 = vmatmul.bf16.gmra.mxu0 %v836
    %v3413 = vpop.f32.mrf.mxu0
    %v3414 = vadd.f32 %v3401, %v3413
    %v3415 = vpop.f32.mrf.mxu0
    %3416 = vdwg.mxu0
    %3417 = vmatpush.bf16.msra.mxu0 %v2563
    %3418 = vmatpush.bf16.msra.mxu0 %v2562
    %3419 = vmatpush.bf16.msra.mxu0 %v2561
    %3420 = vmatpush.bf16.msra.mxu0 %v2560
    %3421 = vmatpush.bf16.msra.mxu0 %v2559
    %3422 = vmatpush.bf16.msra.mxu0 %v2558
    %3423 = vmatpush.bf16.msra.mxu0 %v2557
    %3424 = vmatpush.bf16.msra.mxu0 %v2556
    %3425 = vmatmul.bf16.gmra.mxu0 %v837
    %v3426 = vpop.f32.mrf.mxu0
    %v3427 = vadd.f32 %v3414, %v3426
    %v3428 = vpop.f32.mrf.mxu0
    %3429 = vdwg.mxu0
    %3430 = vmatpush.bf16.msra.mxu0 %v2571
    %3431 = vmatpush.bf16.msra.mxu0 %v2570
    %3432 = vmatpush.bf16.msra.mxu0 %v2569
    %3433 = vmatpush.bf16.msra.mxu0 %v2568
    %3434 = vmatpush.bf16.msra.mxu0 %v2567
    %3435 = vmatpush.bf16.msra.mxu0 %v2566
    %3436 = vmatpush.bf16.msra.mxu0 %v2565
    %3437 = vmatpush.bf16.msra.mxu0 %v2564
    %3438 = vmatmul.bf16.gmra.mxu0 %v838
    %v3439 = vpop.f32.mrf.mxu0
    %v3440 = vadd.f32 %v3427, %v3439
    %v3441 = vpop.f32.mrf.mxu0
    %3442 = vdwg.mxu0
    %3443 = vmatpush.bf16.msra.mxu0 %v2579
    %3444 = vmatpush.bf16.msra.mxu0 %v2578
    %3445 = vmatpush.bf16.msra.mxu0 %v2577
    %3446 = vmatpush.bf16.msra.mxu0 %v2576
    %3447 = vmatpush.bf16.msra.mxu0 %v2575
    %3448 = vmatpush.bf16.msra.mxu0 %v2574
    %3449 = vmatpush.bf16.msra.mxu0 %v2573
    %3450 = vmatpush.bf16.msra.mxu0 %v2572
    %3451 = vmatmul.bf16.gmra.mxu0 %v841
    %v3452 = vpop.f32.mrf.mxu0
    %v3453 = vadd.f32 %v3440, %v3452
    %v3454 = vpop.f32.mrf.mxu0
    %3455 = vdwg.mxu0
    %3456 = vmatpush.bf16.msra.mxu0 %v2587
    %3457 = vmatpush.bf16.msra.mxu0 %v2586
    %3458 = vmatpush.bf16.msra.mxu0 %v2585
    %3459 = vmatpush.bf16.msra.mxu0 %v2584
    %3460 = vmatpush.bf16.msra.mxu0 %v2583
    %3461 = vmatpush.bf16.msra.mxu0 %v2582
    %3462 = vmatpush.bf16.msra.mxu0 %v2581
    %3463 = vmatpush.bf16.msra.mxu0 %v2580
    %3464 = vmatmul.bf16.gmra.mxu0 %v842
    %v3465 = vpop.f32.mrf.mxu0
    %v3466 = vadd.f32 %v3453, %v3465
    %v3467 = vpop.f32.mrf.mxu0
    %3468 = vdwg.mxu0
    %3469 = vmatpush.bf16.msra.mxu0 %v2595
    %3470 = vmatpush.bf16.msra.mxu0 %v2594
    %3471 = vmatpush.bf16.msra.mxu0 %v2593
    %3472 = vmatpush.bf16.msra.mxu0 %v2592
    %3473 = vmatpush.bf16.msra.mxu0 %v2591
    %3474 = vmatpush.bf16.msra.mxu0 %v2590
    %3475 = vmatpush.bf16.msra.mxu0 %v2589
    %3476 = vmatpush.bf16.msra.mxu0 %v2588
    %3477 = vmatmul.bf16.gmra.mxu0 %v843
    %v3478 = vpop.f32.mrf.mxu0
    %v3479 = vadd.f32 %v3466, %v3478
    %v3480 = vpop.f32.mrf.mxu0
    %3481 = vdwg.mxu0
    %3482 = vmatpush.bf16.msra.mxu0 %v2603
    %3483 = vmatpush.bf16.msra.mxu0 %v2602
    %3484 = vmatpush.bf16.msra.mxu0 %v2601
    %3485 = vmatpush.bf16.msra.mxu0 %v2600
    %3486 = vmatpush.bf16.msra.mxu0 %v2599
    %3487 = vmatpush.bf16.msra.mxu0 %v2598
    %3488 = vmatpush.bf16.msra.mxu0 %v2597
    %3489 = vmatpush.bf16.msra.mxu0 %v2596
    %3490 = vmatmul.bf16.gmra.mxu0 %v844
    %v3491 = vpop.f32.mrf.mxu0
    %v3492 = vadd.f32 %v3479, %v3491
    %v3493 = vpop.f32.mrf.mxu0
    %3494 = vdwg.mxu0
    %3495 = vmatpush.bf16.msra.mxu0 %v2611
    %3496 = vmatpush.bf16.msra.mxu0 %v2610
    %3497 = vmatpush.bf16.msra.mxu0 %v2609
    %3498 = vmatpush.bf16.msra.mxu0 %v2608
    %3499 = vmatpush.bf16.msra.mxu0 %v2607
    %3500 = vmatpush.bf16.msra.mxu0 %v2606
    %3501 = vmatpush.bf16.msra.mxu0 %v2605
    %3502 = vmatpush.bf16.msra.mxu0 %v2604
    %3503 = vmatmul.bf16.gmra.mxu0 %v845
    %v3504 = vpop.f32.mrf.mxu0
    %v3505 = vadd.f32 %v3492, %v3504
    %v3506 = vpop.f32.mrf.mxu0
    %3507 = vdwg.mxu0
    %3508 = vmatpush.bf16.msra.mxu0 %v2619
    %3509 = vmatpush.bf16.msra.mxu0 %v2618
    %3510 = vmatpush.bf16.msra.mxu0 %v2617
    %3511 = vmatpush.bf16.msra.mxu0 %v2616
    %3512 = vmatpush.bf16.msra.mxu0 %v2615
    %3513 = vmatpush.bf16.msra.mxu0 %v2614
    %3514 = vmatpush.bf16.msra.mxu0 %v2613
    %3515 = vmatpush.bf16.msra.mxu0 %v2612
    %3516 = vmatmul.bf16.gmra.mxu0 %v846
    %v3517 = vpop.f32.mrf.mxu0
    %v3518 = vadd.f32 %v3505, %v3517
    %v3519 = vpop.f32.mrf.mxu0
    %3520 = vdwg.mxu0
    %3521 = vmatpush.bf16.msra.mxu0 %v2627
    %3522 = vmatpush.bf16.msra.mxu0 %v2626
    %3523 = vmatpush.bf16.msra.mxu0 %v2625
    %3524 = vmatpush.bf16.msra.mxu0 %v2624
    %3525 = vmatpush.bf16.msra.mxu0 %v2623
    %3526 = vmatpush.bf16.msra.mxu0 %v2622
    %3527 = vmatpush.bf16.msra.mxu0 %v2621
    %3528 = vmatpush.bf16.msra.mxu0 %v2620
    %3529 = vmatmul.bf16.gmra.mxu0 %v847
    %v3530 = vpop.f32.mrf.mxu0
    %v3531 = vadd.f32 %v3518, %v3530
    %v3532 = vpop.f32.mrf.mxu0
    %3533 = vdwg.mxu0
    %3534 = vmatpush.bf16.msra.mxu0 %v2635
    %3535 = vmatpush.bf16.msra.mxu0 %v2634
    %3536 = vmatpush.bf16.msra.mxu0 %v2633
    %3537 = vmatpush.bf16.msra.mxu0 %v2632
    %3538 = vmatpush.bf16.msra.mxu0 %v2631
    %3539 = vmatpush.bf16.msra.mxu0 %v2630
    %3540 = vmatpush.bf16.msra.mxu0 %v2629
    %3541 = vmatpush.bf16.msra.mxu0 %v2628
    %3542 = vmatmul.bf16.gmra.mxu0 %v848
    %v3543 = vpop.f32.mrf.mxu0
    %v3544 = vadd.f32 %v3531, %v3543
    %v3545 = vpop.f32.mrf.mxu0
    %3546 = vdwg.mxu0
    %3547 = vmatpush.bf16.msra.mxu0 %v2643
    %3548 = vmatpush.bf16.msra.mxu0 %v2642
    %3549 = vmatpush.bf16.msra.mxu0 %v2641
    %3550 = vmatpush.bf16.msra.mxu0 %v2640
    %3551 = vmatpush.bf16.msra.mxu0 %v2639
    %3552 = vmatpush.bf16.msra.mxu0 %v2638
    %3553 = vmatpush.bf16.msra.mxu0 %v2637
    %3554 = vmatpush.bf16.msra.mxu0 %v2636
    %3555 = vmatmul.bf16.gmra.mxu0 %v851
    %v3556 = vpop.f32.mrf.mxu0
    %v3557 = vadd.f32 %v3544, %v3556
    %v3558 = vpop.f32.mrf.mxu0
    %3559 = vdwg.mxu0
    %3560 = vmatpush.bf16.msra.mxu0 %v2651
    %3561 = vmatpush.bf16.msra.mxu0 %v2650
    %3562 = vmatpush.bf16.msra.mxu0 %v2649
    %3563 = vmatpush.bf16.msra.mxu0 %v2648
    %3564 = vmatpush.bf16.msra.mxu0 %v2647
    %3565 = vmatpush.bf16.msra.mxu0 %v2646
    %3566 = vmatpush.bf16.msra.mxu0 %v2645
    %3567 = vmatpush.bf16.msra.mxu0 %v2644
    %3568 = vmatmul.bf16.gmra.mxu0 %v852
    %v3569 = vpop.f32.mrf.mxu0
    %v3570 = vadd.f32 %v3557, %v3569
    %v3571 = vpop.f32.mrf.mxu0
    %3572 = vdwg.mxu0
    %3573 = vmatpush.bf16.msra.mxu0 %v2659
    %3574 = vmatpush.bf16.msra.mxu0 %v2658
    %3575 = vmatpush.bf16.msra.mxu0 %v2657
    %3576 = vmatpush.bf16.msra.mxu0 %v2656
    %3577 = vmatpush.bf16.msra.mxu0 %v2655
    %3578 = vmatpush.bf16.msra.mxu0 %v2654
    %3579 = vmatpush.bf16.msra.mxu0 %v2653
    %3580 = vmatpush.bf16.msra.mxu0 %v2652
    %3581 = vmatmul.bf16.gmra.mxu0 %v853
    %v3582 = vpop.f32.mrf.mxu0
    %v3583 = vadd.f32 %v3570, %v3582
    %v3584 = vpop.f32.mrf.mxu0
    %3585 = vdwg.mxu0
    %3586 = vmatpush.bf16.msra.mxu0 %v2667
    %3587 = vmatpush.bf16.msra.mxu0 %v2666
    %3588 = vmatpush.bf16.msra.mxu0 %v2665
    %3589 = vmatpush.bf16.msra.mxu0 %v2664
    %3590 = vmatpush.bf16.msra.mxu0 %v2663
    %3591 = vmatpush.bf16.msra.mxu0 %v2662
    %3592 = vmatpush.bf16.msra.mxu0 %v2661
    %3593 = vmatpush.bf16.msra.mxu0 %v2660
    %3594 = vmatmul.bf16.gmra.mxu0 %v854
    %v3595 = vpop.f32.mrf.mxu0
    %v3596 = vadd.f32 %v3583, %v3595
    %v3597 = vpop.f32.mrf.mxu0
    %3598 = vdwg.mxu0
    %3599 = vmatpush.bf16.msra.mxu0 0
    %3600 = vmatpush.bf16.msra.mxu0 0
    %3601 = vmatpush.bf16.msra.mxu0 0
    %3602 = vmatpush.bf16.msra.mxu0 0
    %3603 = vmatpush.bf16.msra.mxu0 0
    %3604 = vmatpush.bf16.msra.mxu0 0
    %3605 = vmatpush.bf16.msra.mxu0 %v2669
    %3606 = vmatpush.bf16.msra.mxu0 %v2668
    %3607 = vmatmul.bf16.gmra.mxu0 %v3025
    %v3608 = vpop.f32.mrf.mxu0
    %v3609 = vadd.f32 %v3596, %v3608
    %v3610 = vpop.f32.mrf.mxu0
    %3611 = vdwg.mxu0
    %v3612 = vmax.f32 %v3609, 0.0
    %v3613 = vld [vmem:[#allocation7] sm:$0xff]
    %v3614 = vld [vmem:[#allocation7 + $0x8] sm:$0xff]
    %v3615 = vld [vmem:[#allocation7 + $0x10] sm:$0xff]
    %v3616 = vld [vmem:[#allocation7 + $0x18] sm:$0xff]
    %v3617 = vld [vmem:[#allocation7 + $0x20] sm:$0xff]
    %v3618 = vld [vmem:[#allocation7 + $0x28] sm:$0xff]
    %v3619 = vld [vmem:[#allocation7 + $0x30] sm:$0xff]
    %v3620 = vld [vmem:[#allocation7 + $0x38] sm:$0xff]
    %v3621 = vld [vmem:[#allocation7 + $0x40] sm:$0xff]
    %v3622 = vld [vmem:[#allocation7 + $0x48] sm:$0xff]
    %v3623 = vld [vmem:[#allocation7 + $0x50] sm:$0xff]
    %v3624 = vld [vmem:[#allocation7 + $0x58] sm:$0xff]
    %v3625 = vld [vmem:[#allocation7 + $0x60] sm:$0xff]
    %v3626 = vld [vmem:[#allocation7 + $0x68] sm:$0xff]
    %v3627 = vld [vmem:[#allocation7 + $0x70] sm:$0xff]
    %v3628 = vld [vmem:[#allocation7 + $0x78] sm:$0xff]
    %v3629 = vld [vmem:[#allocation8] sm:$0x1]
    %v3631 = vperm.slane %v3629, 0
    %3633 = vmatpush.msra.mxu0 %v3628
    %3634 = vmatpush.msra.mxu0 %v3627
    %3635 = vmatpush.msra.mxu0 %v3626
    %3636 = vmatpush.msra.mxu0 %v3625
    %3637 = vmatpush.msra.mxu0 %v3624
    %3638 = vmatpush.msra.mxu0 %v3623
    %3639 = vmatpush.msra.mxu0 %v3622
    %3640 = vmatpush.msra.mxu0 %v3621
    %3641 = vmatpush.msra.mxu0 %v3620
    %3642 = vmatpush.msra.mxu0 %v3619
    %3643 = vmatpush.msra.mxu0 %v3618
    %3644 = vmatpush.msra.mxu0 %v3617
    %3645 = vmatpush.msra.mxu0 %v3616
    %3646 = vmatpush.msra.mxu0 %v3615
    %3647 = vmatpush.msra.mxu0 %v3614
    %3648 = vmatpush.msra.mxu0 %v3613
    %3649 = vmatmul.f32.gmra.mxu0 %v3612
    %v3650 = vpop.f32.mrf.mxu0
    %v3651 = vadd.f32 %v3631, %v3650
    %3652 = vdwg.mxu0
    %3653 = vst [vmem:[#allocation10] sm:$0x3] %v3651
    // Predicated region
    $region38: #{chinese_tones_cnn_forward.3} parent=1 // pred_check
      _
    $region39: #{chinese_tones_cnn_forward.3} parent=1 // pred_check_branch
      %3655 = sbr.rel (0) target = $region41
    $region40: #{chinese_tones_cnn_forward.3} parent=1 // pred_region
      %3657 = vsyncadd [#allocation4], 0
      %s3659 = sshll.u32 [#allocation10], 4
      %s3660 = int_to_ptr.vmem [resolvable:$true] %s3659
      %s3661 = sshll.u32 %s5, 4
      %s3662 = int_to_ptr.hbm [resolvable:$true] %s3661
      %3664 = dma.vmem_to_hbm [thread:$0]  %s3660, 32, %s3662, [#allocation4]
    $region41: #{chinese_tones_cnn_forward.3} parent=1 // pred_fallthru
      _
    // Predicated region
    $region42: #{chinese_tones_cnn_forward.3} parent=1 // pred_check
      _
    $region43: #{chinese_tones_cnn_forward.3} parent=1 // pred_check_branch
      %3666 = sbr.rel (0) target = $region45
    $region44: #{chinese_tones_cnn_forward.3} parent=1 // pred_region
      %3668 = dma.done [#allocation4], 32
    $region45: #{chinese_tones_cnn_forward.3} parent=1 // pred_fallthru
      _
    %3669 = vsyncpa [#allocation3], 1
    %3670 = vsyncpa [#allocation6], 1
    %3671 = vsyncpa [#allocation9], 1
    %3672 = vsyncpa [#allocation4], 1

</llo_original>
